<compile_context>
chip_gen: v7x
topology: tpu7x:2x2x1
jax: 0.10.0
libtpu: 0.0.40
codegen_flags: <defaults>
</compile_context>

<pallas_src>
import jax
import jax.numpy as jnp
from jax.experimental import pallas as pl
from jax.experimental.pallas import tpu as pltpu


def _silu(x):
    # exp() goes to the EUP. The exact divide keeps bit-tight agreement with
    # the pure-JAX reference; in production use
    #   x * pl.reciprocal(1.0 + jnp.exp(-x), approx=True)
    # to route the reciprocal to the EUP slot as well.
    return x * (1.0 / (1.0 + jnp.exp(-x)))


def _mm(a, w):
    # MXU matmul: bf16 operands, f32 accumulation.
    return jnp.dot(a.astype(jnp.bfloat16), w.astype(jnp.bfloat16),
                   preferred_element_type=jnp.float32)


def c3_kernel(x_ref, w1_ref, b1_ref, w2_ref, b2_ref,
              wm1_ref, bm1_ref, wm2_ref, bm2_ref,
              w3a_ref, w3b_ref, b3_ref, o_ref):
    H, W, C1 = x_ref.shape
    C_ = w1_ref.shape[1]
    C2 = w3a_ref.shape[1]
    HW = H * W

    x = x_ref[...].reshape(HW, C1)

    # cv1 / cv2 branches: 1x1 conv (BN scale pre-folded) + bias + SiLU.
    y1 = _silu(_mm(x, w1_ref[...]) + b1_ref[...])           # (HW, C_)
    y2 = _silu(_mm(x, w2_ref[...]) + b2_ref[...])           # (HW, C_)

    # Bottleneck cv1: 1x1 conv + SiLU.
    t = _silu(_mm(y1, wm1_ref[...]) + bm1_ref[...])         # (HW, C_)
    t3 = t.reshape(H, W, C_)

    # Bottleneck cv2: 3x3 conv (stride 1, pad 1) as 9 shifted matmuls
    # accumulated in f32 — no im2col / concat buffer is materialized.
    zr = jnp.zeros((1, W, C_), dtype=jnp.float32)
    tp = jnp.concatenate([zr, t3, zr], axis=0)              # (H+2, W, C_)
    zc = jnp.zeros((H + 2, 1, C_), dtype=jnp.float32)
    tp = jnp.concatenate([zc, tp, zc], axis=1)              # (H+2, W+2, C_)

    acc = jnp.zeros((HW, C_), dtype=jnp.float32) + bm2_ref[...]
    for dy in range(3):
        for dx in range(3):
            win = tp[dy:dy + H, dx:dx + W, :].reshape(HW, C_)
            acc = acc + _mm(win, wm2_ref[dy * 3 + dx])
    u = _silu(acc)                                          # (HW, C_)
    # TODO(synk): Bottleneck.cv2 also applies CBAM(c2, 3, c2 // 4); its class
    # definition is not part of the provided spec, so it is treated as identity.

    m_out = y1 + u                                          # residual add

    # cv3 on cat([m_out, y2]) without the concat: two accumulated partial
    # matmuls against the split cv3 weight.
    z = _silu(_mm(m_out, w3a_ref[...]) + _mm(y2, w3b_ref[...]) + b3_ref[...])

    o_ref[...] = z.reshape(H, W, C2).astype(o_ref.dtype)


def c3_forward(x_nhwc, w1, b1, w2, b2, wm1, bm1, wm2, bm2, w3a, w3b, b3):
    N, H, W, C1 = x_nhwc.shape
    C_ = w1.shape[1]
    C2 = w3a.shape[1]
    c2d = lambda n: (0, 0)
    c3d = lambda n: (0, 0, 0)
    return pl.pallas_call(
        c3_kernel,
        out_shape=jax.ShapeDtypeStruct((N, H, W, C2), x_nhwc.dtype),
        grid_spec=pltpu.PrefetchScalarGridSpec(
            num_scalar_prefetch=0,
            grid=(N,),
            in_specs=[
                pl.BlockSpec((pl.Squeezed(), H, W, C1), lambda n: (n, 0, 0, 0)),
                pl.BlockSpec((C1, C_), c2d), pl.BlockSpec((1, C_), c2d),
                pl.BlockSpec((C1, C_), c2d), pl.BlockSpec((1, C_), c2d),
                pl.BlockSpec((C_, C_), c2d), pl.BlockSpec((1, C_), c2d),
                pl.BlockSpec((9, C_, C_), c3d), pl.BlockSpec((1, C_), c2d),
                pl.BlockSpec((C_, C2), c2d), pl.BlockSpec((C_, C2), c2d),
                pl.BlockSpec((1, C2), c2d),
            ],
            out_specs=pl.BlockSpec((pl.Squeezed(), H, W, C2),
                                   lambda n: (n, 0, 0, 0)),
        ),
        compiler_params=pltpu.CompilerParams(
            dimension_semantics=("parallel",)),
    )(x_nhwc, w1, b1, w2, b2, wm1, bm1, wm2, bm2, w3a, w3b, b3)


def c3_reference(x, w1, b1, w2, b2, wm1, bm1, wm2, bm2, w3a, w3b, b3):
    """Pure-JAX reference (same math, same bf16 MXU operand rounding)."""
    def mm(a, w):
        return jnp.einsum("nhwc,cd->nhwd", a.astype(jnp.bfloat16),
                          w.astype(jnp.bfloat16),
                          preferred_element_type=jnp.float32)
    silu = lambda v: v * jax.nn.sigmoid(v)
    N, H, W, _ = x.shape
    y1 = silu(mm(x, w1) + b1[0])
    y2 = silu(mm(x, w2) + b2[0])
    t = silu(mm(y1, wm1) + bm1[0])
    tp = jnp.pad(t, ((0, 0), (1, 1), (1, 1), (0, 0)))
    acc = jnp.zeros(t.shape, jnp.float32) + bm2[0]
    for dy in range(3):
        for dx in range(3):
            acc = acc + mm(tp[:, dy:dy + H, dx:dx + W, :], wm2[dy * 3 + dx])
    u = silu(acc)                       # CBAM treated as identity (see TODO)
    m_out = y1 + u
    return silu(mm(m_out, w3a) + mm(y2, w3b) + b3[0])


if __name__ == "__main__":
    # x is NCHW (2, 4, 16, 16); C3(c1=4, c2=8, n=1, e=0.5) -> c_ = 4.
    N, C1, H, W = 2, 4, 16, 16
    C2 = 8
    C_ = int(C2 * 0.5)

    key = jax.random.PRNGKey(0)
    ks = jax.random.split(key, 16)

    x_nchw = jax.random.normal(ks[0], (N, C1, H, W), dtype=jnp.float32)
    x_nhwc = jnp.transpose(x_nchw, (0, 2, 3, 1))            # kernel layout

    def conv_bn(kw, ks_, kb, cin, cout):
        # 1x1 conv weight (cin, cout), BN folded into per-out-channel scale/bias;
        # scale is folded into the weight on the host (one-time op).
        w = 0.2 * jax.random.normal(kw, (cin, cout), dtype=jnp.float32)
        s = 1.0 + 0.1 * jax.random.normal(ks_, (1, cout), dtype=jnp.float32)
        b = 0.1 * jax.random.normal(kb, (1, cout), dtype=jnp.float32)
        return w * s, b

    w1, b1 = conv_bn(ks[1], ks[2], ks[3], C1, C_)           # cv1
    w2, b2 = conv_bn(ks[4], ks[5], ks[6], C1, C_)           # cv2
    wm1, bm1 = conv_bn(ks[7], ks[8], ks[9], C_, C_)         # bottleneck cv1

    # Bottleneck cv2: 3x3 conv weights (3, 3, Cin, Cout), BN scale folded,
    # flattened to (9, Cin, Cout) for static per-tap indexing in the kernel.
    wm2_raw = 0.2 * jax.random.normal(ks[10], (3, 3, C_, C_), dtype=jnp.float32)
    sm2 = 1.0 + 0.1 * jax.random.normal(ks[11], (1, C_), dtype=jnp.float32)
    bm2 = 0.1 * jax.random.normal(ks[12], (1, C_), dtype=jnp.float32)
    wm2 = (wm2_raw * sm2).reshape(9, C_, C_)

    # cv3: (2*c_, c2) weight, BN folded, split into the two branch slabs so the
    # kernel never materializes the channel concat.
    w3, b3 = conv_bn(ks[13], ks[14], ks[15], 2 * C_, C2)
    w3a, w3b = w3[:C_], w3[C_:]

    out = c3_forward(x_nhwc, w1, b1, w2, b2, wm1, bm1, wm2, bm2, w3a, w3b, b3)
    out = jax.block_until_ready(out)

    ref = c3_reference(x_nhwc, w1, b1, w2, b2, wm1, bm1, wm2, bm2, w3a, w3b, b3)
    assert out.shape == (N, H, W, C2), out.shape
    max_err = float(jnp.max(jnp.abs(out - ref)))
    assert jnp.allclose(out, ref, atol=1e-3, rtol=1e-3), max_err

    print("KERNEL_OK")
</pallas_src>

<mosaic_0001>
module attributes {stable_mosaic.version = 11 : i64} {
  func.func @c3_kernel(%arg0: i32, %arg1: memref<1x16x16x4xf32, #tpu.memory_space<vmem>>, %arg2: memref<4x4xf32, #tpu.memory_space<vmem>>, %arg3: memref<1x4xf32, #tpu.memory_space<vmem>>, %arg4: memref<4x4xf32, #tpu.memory_space<vmem>>, %arg5: memref<1x4xf32, #tpu.memory_space<vmem>>, %arg6: memref<4x4xf32, #tpu.memory_space<vmem>>, %arg7: memref<1x4xf32, #tpu.memory_space<vmem>>, %arg8: memref<9x4x4xf32, #tpu.memory_space<vmem>>, %arg9: memref<1x4xf32, #tpu.memory_space<vmem>>, %arg10: memref<4x8xf32, #tpu.memory_space<vmem>>, %arg11: memref<4x8xf32, #tpu.memory_space<vmem>>, %arg12: memref<1x8xf32, #tpu.memory_space<vmem>>, %arg13: memref<1x16x16x8xf32, #tpu.memory_space<vmem>>) attributes {dimension_semantics = [#tpu.dimension_semantics<parallel>], iteration_bounds = array<i64: 2>, scalar_prefetch = 0 : i64, scratch_operands = 0 : i64, tpu.core_type = #tpu.core_type<tc>, window_params = [{transform_indices = @transform_0, window_bounds = array<i64: 1, 16, 16, 4>}, {pipeline_mode = #tpu.pipeline_mode<synchronous>, transform_indices = @transform_1, window_bounds = array<i64: 4, 4>}, {pipeline_mode = #tpu.pipeline_mode<synchronous>, transform_indices = @transform_2, window_bounds = array<i64: 1, 4>}, {pipeline_mode = #tpu.pipeline_mode<synchronous>, transform_indices = @transform_3, window_bounds = array<i64: 4, 4>}, {pipeline_mode = #tpu.pipeline_mode<synchronous>, transform_indices = @transform_4, window_bounds = array<i64: 1, 4>}, {pipeline_mode = #tpu.pipeline_mode<synchronous>, transform_indices = @transform_5, window_bounds = array<i64: 4, 4>}, {pipeline_mode = #tpu.pipeline_mode<synchronous>, transform_indices = @transform_6, window_bounds = array<i64: 1, 4>}, {pipeline_mode = #tpu.pipeline_mode<synchronous>, transform_indices = @transform_7, window_bounds = array<i64: 9, 4, 4>}, {pipeline_mode = #tpu.pipeline_mode<synchronous>, transform_indices = @transform_8, window_bounds = array<i64: 1, 4>}, {pipeline_mode = #tpu.pipeline_mode<synchronous>, transform_indices = @transform_9, window_bounds = array<i64: 4, 8>}, {pipeline_mode = #tpu.pipeline_mode<synchronous>, transform_indices = @transform_10, window_bounds = array<i64: 4, 8>}, {pipeline_mode = #tpu.pipeline_mode<synchronous>, transform_indices = @transform_11, window_bounds = array<i64: 1, 8>}, {transform_indices = @transform_12, window_bounds = array<i64: 1, 16, 16, 8>}]} {
    %c0 = arith.constant 0 : index
    %c0_0 = arith.constant 0 : index
    %c0_1 = arith.constant 0 : index
    %c0_2 = arith.constant 0 : index
    %0 = vector.load %arg1[%c0, %c0_0, %c0_1, %c0_2] : memref<1x16x16x4xf32, #tpu.memory_space<vmem>>, vector<1x16x16x4xf32>
    %1 = vector.shape_cast %0 : vector<1x16x16x4xf32> to vector<16x16x4xf32>
    %2 = vector.shape_cast %1 : vector<16x16x4xf32> to vector<256x4xf32>
    %c0_3 = arith.constant 0 : index
    %c0_4 = arith.constant 0 : index
    %3 = vector.load %arg2[%c0_3, %c0_4] : memref<4x4xf32, #tpu.memory_space<vmem>>, vector<4x4xf32>
    %4 = arith.truncf %2 : vector<256x4xf32> to vector<256x4xbf16>
    %5 = arith.truncf %3 : vector<4x4xf32> to vector<4x4xbf16>
    %cst = arith.constant dense<0.000000e+00> : vector<256x4xf32>
    %6 = tpu.matmul %4, %5, %cst {dimension_numbers = #tpu.dot_dimension_numbers<[1], [0], [0], [1], [0, 0, 1, 1], [], []>} : vector<256x4xbf16>, vector<4x4xbf16>, vector<256x4xf32> -> vector<256x4xf32>
    %c0_5 = arith.constant 0 : index
    %c0_6 = arith.constant 0 : index
    %7 = vector.load %arg3[%c0_5, %c0_6] : memref<1x4xf32, #tpu.memory_space<vmem>>, vector<1x4xf32>
    %8 = vector.broadcast %7 : vector<1x4xf32> to vector<256x4xf32>
    %9 = arith.addf %6, %8 : vector<256x4xf32>
    %cst_7 = arith.constant 0.000000e+00 : f32
    %10 = vector.broadcast %cst_7 : f32 to vector<256x4xf32>
    %11 = arith.subf %10, %9 : vector<256x4xf32>
    %12 = math.exp %11 : vector<256x4xf32>
    %cst_8 = arith.constant 1.000000e+00 : f32
    %13 = vector.broadcast %cst_8 : f32 to vector<256x4xf32>
    %14 = arith.addf %13, %12 : vector<256x4xf32>
    %cst_9 = arith.constant 1.000000e+00 : f32
    %15 = vector.broadcast %cst_9 : f32 to vector<256x4xf32>
    %16 = arith.divf %15, %14 : vector<256x4xf32>
    %17 = arith.mulf %9, %16 : vector<256x4xf32>
    %c0_10 = arith.constant 0 : index
    %c0_11 = arith.constant 0 : index
    %18 = vector.load %arg4[%c0_10, %c0_11] : memref<4x4xf32, #tpu.memory_space<vmem>>, vector<4x4xf32>
    %19 = arith.truncf %2 : vector<256x4xf32> to vector<256x4xbf16>
    %20 = arith.truncf %18 : vector<4x4xf32> to vector<4x4xbf16>
    %cst_12 = arith.constant dense<0.000000e+00> : vector<256x4xf32>
    %21 = tpu.matmul %19, %20, %cst_12 {dimension_numbers = #tpu.dot_dimension_numbers<[1], [0], [0], [1], [0, 0, 1, 1], [], []>} : vector<256x4xbf16>, vector<4x4xbf16>, vector<256x4xf32> -> vector<256x4xf32>
    %c0_13 = arith.constant 0 : index
    %c0_14 = arith.constant 0 : index
    %22 = vector.load %arg5[%c0_13, %c0_14] : memref<1x4xf32, #tpu.memory_space<vmem>>, vector<1x4xf32>
    %23 = vector.broadcast %22 : vector<1x4xf32> to vector<256x4xf32>
    %24 = arith.addf %21, %23 : vector<256x4xf32>
    %cst_15 = arith.constant 0.000000e+00 : f32
    %25 = vector.broadcast %cst_15 : f32 to vector<256x4xf32>
    %26 = arith.subf %25, %24 : vector<256x4xf32>
    %27 = math.exp %26 : vector<256x4xf32>
    %cst_16 = arith.constant 1.000000e+00 : f32
    %28 = vector.broadcast %cst_16 : f32 to vector<256x4xf32>
    %29 = arith.addf %28, %27 : vector<256x4xf32>
    %cst_17 = arith.constant 1.000000e+00 : f32
    %30 = vector.broadcast %cst_17 : f32 to vector<256x4xf32>
    %31 = arith.divf %30, %29 : vector<256x4xf32>
    %32 = arith.mulf %24, %31 : vector<256x4xf32>
    %c0_18 = arith.constant 0 : index
    %c0_19 = arith.constant 0 : index
    %33 = vector.load %arg6[%c0_18, %c0_19] : memref<4x4xf32, #tpu.memory_space<vmem>>, vector<4x4xf32>
    %34 = arith.truncf %17 : vector<256x4xf32> to vector<256x4xbf16>
    %35 = arith.truncf %33 : vector<4x4xf32> to vector<4x4xbf16>
    %cst_20 = arith.constant dense<0.000000e+00> : vector<256x4xf32>
    %36 = tpu.matmul %34, %35, %cst_20 {dimension_numbers = #tpu.dot_dimension_numbers<[1], [0], [0], [1], [0, 0, 1, 1], [], []>} : vector<256x4xbf16>, vector<4x4xbf16>, vector<256x4xf32> -> vector<256x4xf32>
    %c0_21 = arith.constant 0 : index
    %c0_22 = arith.constant 0 : index
    %37 = vector.load %arg7[%c0_21, %c0_22] : memref<1x4xf32, #tpu.memory_space<vmem>>, vector<1x4xf32>
    %38 = vector.broadcast %37 : vector<1x4xf32> to vector<256x4xf32>
    %39 = arith.addf %36, %38 : vector<256x4xf32>
    %cst_23 = arith.constant 0.000000e+00 : f32
    %40 = vector.broadcast %cst_23 : f32 to vector<256x4xf32>
    %41 = arith.subf %40, %39 : vector<256x4xf32>
    %42 = math.exp %41 : vector<256x4xf32>
    %cst_24 = arith.constant 1.000000e+00 : f32
    %43 = vector.broadcast %cst_24 : f32 to vector<256x4xf32>
    %44 = arith.addf %43, %42 : vector<256x4xf32>
    %cst_25 = arith.constant 1.000000e+00 : f32
    %45 = vector.broadcast %cst_25 : f32 to vector<256x4xf32>
    %46 = arith.divf %45, %44 : vector<256x4xf32>
    %47 = arith.mulf %39, %46 : vector<256x4xf32>
    %48 = vector.shape_cast %47 : vector<256x4xf32> to vector<16x16x4xf32>
    %cst_26 = arith.constant 0.000000e+00 : f32
    %49 = vector.broadcast %cst_26 : f32 to vector<1x16x4xf32>
    %50 = tpu.concatenate %49, %48, %49 in 0 : vector<1x16x4xf32>, vector<16x16x4xf32>, vector<1x16x4xf32> -> vector<18x16x4xf32>
    %cst_27 = arith.constant 0.000000e+00 : f32
    %51 = vector.broadcast %cst_27 : f32 to vector<18x1x4xf32>
    %52 = tpu.concatenate %51, %50, %51 in 1 : vector<18x1x4xf32>, vector<18x16x4xf32>, vector<18x1x4xf32> -> vector<18x18x4xf32>
    %cst_28 = arith.constant 0.000000e+00 : f32
    %53 = vector.broadcast %cst_28 : f32 to vector<256x4xf32>
    %c0_29 = arith.constant 0 : index
    %c0_30 = arith.constant 0 : index
    %54 = vector.load %arg9[%c0_29, %c0_30] : memref<1x4xf32, #tpu.memory_space<vmem>>, vector<1x4xf32>
    %55 = vector.broadcast %54 : vector<1x4xf32> to vector<256x4xf32>
    %56 = arith.addf %53, %55 : vector<256x4xf32>
    %57 = vector.extract_strided_slice %52 {offsets = [0, 0, 0], sizes = [16, 16, 4], strides = [1, 1, 1]} : vector<18x18x4xf32> to vector<16x16x4xf32>
    %58 = vector.shape_cast %57 : vector<16x16x4xf32> to vector<256x4xf32>
    %c0_31 = arith.constant 0 : index
    %c0_32 = arith.constant 0 : index
    %c0_33 = arith.constant 0 : index
    %59 = vector.load %arg8[%c0_31, %c0_32, %c0_33] : memref<9x4x4xf32, #tpu.memory_space<vmem>>, vector<1x4x4xf32>
    %60 = vector.shape_cast %59 : vector<1x4x4xf32> to vector<4x4xf32>
    %61 = arith.truncf %58 : vector<256x4xf32> to vector<256x4xbf16>
    %62 = arith.truncf %60 : vector<4x4xf32> to vector<4x4xbf16>
    %cst_34 = arith.constant dense<0.000000e+00> : vector<256x4xf32>
    %63 = tpu.matmul %61, %62, %cst_34 {dimension_numbers = #tpu.dot_dimension_numbers<[1], [0], [0], [1], [0, 0, 1, 1], [], []>} : vector<256x4xbf16>, vector<4x4xbf16>, vector<256x4xf32> -> vector<256x4xf32>
    %64 = arith.addf %56, %63 : vector<256x4xf32>
    %65 = vector.extract_strided_slice %52 {offsets = [0, 1, 0], sizes = [16, 16, 4], strides = [1, 1, 1]} : vector<18x18x4xf32> to vector<16x16x4xf32>
    %66 = vector.shape_cast %65 : vector<16x16x4xf32> to vector<256x4xf32>
    %c1 = arith.constant 1 : index
    %c0_35 = arith.constant 0 : index
    %c0_36 = arith.constant 0 : index
    %67 = vector.load %arg8[%c1, %c0_35, %c0_36] : memref<9x4x4xf32, #tpu.memory_space<vmem>>, vector<1x4x4xf32>
    %68 = vector.shape_cast %67 : vector<1x4x4xf32> to vector<4x4xf32>
    %69 = arith.truncf %66 : vector<256x4xf32> to vector<256x4xbf16>
    %70 = arith.truncf %68 : vector<4x4xf32> to vector<4x4xbf16>
    %cst_37 = arith.constant dense<0.000000e+00> : vector<256x4xf32>
    %71 = tpu.matmul %69, %70, %cst_37 {dimension_numbers = #tpu.dot_dimension_numbers<[1], [0], [0], [1], [0, 0, 1, 1], [], []>} : vector<256x4xbf16>, vector<4x4xbf16>, vector<256x4xf32> -> vector<256x4xf32>
    %72 = arith.addf %64, %71 : vector<256x4xf32>
    %73 = vector.extract_strided_slice %52 {offsets = [0, 2, 0], sizes = [16, 16, 4], strides = [1, 1, 1]} : vector<18x18x4xf32> to vector<16x16x4xf32>
    %74 = vector.shape_cast %73 : vector<16x16x4xf32> to vector<256x4xf32>
    %c2 = arith.constant 2 : index
    %c0_38 = arith.constant 0 : index
    %c0_39 = arith.constant 0 : index
    %75 = vector.load %arg8[%c2, %c0_38, %c0_39] : memref<9x4x4xf32, #tpu.memory_space<vmem>>, vector<1x4x4xf32>
    %76 = vector.shape_cast %75 : vector<1x4x4xf32> to vector<4x4xf32>
    %77 = arith.truncf %74 : vector<256x4xf32> to vector<256x4xbf16>
    %78 = arith.truncf %76 : vector<4x4xf32> to vector<4x4xbf16>
    %cst_40 = arith.constant dense<0.000000e+00> : vector<256x4xf32>
    %79 = tpu.matmul %77, %78, %cst_40 {dimension_numbers = #tpu.dot_dimension_numbers<[1], [0], [0], [1], [0, 0, 1, 1], [], []>} : vector<256x4xbf16>, vector<4x4xbf16>, vector<256x4xf32> -> vector<256x4xf32>
    %80 = arith.addf %72, %79 : vector<256x4xf32>
    %81 = vector.extract_strided_slice %52 {offsets = [1, 0, 0], sizes = [16, 16, 4], strides = [1, 1, 1]} : vector<18x18x4xf32> to vector<16x16x4xf32>
    %82 = vector.shape_cast %81 : vector<16x16x4xf32> to vector<256x4xf32>
    %c3 = arith.constant 3 : index
    %c0_41 = arith.constant 0 : index
    %c0_42 = arith.constant 0 : index
    %83 = vector.load %arg8[%c3, %c0_41, %c0_42] : memref<9x4x4xf32, #tpu.memory_space<vmem>>, vector<1x4x4xf32>
    %84 = vector.shape_cast %83 : vector<1x4x4xf32> to vector<4x4xf32>
    %85 = arith.truncf %82 : vector<256x4xf32> to vector<256x4xbf16>
    %86 = arith.truncf %84 : vector<4x4xf32> to vector<4x4xbf16>
    %cst_43 = arith.constant dense<0.000000e+00> : vector<256x4xf32>
    %87 = tpu.matmul %85, %86, %cst_43 {dimension_numbers = #tpu.dot_dimension_numbers<[1], [0], [0], [1], [0, 0, 1, 1], [], []>} : vector<256x4xbf16>, vector<4x4xbf16>, vector<256x4xf32> -> vector<256x4xf32>
    %88 = arith.addf %80, %87 : vector<256x4xf32>
    %89 = vector.extract_strided_slice %52 {offsets = [1, 1, 0], sizes = [16, 16, 4], strides = [1, 1, 1]} : vector<18x18x4xf32> to vector<16x16x4xf32>
    %90 = vector.shape_cast %89 : vector<16x16x4xf32> to vector<256x4xf32>
    %c4 = arith.constant 4 : index
    %c0_44 = arith.constant 0 : index
    %c0_45 = arith.constant 0 : index
    %91 = vector.load %arg8[%c4, %c0_44, %c0_45] : memref<9x4x4xf32, #tpu.memory_space<vmem>>, vector<1x4x4xf32>
    %92 = vector.shape_cast %91 : vector<1x4x4xf32> to vector<4x4xf32>
    %93 = arith.truncf %90 : vector<256x4xf32> to vector<256x4xbf16>
    %94 = arith.truncf %92 : vector<4x4xf32> to vector<4x4xbf16>
    %cst_46 = arith.constant dense<0.000000e+00> : vector<256x4xf32>
    %95 = tpu.matmul %93, %94, %cst_46 {dimension_numbers = #tpu.dot_dimension_numbers<[1], [0], [0], [1], [0, 0, 1, 1], [], []>} : vector<256x4xbf16>, vector<4x4xbf16>, vector<256x4xf32> -> vector<256x4xf32>
    %96 = arith.addf %88, %95 : vector<256x4xf32>
    %97 = vector.extract_strided_slice %52 {offsets = [1, 2, 0], sizes = [16, 16, 4], strides = [1, 1, 1]} : vector<18x18x4xf32> to vector<16x16x4xf32>
    %98 = vector.shape_cast %97 : vector<16x16x4xf32> to vector<256x4xf32>
    %c5 = arith.constant 5 : index
    %c0_47 = arith.constant 0 : index
    %c0_48 = arith.constant 0 : index
    %99 = vector.load %arg8[%c5, %c0_47, %c0_48] : memref<9x4x4xf32, #tpu.memory_space<vmem>>, vector<1x4x4xf32>
    %100 = vector.shape_cast %99 : vector<1x4x4xf32> to vector<4x4xf32>
    %101 = arith.truncf %98 : vector<256x4xf32> to vector<256x4xbf16>
    %102 = arith.truncf %100 : vector<4x4xf32> to vector<4x4xbf16>
    %cst_49 = arith.constant dense<0.000000e+00> : vector<256x4xf32>
    %103 = tpu.matmul %101, %102, %cst_49 {dimension_numbers = #tpu.dot_dimension_numbers<[1], [0], [0], [1], [0, 0, 1, 1], [], []>} : vector<256x4xbf16>, vector<4x4xbf16>, vector<256x4xf32> -> vector<256x4xf32>
    %104 = arith.addf %96, %103 : vector<256x4xf32>
    %105 = vector.extract_strided_slice %52 {offsets = [2, 0, 0], sizes = [16, 16, 4], strides = [1, 1, 1]} : vector<18x18x4xf32> to vector<16x16x4xf32>
    %106 = vector.shape_cast %105 : vector<16x16x4xf32> to vector<256x4xf32>
    %c6 = arith.constant 6 : index
    %c0_50 = arith.constant 0 : index
    %c0_51 = arith.constant 0 : index
    %107 = vector.load %arg8[%c6, %c0_50, %c0_51] : memref<9x4x4xf32, #tpu.memory_space<vmem>>, vector<1x4x4xf32>
    %108 = vector.shape_cast %107 : vector<1x4x4xf32> to vector<4x4xf32>
    %109 = arith.truncf %106 : vector<256x4xf32> to vector<256x4xbf16>
    %110 = arith.truncf %108 : vector<4x4xf32> to vector<4x4xbf16>
    %cst_52 = arith.constant dense<0.000000e+00> : vector<256x4xf32>
    %111 = tpu.matmul %109, %110, %cst_52 {dimension_numbers = #tpu.dot_dimension_numbers<[1], [0], [0], [1], [0, 0, 1, 1], [], []>} : vector<256x4xbf16>, vector<4x4xbf16>, vector<256x4xf32> -> vector<256x4xf32>
    %112 = arith.addf %104, %111 : vector<256x4xf32>
    %113 = vector.extract_strided_slice %52 {offsets = [2, 1, 0], sizes = [16, 16, 4], strides = [1, 1, 1]} : vector<18x18x4xf32> to vector<16x16x4xf32>
    %114 = vector.shape_cast %113 : vector<16x16x4xf32> to vector<256x4xf32>
    %c7 = arith.constant 7 : index
    %c0_53 = arith.constant 0 : index
    %c0_54 = arith.constant 0 : index
    %115 = vector.load %arg8[%c7, %c0_53, %c0_54] : memref<9x4x4xf32, #tpu.memory_space<vmem>>, vector<1x4x4xf32>
    %116 = vector.shape_cast %115 : vector<1x4x4xf32> to vector<4x4xf32>
    %117 = arith.truncf %114 : vector<256x4xf32> to vector<256x4xbf16>
    %118 = arith.truncf %116 : vector<4x4xf32> to vector<4x4xbf16>
    %cst_55 = arith.constant dense<0.000000e+00> : vector<256x4xf32>
    %119 = tpu.matmul %117, %118, %cst_55 {dimension_numbers = #tpu.dot_dimension_numbers<[1], [0], [0], [1], [0, 0, 1, 1], [], []>} : vector<256x4xbf16>, vector<4x4xbf16>, vector<256x4xf32> -> vector<256x4xf32>
    %120 = arith.addf %112, %119 : vector<256x4xf32>
    %121 = vector.extract_strided_slice %52 {offsets = [2, 2, 0], sizes = [16, 16, 4], strides = [1, 1, 1]} : vector<18x18x4xf32> to vector<16x16x4xf32>
    %122 = vector.shape_cast %121 : vector<16x16x4xf32> to vector<256x4xf32>
    %c8 = arith.constant 8 : index
    %c0_56 = arith.constant 0 : index
    %c0_57 = arith.constant 0 : index
    %123 = vector.load %arg8[%c8, %c0_56, %c0_57] : memref<9x4x4xf32, #tpu.memory_space<vmem>>, vector<1x4x4xf32>
    %124 = vector.shape_cast %123 : vector<1x4x4xf32> to vector<4x4xf32>
    %125 = arith.truncf %122 : vector<256x4xf32> to vector<256x4xbf16>
    %126 = arith.truncf %124 : vector<4x4xf32> to vector<4x4xbf16>
    %cst_58 = arith.constant dense<0.000000e+00> : vector<256x4xf32>
    %127 = tpu.matmul %125, %126, %cst_58 {dimension_numbers = #tpu.dot_dimension_numbers<[1], [0], [0], [1], [0, 0, 1, 1], [], []>} : vector<256x4xbf16>, vector<4x4xbf16>, vector<256x4xf32> -> vector<256x4xf32>
    %128 = arith.addf %120, %127 : vector<256x4xf32>
    %cst_59 = arith.constant 0.000000e+00 : f32
    %129 = vector.broadcast %cst_59 : f32 to vector<256x4xf32>
    %130 = arith.subf %129, %128 : vector<256x4xf32>
    %131 = math.exp %130 : vector<256x4xf32>
    %cst_60 = arith.constant 1.000000e+00 : f32
    %132 = vector.broadcast %cst_60 : f32 to vector<256x4xf32>
    %133 = arith.addf %132, %131 : vector<256x4xf32>
    %cst_61 = arith.constant 1.000000e+00 : f32
    %134 = vector.broadcast %cst_61 : f32 to vector<256x4xf32>
    %135 = arith.divf %134, %133 : vector<256x4xf32>
    %136 = arith.mulf %128, %135 : vector<256x4xf32>
    %137 = arith.addf %17, %136 : vector<256x4xf32>
    %c0_62 = arith.constant 0 : index
    %c0_63 = arith.constant 0 : index
    %138 = vector.load %arg10[%c0_62, %c0_63] : memref<4x8xf32, #tpu.memory_space<vmem>>, vector<4x8xf32>
    %139 = arith.truncf %137 : vector<256x4xf32> to vector<256x4xbf16>
    %140 = arith.truncf %138 : vector<4x8xf32> to vector<4x8xbf16>
    %cst_64 = arith.constant dense<0.000000e+00> : vector<256x8xf32>
    %141 = tpu.matmul %139, %140, %cst_64 {dimension_numbers = #tpu.dot_dimension_numbers<[1], [0], [0], [1], [0, 0, 1, 1], [], []>} : vector<256x4xbf16>, vector<4x8xbf16>, vector<256x8xf32> -> vector<256x8xf32>
    %c0_65 = arith.constant 0 : index
    %c0_66 = arith.constant 0 : index
    %142 = vector.load %arg11[%c0_65, %c0_66] : memref<4x8xf32, #tpu.memory_space<vmem>>, vector<4x8xf32>
    %143 = arith.truncf %32 : vector<256x4xf32> to vector<256x4xbf16>
    %144 = arith.truncf %142 : vector<4x8xf32> to vector<4x8xbf16>
    %cst_67 = arith.constant dense<0.000000e+00> : vector<256x8xf32>
    %145 = tpu.matmul %143, %144, %cst_67 {dimension_numbers = #tpu.dot_dimension_numbers<[1], [0], [0], [1], [0, 0, 1, 1], [], []>} : vector<256x4xbf16>, vector<4x8xbf16>, vector<256x8xf32> -> vector<256x8xf32>
    %146 = arith.addf %141, %145 : vector<256x8xf32>
    %c0_68 = arith.constant 0 : index
    %c0_69 = arith.constant 0 : index
    %147 = vector.load %arg12[%c0_68, %c0_69] : memref<1x8xf32, #tpu.memory_space<vmem>>, vector<1x8xf32>
    %148 = vector.broadcast %147 : vector<1x8xf32> to vector<256x8xf32>
    %149 = arith.addf %146, %148 : vector<256x8xf32>
    %cst_70 = arith.constant 0.000000e+00 : f32
    %150 = vector.broadcast %cst_70 : f32 to vector<256x8xf32>
    %151 = arith.subf %150, %149 : vector<256x8xf32>
    %152 = math.exp %151 : vector<256x8xf32>
    %cst_71 = arith.constant 1.000000e+00 : f32
    %153 = vector.broadcast %cst_71 : f32 to vector<256x8xf32>
    %154 = arith.addf %153, %152 : vector<256x8xf32>
    %cst_72 = arith.constant 1.000000e+00 : f32
    %155 = vector.broadcast %cst_72 : f32 to vector<256x8xf32>
    %156 = arith.divf %155, %154 : vector<256x8xf32>
    %157 = arith.mulf %149, %156 : vector<256x8xf32>
    %158 = vector.shape_cast %157 : vector<256x8xf32> to vector<16x16x8xf32>
    %c0_73 = arith.constant 0 : index
    %c0_74 = arith.constant 0 : index
    %c0_75 = arith.constant 0 : index
    %c0_76 = arith.constant 0 : index
    %159 = vector.load %arg13[%c0_73, %c0_74, %c0_75, %c0_76] : memref<1x16x16x8xf32, #tpu.memory_space<vmem>>, vector<1x16x16x8xf32>
    %160 = vector.shape_cast %159 : vector<1x16x16x8xf32> to vector<16x16x8xf32>
    %161 = vector.shape_cast %158 : vector<16x16x8xf32> to vector<1x16x16x8xf32>
    tpu.vector_store %arg13[%c0_73, %c0_74, %c0_75, %c0_76], %161 {strides = array<i32>} : memref<1x16x16x8xf32, #tpu.memory_space<vmem>>, vector<1x16x16x8xf32>,
    return
  }
  func.func @transform_0(%arg0: i32) -> (i32, i32, i32, i32) {
    %c0_i32 = arith.constant 0 : i32
    %c0_i32_0 = arith.constant 0 : i32
    %c0_i32_1 = arith.constant 0 : i32
    %c0_i32_2 = arith.constant 0 : i32
    return %arg0, %c0_i32, %c0_i32_0, %c0_i32_1 : i32, i32, i32, i32
  }
  func.func @transform_1(%arg0: i32) -> (i32, i32) {
    %c0_i32 = arith.constant 0 : i32
    %c0_i32_0 = arith.constant 0 : i32
    %c0_i32_1 = arith.constant 0 : i32
    return %c0_i32, %c0_i32_0 : i32, i32
  }
  func.func @transform_2(%arg0: i32) -> (i32, i32) {
    %c0_i32 = arith.constant 0 : i32
    %c0_i32_0 = arith.constant 0 : i32
    %c0_i32_1 = arith.constant 0 : i32
    return %c0_i32, %c0_i32_0 : i32, i32
  }
  func.func @transform_3(%arg0: i32) -> (i32, i32) {
    %c0_i32 = arith.constant 0 : i32
    %c0_i32_0 = arith.constant 0 : i32
    %c0_i32_1 = arith.constant 0 : i32
    return %c0_i32, %c0_i32_0 : i32, i32
  }
  func.func @transform_4(%arg0: i32) -> (i32, i32) {
    %c0_i32 = arith.constant 0 : i32
    %c0_i32_0 = arith.constant 0 : i32
    %c0_i32_1 = arith.constant 0 : i32
    return %c0_i32, %c0_i32_0 : i32, i32
  }
  func.func @transform_5(%arg0: i32) -> (i32, i32) {
    %c0_i32 = arith.constant 0 : i32
    %c0_i32_0 = arith.constant 0 : i32
    %c0_i32_1 = arith.constant 0 : i32
    return %c0_i32, %c0_i32_0 : i32, i32
  }
  func.func @transform_6(%arg0: i32) -> (i32, i32) {
    %c0_i32 = arith.constant 0 : i32
    %c0_i32_0 = arith.constant 0 : i32
    %c0_i32_1 = arith.constant 0 : i32
    return %c0_i32, %c0_i32_0 : i32, i32
  }
  func.func @transform_7(%arg0: i32) -> (i32, i32, i32) {
    %c0_i32 = arith.constant 0 : i32
    %c0_i32_0 = arith.constant 0 : i32
    %c0_i32_1 = arith.constant 0 : i32
    %c0_i32_2 = arith.constant 0 : i32
    return %c0_i32, %c0_i32_0, %c0_i32_1 : i32, i32, i32
  }
  func.func @transform_8(%arg0: i32) -> (i32, i32) {
    %c0_i32 = arith.constant 0 : i32
    %c0_i32_0 = arith.constant 0 : i32
    %c0_i32_1 = arith.constant 0 : i32
    return %c0_i32, %c0_i32_0 : i32, i32
  }
  func.func @transform_9(%arg0: i32) -> (i32, i32) {
    %c0_i32 = arith.constant 0 : i32
    %c0_i32_0 = arith.constant 0 : i32
    %c0_i32_1 = arith.constant 0 : i32
    return %c0_i32, %c0_i32_0 : i32, i32
  }
  func.func @transform_10(%arg0: i32) -> (i32, i32) {
    %c0_i32 = arith.constant 0 : i32
    %c0_i32_0 = arith.constant 0 : i32
    %c0_i32_1 = arith.constant 0 : i32
    return %c0_i32, %c0_i32_0 : i32, i32
  }
  func.func @transform_11(%arg0: i32) -> (i32, i32) {
    %c0_i32 = arith.constant 0 : i32
    %c0_i32_0 = arith.constant 0 : i32
    %c0_i32_1 = arith.constant 0 : i32
    return %c0_i32, %c0_i32_0 : i32, i32
  }
  func.func @transform_12(%arg0: i32) -> (i32, i32, i32, i32) {
    %c0_i32 = arith.constant 0 : i32
    %c0_i32_0 = arith.constant 0 : i32
    %c0_i32_1 = arith.constant 0 : i32
    %c0_i32_2 = arith.constant 0 : i32
    return %arg0, %c0_i32, %c0_i32_0, %c0_i32_1 : i32, i32, i32, i32
  }
}

</mosaic_0001>

<llo_original>
// kernel: tpu_custom_call.1
$region0: #{tpu_custom_call.1}
  #allocation0 [shape = 'u32[]', space=smem, size = 0x4, offset = 0x4, fixed_abs, tag = 'smem constant byte address 0x4 - core index']
  #allocation1 [shape = 'u32[144,128]{1,0:T(1,128)}', space=vmem, size = 0x12000, scoped, tag = 'internal scratch']
  %s0 = inlined_call_operand.vmem [shape: f32[2,16,16,4], index: 0, kind: input, shape index: {}]
  %s1 = inlined_call_operand.vmem [shape: f32[4,4], index: 1, kind: input, shape index: {}]
  %s2 = inlined_call_operand.vmem [shape: f32[1,4], index: 2, kind: input, shape index: {}]
  %s3 = inlined_call_operand.vmem [shape: f32[4,4], index: 3, kind: input, shape index: {}]
  %s4 = inlined_call_operand.vmem [shape: f32[1,4], index: 4, kind: input, shape index: {}]
  %s5 = inlined_call_operand.vmem [shape: f32[4,4], index: 5, kind: input, shape index: {}]
  %s6 = inlined_call_operand.vmem [shape: f32[1,4], index: 6, kind: input, shape index: {}]
  %s7 = inlined_call_operand.vmem [shape: f32[9,4,4], index: 7, kind: input, shape index: {}]
  %s8 = inlined_call_operand.vmem [shape: f32[1,4], index: 8, kind: input, shape index: {}]
  %s9 = inlined_call_operand.vmem [shape: f32[4,8], index: 9, kind: input, shape index: {}]
  %s10 = inlined_call_operand.vmem [shape: f32[4,8], index: 10, kind: input, shape index: {}]
  %s11 = inlined_call_operand.vmem [shape: f32[1,8], index: 11, kind: input, shape index: {}]
  %s12 = inlined_call_operand.vmem [shape: f32[2,16,16,8], index: 12, kind: output, shape index: {}]
  %s13 = sld [smem:[#allocation0]]
  $region81: #{tpu_custom_call.1} parent=0
    _
  %s15 = ssub.s32 1, %s13
  %s16 = scalar_select 0, %s15, %s13
  loop: start=0, step=1, limit=4
  $region2: #{tpu_custom_call.1} parent=0 // loop_pre_header
    _
  $region3: #{tpu_custom_call.1} parent=0 // loop_header
    %s18 = sphi 0, %s22
    %p19 = scmp.ge.s32.totalorder %s18, 4
    %s28 = sphi 0, %s30
    %s31 = sphi 0, %s28
    %s32 = sphi 0, %s31
    %s48 = sphi 0, %s32
    %s52 = sphi 0, %s52
    %s54 = sphi 0, %s52
    %s55 = sphi 0, %s54
    %s69 = sphi 0, %s55
    %s73 = sphi 0, %s73
    %s75 = sphi 0, %s73
    %s76 = sphi 0, %s75
    %s90 = sphi 0, %s76
    %s94 = sphi 0, %s94
    %s96 = sphi 0, %s94
    %s97 = sphi 0, %s96
    %s111 = sphi 0, %s97
    %s115 = sphi 0, %s115
    %s117 = sphi 0, %s115
    %s118 = sphi 0, %s117
    %s132 = sphi 0, %s118
    %s136 = sphi 0, %s136
    %s138 = sphi 0, %s136
    %s139 = sphi 0, %s138
    %s153 = sphi 0, %s139
    %s157 = sphi 0, %s157
    %s159 = sphi 0, %s157
    %s160 = sphi 0, %s159
    %s174 = sphi 0, %s160
    %s178 = sphi 0, %s178
    %s180 = sphi 0, %s178
    %s181 = sphi 0, %s180
    %s195 = sphi 0, %s181
    %s199 = sphi 0, %s199
    %s201 = sphi 0, %s199
    %s202 = sphi 0, %s201
    %s216 = sphi 0, %s202
    %s220 = sphi 0, %s220
    %s222 = sphi 0, %s220
    %s223 = sphi 0, %s222
    %s237 = sphi 0, %s223
    %s241 = sphi 0, %s241
    %s243 = sphi 0, %s241
    %s244 = sphi 0, %s243
    %s258 = sphi 0, %s244
    %s262 = sphi 0, %s262
    %s264 = sphi 0, %s262
    %s265 = sphi 0, %s264
    %s279 = sphi 0, %s265
    %s285 = sphi 0, %s287
    %s288 = sphi 0, %s285
    %s289 = sphi 0, %s288
    %s305 = sphi 0, %s289
  $region4: #{tpu_custom_call.1} parent=0 // loop_header_branch
    %21 = sbr.rel (%p19) target = $region8
  $region5: #{tpu_custom_call.1} parent=0 // loop_body
    %s23 = ssub.s32 %s18, 1
    %s24 = ssub.s32 %s18, 2
    %s25 = sadd.s32 %s18, 1
    %s26 = ssub.s32 %s18, %s25
    %p27 = scmp.eq.s32.totalorder %s26, 0
    %s29 = sadd.s32 %s28, 1
    %s30 = scalar_select %p27, %s28, %s29
    %p33 = pneg %p27
    %p34 = scmp.eq.s32.totalorder %s18, 1
    %p35 = por %p33, %p34
    %p36 = scmp.ne.s32.totalorder %s28, %s31
    %p37 = scmp.eq.s32.totalorder %s18, 0
    %p38 = por %p36, %p37
    %p39 = scmp.ne.s32.totalorder %s28, %s31
    %p40 = scmp.eq.s32.totalorder %s23, 1
    %p41 = por %p39, %p40
    %p42 = scmp.ne.s32.totalorder %s31, %s32
    %p43 = scmp.eq.s32.totalorder %s23, 0
    %p44 = por %p42, %p43
    %p45 = scmp.ne.s32.totalorder %s31, %s32
    %p46 = scmp.eq.s32.totalorder %s24, 1
    %p47 = por %p45, %p46
    %p49 = scmp.ne.s32.totalorder %s32, %s48
    %p50 = scmp.eq.s32.totalorder %s24, 0
    %p51 = por %p49, %p50
    %s53 = sadd.s32 %s52, 1
    %p56 = scmp.eq.s32.totalorder %s18, 1
    %p57 = scmp.ne.s32.totalorder %s52, %s54
    %p58 = scmp.eq.s32.totalorder %s18, 0
    %p59 = por %p57, %p58
    %p60 = scmp.ne.s32.totalorder %s52, %s54
    %p61 = scmp.eq.s32.totalorder %s23, 1
    %p62 = por %p60, %p61
    %p63 = scmp.ne.s32.totalorder %s54, %s55
    %p64 = scmp.eq.s32.totalorder %s23, 0
    %p65 = por %p63, %p64
    %p66 = scmp.ne.s32.totalorder %s54, %s55
    %p67 = scmp.eq.s32.totalorder %s24, 1
    %p68 = por %p66, %p67
    %p70 = scmp.ne.s32.totalorder %s55, %s69
    %p71 = scmp.eq.s32.totalorder %s24, 0
    %p72 = por %p70, %p71
    %s74 = sadd.s32 %s73, 1
    %p77 = scmp.eq.s32.totalorder %s18, 1
    %p78 = scmp.ne.s32.totalorder %s73, %s75
    %p79 = scmp.eq.s32.totalorder %s18, 0
    %p80 = por %p78, %p79
    %p81 = scmp.ne.s32.totalorder %s73, %s75
    %p82 = scmp.eq.s32.totalorder %s23, 1
    %p83 = por %p81, %p82
    %p84 = scmp.ne.s32.totalorder %s75, %s76
    %p85 = scmp.eq.s32.totalorder %s23, 0
    %p86 = por %p84, %p85
    %p87 = scmp.ne.s32.totalorder %s75, %s76
    %p88 = scmp.eq.s32.totalorder %s24, 1
    %p89 = por %p87, %p88
    %p91 = scmp.ne.s32.totalorder %s76, %s90
    %p92 = scmp.eq.s32.totalorder %s24, 0
    %p93 = por %p91, %p92
    %s95 = sadd.s32 %s94, 1
    %p98 = scmp.eq.s32.totalorder %s18, 1
    %p99 = scmp.ne.s32.totalorder %s94, %s96
    %p100 = scmp.eq.s32.totalorder %s18, 0
    %p101 = por %p99, %p100
    %p102 = scmp.ne.s32.totalorder %s94, %s96
    %p103 = scmp.eq.s32.totalorder %s23, 1
    %p104 = por %p102, %p103
    %p105 = scmp.ne.s32.totalorder %s96, %s97
    %p106 = scmp.eq.s32.totalorder %s23, 0
    %p107 = por %p105, %p106
    %p108 = scmp.ne.s32.totalorder %s96, %s97
    %p109 = scmp.eq.s32.totalorder %s24, 1
    %p110 = por %p108, %p109
    %p112 = scmp.ne.s32.totalorder %s97, %s111
    %p113 = scmp.eq.s32.totalorder %s24, 0
    %p114 = por %p112, %p113
    %s116 = sadd.s32 %s115, 1
    %p119 = scmp.eq.s32.totalorder %s18, 1
    %p120 = scmp.ne.s32.totalorder %s115, %s117
    %p121 = scmp.eq.s32.totalorder %s18, 0
    %p122 = por %p120, %p121
    %p123 = scmp.ne.s32.totalorder %s115, %s117
    %p124 = scmp.eq.s32.totalorder %s23, 1
    %p125 = por %p123, %p124
    %p126 = scmp.ne.s32.totalorder %s117, %s118
    %p127 = scmp.eq.s32.totalorder %s23, 0
    %p128 = por %p126, %p127
    %p129 = scmp.ne.s32.totalorder %s117, %s118
    %p130 = scmp.eq.s32.totalorder %s24, 1
    %p131 = por %p129, %p130
    %p133 = scmp.ne.s32.totalorder %s118, %s132
    %p134 = scmp.eq.s32.totalorder %s24, 0
    %p135 = por %p133, %p134
    %s137 = sadd.s32 %s136, 1
    %p140 = scmp.eq.s32.totalorder %s18, 1
    %p141 = scmp.ne.s32.totalorder %s136, %s138
    %p142 = scmp.eq.s32.totalorder %s18, 0
    %p143 = por %p141, %p142
    %p144 = scmp.ne.s32.totalorder %s136, %s138
    %p145 = scmp.eq.s32.totalorder %s23, 1
    %p146 = por %p144, %p145
    %p147 = scmp.ne.s32.totalorder %s138, %s139
    %p148 = scmp.eq.s32.totalorder %s23, 0
    %p149 = por %p147, %p148
    %p150 = scmp.ne.s32.totalorder %s138, %s139
    %p151 = scmp.eq.s32.totalorder %s24, 1
    %p152 = por %p150, %p151
    %p154 = scmp.ne.s32.totalorder %s139, %s153
    %p155 = scmp.eq.s32.totalorder %s24, 0
    %p156 = por %p154, %p155
    %s158 = sadd.s32 %s157, 1
    %p161 = scmp.eq.s32.totalorder %s18, 1
    %p162 = scmp.ne.s32.totalorder %s157, %s159
    %p163 = scmp.eq.s32.totalorder %s18, 0
    %p164 = por %p162, %p163
    %p165 = scmp.ne.s32.totalorder %s157, %s159
    %p166 = scmp.eq.s32.totalorder %s23, 1
    %p167 = por %p165, %p166
    %p168 = scmp.ne.s32.totalorder %s159, %s160
    %p169 = scmp.eq.s32.totalorder %s23, 0
    %p170 = por %p168, %p169
    %p171 = scmp.ne.s32.totalorder %s159, %s160
    %p172 = scmp.eq.s32.totalorder %s24, 1
    %p173 = por %p171, %p172
    %p175 = scmp.ne.s32.totalorder %s160, %s174
    %p176 = scmp.eq.s32.totalorder %s24, 0
    %p177 = por %p175, %p176
    %s179 = sadd.s32 %s178, 1
    %p182 = scmp.eq.s32.totalorder %s18, 1
    %p183 = scmp.ne.s32.totalorder %s178, %s180
    %p184 = scmp.eq.s32.totalorder %s18, 0
    %p185 = por %p183, %p184
    %p186 = scmp.ne.s32.totalorder %s178, %s180
    %p187 = scmp.eq.s32.totalorder %s23, 1
    %p188 = por %p186, %p187
    %p189 = scmp.ne.s32.totalorder %s180, %s181
    %p190 = scmp.eq.s32.totalorder %s23, 0
    %p191 = por %p189, %p190
    %p192 = scmp.ne.s32.totalorder %s180, %s181
    %p193 = scmp.eq.s32.totalorder %s24, 1
    %p194 = por %p192, %p193
    %p196 = scmp.ne.s32.totalorder %s181, %s195
    %p197 = scmp.eq.s32.totalorder %s24, 0
    %p198 = por %p196, %p197
    %s200 = sadd.s32 %s199, 1
    %p203 = scmp.eq.s32.totalorder %s18, 1
    %p204 = scmp.ne.s32.totalorder %s199, %s201
    %p205 = scmp.eq.s32.totalorder %s18, 0
    %p206 = por %p204, %p205
    %p207 = scmp.ne.s32.totalorder %s199, %s201
    %p208 = scmp.eq.s32.totalorder %s23, 1
    %p209 = por %p207, %p208
    %p210 = scmp.ne.s32.totalorder %s201, %s202
    %p211 = scmp.eq.s32.totalorder %s23, 0
    %p212 = por %p210, %p211
    %p213 = scmp.ne.s32.totalorder %s201, %s202
    %p214 = scmp.eq.s32.totalorder %s24, 1
    %p215 = por %p213, %p214
    %p217 = scmp.ne.s32.totalorder %s202, %s216
    %p218 = scmp.eq.s32.totalorder %s24, 0
    %p219 = por %p217, %p218
    %s221 = sadd.s32 %s220, 1
    %p224 = scmp.eq.s32.totalorder %s18, 1
    %p225 = scmp.ne.s32.totalorder %s220, %s222
    %p226 = scmp.eq.s32.totalorder %s18, 0
    %p227 = por %p225, %p226
    %p228 = scmp.ne.s32.totalorder %s220, %s222
    %p229 = scmp.eq.s32.totalorder %s23, 1
    %p230 = por %p228, %p229
    %p231 = scmp.ne.s32.totalorder %s222, %s223
    %p232 = scmp.eq.s32.totalorder %s23, 0
    %p233 = por %p231, %p232
    %p234 = scmp.ne.s32.totalorder %s222, %s223
    %p235 = scmp.eq.s32.totalorder %s24, 1
    %p236 = por %p234, %p235
    %p238 = scmp.ne.s32.totalorder %s223, %s237
    %p239 = scmp.eq.s32.totalorder %s24, 0
    %p240 = por %p238, %p239
    %s242 = sadd.s32 %s241, 1
    %p245 = scmp.eq.s32.totalorder %s18, 1
    %p246 = scmp.ne.s32.totalorder %s241, %s243
    %p247 = scmp.eq.s32.totalorder %s18, 0
    %p248 = por %p246, %p247
    %p249 = scmp.ne.s32.totalorder %s241, %s243
    %p250 = scmp.eq.s32.totalorder %s23, 1
    %p251 = por %p249, %p250
    %p252 = scmp.ne.s32.totalorder %s243, %s244
    %p253 = scmp.eq.s32.totalorder %s23, 0
    %p254 = por %p252, %p253
    %p255 = scmp.ne.s32.totalorder %s243, %s244
    %p256 = scmp.eq.s32.totalorder %s24, 1
    %p257 = por %p255, %p256
    %p259 = scmp.ne.s32.totalorder %s244, %s258
    %p260 = scmp.eq.s32.totalorder %s24, 0
    %p261 = por %p259, %p260
    %s263 = sadd.s32 %s262, 1
    %p266 = scmp.eq.s32.totalorder %s18, 1
    %p267 = scmp.ne.s32.totalorder %s262, %s264
    %p268 = scmp.eq.s32.totalorder %s18, 0
    %p269 = por %p267, %p268
    %p270 = scmp.ne.s32.totalorder %s262, %s264
    %p271 = scmp.eq.s32.totalorder %s23, 1
    %p272 = por %p270, %p271
    %p273 = scmp.ne.s32.totalorder %s264, %s265
    %p274 = scmp.eq.s32.totalorder %s23, 0
    %p275 = por %p273, %p274
    %p276 = scmp.ne.s32.totalorder %s264, %s265
    %p277 = scmp.eq.s32.totalorder %s24, 1
    %p278 = por %p276, %p277
    %p280 = scmp.ne.s32.totalorder %s265, %s279
    %p281 = scmp.eq.s32.totalorder %s24, 0
    %p282 = por %p280, %p281
    %s283 = ssub.s32 %s18, %s25
    %p284 = scmp.eq.s32.totalorder %s283, 0
    %s286 = sadd.s32 %s285, 1
    %s287 = scalar_select %p284, %s285, %s286
    %p290 = pneg %p284
    %p291 = scmp.eq.s32.totalorder %s18, 1
    %p292 = por %p290, %p291
    %p293 = scmp.ne.s32.totalorder %s285, %s288
    %p294 = scmp.eq.s32.totalorder %s18, 0
    %p295 = por %p293, %p294
    %p296 = scmp.ne.s32.totalorder %s285, %s288
    %p297 = scmp.eq.s32.totalorder %s23, 1
    %p298 = por %p296, %p297
    %p299 = scmp.ne.s32.totalorder %s288, %s289
    %p300 = scmp.eq.s32.totalorder %s23, 0
    %p301 = por %p299, %p300
    %p302 = scmp.ne.s32.totalorder %s288, %s289
    %p303 = scmp.eq.s32.totalorder %s24, 1
    %p304 = por %p302, %p303
    %p306 = scmp.ne.s32.totalorder %s289, %s305
    %p307 = scmp.eq.s32.totalorder %s24, 0
    %p308 = por %p306, %p307
    %p309 = scmp.le.s32.totalorder 1, %s18
    %p310 = scmp.lt.s32.totalorder %s18, 3
    %p311 = pnand %p309, %p310
    %p312 = pneg %p311
    // Predicated region
    $region9: #{tpu_custom_call.1} parent=5 // pred_check
      _
    $region10: #{tpu_custom_call.1} parent=5 // pred_check_branch
      %314 = sbr.rel (%p311) target = $region12
    $region11: #{tpu_custom_call.1} parent=5 // pred_region
      %s315 = ssub.s32 %s18, 1
      // Predicated region
      $region13: #{tpu_custom_call.1} parent=11 // pred_check
        %p316 = pneg %p65
      $region14: #{tpu_custom_call.1} parent=11 // pred_check_branch
        %318 = sbr.rel (%p316) target = $region16
      $region15: #{tpu_custom_call.1} parent=11 // pred_region
        _
      $region16: #{tpu_custom_call.1} parent=11 // pred_fallthru
        _
      // Predicated region
      $region17: #{tpu_custom_call.1} parent=11 // pred_check
        %p319 = pneg %p86
      $region18: #{tpu_custom_call.1} parent=11 // pred_check_branch
        %321 = sbr.rel (%p319) target = $region20
      $region19: #{tpu_custom_call.1} parent=11 // pred_region
        _
      $region20: #{tpu_custom_call.1} parent=11 // pred_fallthru
        _
      // Predicated region
      $region21: #{tpu_custom_call.1} parent=11 // pred_check
        %p322 = pneg %p107
      $region22: #{tpu_custom_call.1} parent=11 // pred_check_branch
        %324 = sbr.rel (%p322) target = $region24
      $region23: #{tpu_custom_call.1} parent=11 // pred_region
        _
      $region24: #{tpu_custom_call.1} parent=11 // pred_fallthru
        _
      // Predicated region
      $region25: #{tpu_custom_call.1} parent=11 // pred_check
        %p325 = pneg %p128
      $region26: #{tpu_custom_call.1} parent=11 // pred_check_branch
        %327 = sbr.rel (%p325) target = $region28
      $region27: #{tpu_custom_call.1} parent=11 // pred_region
        _
      $region28: #{tpu_custom_call.1} parent=11 // pred_fallthru
        _
      // Predicated region
      $region29: #{tpu_custom_call.1} parent=11 // pred_check
        %p328 = pneg %p149
      $region30: #{tpu_custom_call.1} parent=11 // pred_check_branch
        %330 = sbr.rel (%p328) target = $region32
      $region31: #{tpu_custom_call.1} parent=11 // pred_region
        _
      $region32: #{tpu_custom_call.1} parent=11 // pred_fallthru
        _
      // Predicated region
      $region33: #{tpu_custom_call.1} parent=11 // pred_check
        %p331 = pneg %p170
      $region34: #{tpu_custom_call.1} parent=11 // pred_check_branch
        %333 = sbr.rel (%p331) target = $region36
      $region35: #{tpu_custom_call.1} parent=11 // pred_region
        _
      $region36: #{tpu_custom_call.1} parent=11 // pred_fallthru
        _
      // Predicated region
      $region37: #{tpu_custom_call.1} parent=11 // pred_check
        %p334 = pneg %p191
      $region38: #{tpu_custom_call.1} parent=11 // pred_check_branch
        %336 = sbr.rel (%p334) target = $region40
      $region39: #{tpu_custom_call.1} parent=11 // pred_region
        _
      $region40: #{tpu_custom_call.1} parent=11 // pred_fallthru
        _
      // Predicated region
      $region41: #{tpu_custom_call.1} parent=11 // pred_check
        %p337 = pneg %p212
      $region42: #{tpu_custom_call.1} parent=11 // pred_check_branch
        %339 = sbr.rel (%p337) target = $region44
      $region43: #{tpu_custom_call.1} parent=11 // pred_region
        _
      $region44: #{tpu_custom_call.1} parent=11 // pred_fallthru
        _
      // Predicated region
      $region45: #{tpu_custom_call.1} parent=11 // pred_check
        %p340 = pneg %p233
      $region46: #{tpu_custom_call.1} parent=11 // pred_check_branch
        %342 = sbr.rel (%p340) target = $region48
      $region47: #{tpu_custom_call.1} parent=11 // pred_region
        _
      $region48: #{tpu_custom_call.1} parent=11 // pred_fallthru
        _
      // Predicated region
      $region49: #{tpu_custom_call.1} parent=11 // pred_check
        %p343 = pneg %p254
      $region50: #{tpu_custom_call.1} parent=11 // pred_check_branch
        %345 = sbr.rel (%p343) target = $region52
      $region51: #{tpu_custom_call.1} parent=11 // pred_region
        _
      $region52: #{tpu_custom_call.1} parent=11 // pred_fallthru
        _
      // Predicated region
      $region53: #{tpu_custom_call.1} parent=11 // pred_check
        %p346 = pneg %p275
      $region54: #{tpu_custom_call.1} parent=11 // pred_check_branch
        %348 = sbr.rel (%p346) target = $region56
      $region55: #{tpu_custom_call.1} parent=11 // pred_region
        _
      $region56: #{tpu_custom_call.1} parent=11 // pred_fallthru
        _
    $region12: #{tpu_custom_call.1} parent=5 // pred_fallthru
      _
    %p349 = scmp.lt.s32.totalorder %s18, 2
    // Predicated region
    $region57: #{tpu_custom_call.1} parent=5 // pred_check
      %p350 = pneg %p349
    $region58: #{tpu_custom_call.1} parent=5 // pred_check_branch
      %352 = sbr.rel (%p350) target = $region60
    $region59: #{tpu_custom_call.1} parent=5 // pred_region
      // Predicated region
      $region61: #{tpu_custom_call.1} parent=59 // pred_check
        %p353 = pneg %p38
      $region62: #{tpu_custom_call.1} parent=59 // pred_check_branch
        %355 = sbr.rel (%p353) target = $region64
      $region63: #{tpu_custom_call.1} parent=59 // pred_region
        %p356 = scmp.lt.s32.totalorder %s18, 1
        %s357 = scalar_select %p356, %s18, 1
        %s358 = smul.addr %s357, 32
        %s359 = smul.addr %s358, 8
        %s360 = scalar_lea.vmem %s0, %s359
      $region64: #{tpu_custom_call.1} parent=59 // pred_fallthru
        _
    $region60: #{tpu_custom_call.1} parent=5 // pred_fallthru
      _
    %p361 = scmp.le.s32.totalorder 1, %s18
    %p362 = scmp.lt.s32.totalorder %s18, 3
    %p363 = pnand %p361, %p362
    %p364 = pneg %p363
    // Predicated region
    $region65: #{tpu_custom_call.1} parent=5 // pred_check
      _
    $region66: #{tpu_custom_call.1} parent=5 // pred_check_branch
      %366 = sbr.rel (%p363) target = $region68
    $region67: #{tpu_custom_call.1} parent=5 // pred_region
      %s367 = ssub.s32 %s18, 1
      %p368 = scmp.lt.s32.totalorder %s23, 1
      %s369 = scalar_select %p368, %s23, 1
      %s370 = smul.addr %s369, 32
      %s371 = smul.addr %s370, 8
      %s372 = scalar_lea.vmem %s0, %s371
      %p373 = pneg %p44
      %p374 = pneg %p41
      %p375 = pneg %p65
      %p376 = pneg %p62
      %p377 = pneg %p86
      %p378 = pneg %p83
      %p379 = pneg %p107
      %p380 = pneg %p104
      %p381 = pneg %p128
      %p382 = pneg %p125
      %p383 = pneg %p149
      %p384 = pneg %p146
      %p385 = pneg %p170
      %p386 = pneg %p167
      %p387 = pneg %p191
      %p388 = pneg %p188
      %p389 = pneg %p212
      %p390 = pneg %p209
      %p391 = pneg %p233
      %p392 = pneg %p230
      %p393 = pneg %p254
      %p394 = pneg %p251
      %p395 = pneg %p275
      %p396 = pneg %p272
      %p397 = pneg %p301
      %p398 = pneg %p298
      %p399 = scmp.lt.s32.totalorder %s23, 1
      %s400 = scalar_select %p399, %s23, 1
      %s401 = smul.addr %s400, 32
      %s402 = smul.addr %s401, 8
      %s403 = scalar_lea.vmem %s12, %s402
      %p404 = scmp.lt.s32.totalorder %s23, 1
      %s405 = scalar_select %p404, %s23, 1
      %s406 = smul.addr %s405, 32
      %s407 = smul.addr %s406, 8
      %s408 = scalar_lea.vmem %s0, %s407
      %p409 = scmp.lt.s32.totalorder %s23, 1
      %s410 = scalar_select %p409, %s23, 1
      %s411 = smul.addr %s410, 32
      %s412 = smul.addr %s411, 8
      %s413 = scalar_lea.vmem %s12, %s412
      %v415 = vld [vmem:[%s408] sm:$0xff]
      %v416 = vld [vmem:[%s408 + $0x8] sm:$0xff]
      %v417 = vld [vmem:[%s408 + $0x10] sm:$0xff]
      %v418 = vld [vmem:[%s408 + $0x18] sm:$0xff]
      %v419 = vld [vmem:[%s408 + $0x20] sm:$0xff]
      %v420 = vld [vmem:[%s408 + $0x28] sm:$0xff]
      %v421 = vld [vmem:[%s408 + $0x30] sm:$0xff]
      %v422 = vld [vmem:[%s408 + $0x38] sm:$0xff]
      %v423 = vld [vmem:[%s408 + $0x40] sm:$0xff]
      %v424 = vld [vmem:[%s408 + $0x48] sm:$0xff]
      %v425 = vld [vmem:[%s408 + $0x50] sm:$0xff]
      %v426 = vld [vmem:[%s408 + $0x58] sm:$0xff]
      %v427 = vld [vmem:[%s408 + $0x60] sm:$0xff]
      %v428 = vld [vmem:[%s408 + $0x68] sm:$0xff]
      %v429 = vld [vmem:[%s408 + $0x70] sm:$0xff]
      %v430 = vld [vmem:[%s408 + $0x78] sm:$0xff]
      %v431 = vld [vmem:[%s408 + $0x80] sm:$0xff]
      %v432 = vld [vmem:[%s408 + $0x88] sm:$0xff]
      %v433 = vld [vmem:[%s408 + $0x90] sm:$0xff]
      %v434 = vld [vmem:[%s408 + $0x98] sm:$0xff]
      %v435 = vld [vmem:[%s408 + $0xa0] sm:$0xff]
      %v436 = vld [vmem:[%s408 + $0xa8] sm:$0xff]
      %v437 = vld [vmem:[%s408 + $0xb0] sm:$0xff]
      %v438 = vld [vmem:[%s408 + $0xb8] sm:$0xff]
      %v439 = vld [vmem:[%s408 + $0xc0] sm:$0xff]
      %v440 = vld [vmem:[%s408 + $0xc8] sm:$0xff]
      %v441 = vld [vmem:[%s408 + $0xd0] sm:$0xff]
      %v442 = vld [vmem:[%s408 + $0xd8] sm:$0xff]
      %v443 = vld [vmem:[%s408 + $0xe0] sm:$0xff]
      %v444 = vld [vmem:[%s408 + $0xe8] sm:$0xff]
      %v445 = vld [vmem:[%s408 + $0xf0] sm:$0xff]
      %v446 = vld [vmem:[%s408 + $0xf8] sm:$0xff]
      %v447 = vld [vmem:[%s1] sm:$0xf]
      %v448 = vpack.c.bf16 %v416, %v415
      %v449 = vpack.c.bf16 %v418, %v417
      %v450 = vpack.c.bf16 %v420, %v419
      %v451 = vpack.c.bf16 %v422, %v421
      %v452 = vpack.c.bf16 %v424, %v423
      %v453 = vpack.c.bf16 %v426, %v425
      %v454 = vpack.c.bf16 %v428, %v427
      %v455 = vpack.c.bf16 %v430, %v429
      %v456 = vpack.c.bf16 %v432, %v431
      %v457 = vpack.c.bf16 %v434, %v433
      %v458 = vpack.c.bf16 %v436, %v435
      %v459 = vpack.c.bf16 %v438, %v437
      %v460 = vpack.c.bf16 %v440, %v439
      %v461 = vpack.c.bf16 %v442, %v441
      %v462 = vpack.c.bf16 %v444, %v443
      %v463 = vpack.c.bf16 %v446, %v445
      %v464 = vpack.c.bf16 %v447, %v447
      %v465 = vld [vmem:[%s2] sm:$0x1]
      %v467 = vlaneseq
      %v468 = vshrl.u32 %v467, 7
      %v469 = vsub.s32 0, %v468
      %v470 = vrot.slane %v465, %v469
      %vm472 = vcmask 31744
      %v474 = vsel %vm472, %v448, 0
      %v477 = vsel %vm472, %v449, 0
      %v480 = vsel %vm472, %v450, 0
      %v483 = vsel %vm472, %v451, 0
      %v486 = vsel %vm472, %v452, 0
      %v489 = vsel %vm472, %v453, 0
      %v492 = vsel %vm472, %v454, 0
      %v495 = vsel %vm472, %v455, 0
      %v498 = vsel %vm472, %v456, 0
      %v501 = vsel %vm472, %v457, 0
      %v504 = vsel %vm472, %v458, 0
      %v507 = vsel %vm472, %v459, 0
      %v510 = vsel %vm472, %v460, 0
      %v513 = vsel %vm472, %v461, 0
      %v516 = vsel %vm472, %v462, 0
      %v519 = vsel %vm472, %v463, 0
      %vm521 = vcmask 1041408
      %v523 = vsel %vm521, %v464, 0
      %525 = vmatprep.subr.bf16.mxu0 0
      %526 = vmatpush1.bf16.msra.mxu0 %v523
      %527 = vmatprep.subr.bf16.mxu0 0
      %528 = vmatpush1.bf16.msra.mxu0 0
      %529 = vmatprep.subr.bf16.mxu0 0
      %530 = vmatpush1.bf16.msra.mxu0 0
      %531 = vmatprep.subr.bf16.mxu0 0
      %532 = vmatpush1.bf16.msra.mxu0 0
      %533 = vmatprep.subr.bf16.mxu0 0
      %534 = vmatpush1.bf16.msra.mxu0 0
      %535 = vmatprep.subr.bf16.mxu0 0
      %536 = vmatpush1.bf16.msra.mxu0 0
      %537 = vmatprep.subr.bf16.mxu0 0
      %538 = vmatpush1.bf16.msra.mxu0 0
      %539 = vmatprep.subr.bf16.mxu0 0
      %540 = vmatpush1.bf16.msra.mxu0 0
      %541 = vmatprep.subr.bf16.mxu0 0
      %542 = vmatpush1.bf16.msra.mxu0 0
      %543 = vmatprep.subr.bf16.mxu0 0
      %544 = vmatpush1.bf16.msra.mxu0 0
      %545 = vmatprep.subr.bf16.mxu0 0
      %546 = vmatpush1.bf16.msra.mxu0 0
      %547 = vmatprep.subr.bf16.mxu0 0
      %548 = vmatpush1.bf16.msra.mxu0 0
      %549 = vmatprep.subr.bf16.mxu0 0
      %550 = vmatpush1.bf16.msra.mxu0 0
      %551 = vmatprep.subr.bf16.mxu0 0
      %552 = vmatpush1.bf16.msra.mxu0 0
      %553 = vmatprep.subr.bf16.mxu0 0
      %554 = vmatpush1.bf16.msra.mxu0 0
      %555 = vmatprep.subr.bf16.mxu0 0
      %556 = vmatpush1.bf16.msra.mxu0 0
      %557 = vmatprep.mubr.bf16.mxu0 0
      %558 = vmatmul.mubr.bf16.gmra.mrb[0].mxu0 %v474
      %v559 = vpop.f32.mrb[0].mxu0
      %v560 = vadd.f32 %v470, %v559
      %v561 = vpop.f32.mrb[0].mxu0
      %v562 = vpop.f32.mrb[0].mxu0
      %v563 = vadd.f32 %v470, %v562
      %v564 = vpop.f32.mrb[0].mxu0
      %565 = vmatprep.mubr.bf16.mxu0 0
      %566 = vmatmul.mubr.bf16.gmra.mrb[0].mxu0 %v477
      %v567 = vpop.f32.mrb[0].mxu0
      %v568 = vadd.f32 %v470, %v567
      %v569 = vpop.f32.mrb[0].mxu0
      %v570 = vpop.f32.mrb[0].mxu0
      %v571 = vadd.f32 %v470, %v570
      %v572 = vpop.f32.mrb[0].mxu0
      %573 = vmatprep.mubr.bf16.mxu0 0
      %574 = vmatmul.mubr.bf16.gmra.mrb[0].mxu0 %v480
      %v575 = vpop.f32.mrb[0].mxu0
      %v576 = vadd.f32 %v470, %v575
      %v577 = vpop.f32.mrb[0].mxu0
      %v578 = vpop.f32.mrb[0].mxu0
      %v579 = vadd.f32 %v470, %v578
      %v580 = vpop.f32.mrb[0].mxu0
      %581 = vmatprep.mubr.bf16.mxu0 0
      %582 = vmatmul.mubr.bf16.gmra.mrb[0].mxu0 %v483
      %v583 = vpop.f32.mrb[0].mxu0
      %v584 = vadd.f32 %v470, %v583
      %v585 = vpop.f32.mrb[0].mxu0
      %v586 = vpop.f32.mrb[0].mxu0
      %v587 = vadd.f32 %v470, %v586
      %v588 = vpop.f32.mrb[0].mxu0
      %589 = vmatprep.mubr.bf16.mxu0 0
      %590 = vmatmul.mubr.bf16.gmra.mrb[0].mxu0 %v486
      %v591 = vpop.f32.mrb[0].mxu0
      %v592 = vadd.f32 %v470, %v591
      %v593 = vpop.f32.mrb[0].mxu0
      %v594 = vpop.f32.mrb[0].mxu0
      %v595 = vadd.f32 %v470, %v594
      %v596 = vpop.f32.mrb[0].mxu0
      %597 = vmatprep.mubr.bf16.mxu0 0
      %598 = vmatmul.mubr.bf16.gmra.mrb[0].mxu0 %v489
      %v599 = vpop.f32.mrb[0].mxu0
      %v600 = vadd.f32 %v470, %v599
      %v601 = vpop.f32.mrb[0].mxu0
      %v602 = vpop.f32.mrb[0].mxu0
      %v603 = vadd.f32 %v470, %v602
      %v604 = vpop.f32.mrb[0].mxu0
      %605 = vmatprep.mubr.bf16.mxu0 0
      %606 = vmatmul.mubr.bf16.gmra.mrb[0].mxu0 %v492
      %v607 = vpop.f32.mrb[0].mxu0
      %v608 = vadd.f32 %v470, %v607
      %v609 = vpop.f32.mrb[0].mxu0
      %v610 = vpop.f32.mrb[0].mxu0
      %v611 = vadd.f32 %v470, %v610
      %v612 = vpop.f32.mrb[0].mxu0
      %613 = vmatprep.mubr.bf16.mxu0 0
      %614 = vmatmul.mubr.bf16.gmra.mrb[0].mxu0 %v495
      %v615 = vpop.f32.mrb[0].mxu0
      %v616 = vadd.f32 %v470, %v615
      %v617 = vpop.f32.mrb[0].mxu0
      %v618 = vpop.f32.mrb[0].mxu0
      %v619 = vadd.f32 %v470, %v618
      %v620 = vpop.f32.mrb[0].mxu0
      %621 = vmatprep.mubr.bf16.mxu0 0
      %622 = vmatmul.mubr.bf16.gmra.mrb[0].mxu0 %v498
      %v623 = vpop.f32.mrb[0].mxu0
      %v624 = vadd.f32 %v470, %v623
      %v625 = vpop.f32.mrb[0].mxu0
      %v626 = vpop.f32.mrb[0].mxu0
      %v627 = vadd.f32 %v470, %v626
      %v628 = vpop.f32.mrb[0].mxu0
      %629 = vmatprep.mubr.bf16.mxu0 0
      %630 = vmatmul.mubr.bf16.gmra.mrb[0].mxu0 %v501
      %v631 = vpop.f32.mrb[0].mxu0
      %v632 = vadd.f32 %v470, %v631
      %v633 = vpop.f32.mrb[0].mxu0
      %v634 = vpop.f32.mrb[0].mxu0
      %v635 = vadd.f32 %v470, %v634
      %v636 = vpop.f32.mrb[0].mxu0
      %637 = vmatprep.mubr.bf16.mxu0 0
      %638 = vmatmul.mubr.bf16.gmra.mrb[0].mxu0 %v504
      %v639 = vpop.f32.mrb[0].mxu0
      %v640 = vadd.f32 %v470, %v639
      %v641 = vpop.f32.mrb[0].mxu0
      %v642 = vpop.f32.mrb[0].mxu0
      %v643 = vadd.f32 %v470, %v642
      %v644 = vpop.f32.mrb[0].mxu0
      %645 = vmatprep.mubr.bf16.mxu0 0
      %646 = vmatmul.mubr.bf16.gmra.mrb[0].mxu0 %v507
      %v647 = vpop.f32.mrb[0].mxu0
      %v648 = vadd.f32 %v470, %v647
      %v649 = vpop.f32.mrb[0].mxu0
      %v650 = vpop.f32.mrb[0].mxu0
      %v651 = vadd.f32 %v470, %v650
      %v652 = vpop.f32.mrb[0].mxu0
      %653 = vmatprep.mubr.bf16.mxu0 0
      %654 = vmatmul.mubr.bf16.gmra.mrb[0].mxu0 %v510
      %v655 = vpop.f32.mrb[0].mxu0
      %v656 = vadd.f32 %v470, %v655
      %v657 = vpop.f32.mrb[0].mxu0
      %v658 = vpop.f32.mrb[0].mxu0
      %v659 = vadd.f32 %v470, %v658
      %v660 = vpop.f32.mrb[0].mxu0
      %661 = vmatprep.mubr.bf16.mxu0 0
      %662 = vmatmul.mubr.bf16.gmra.mrb[0].mxu0 %v513
      %v663 = vpop.f32.mrb[0].mxu0
      %v664 = vadd.f32 %v470, %v663
      %v665 = vpop.f32.mrb[0].mxu0
      %v666 = vpop.f32.mrb[0].mxu0
      %v667 = vadd.f32 %v470, %v666
      %v668 = vpop.f32.mrb[0].mxu0
      %669 = vmatprep.mubr.bf16.mxu0 0
      %670 = vmatmul.mubr.bf16.gmra.mrb[0].mxu0 %v516
      %v671 = vpop.f32.mrb[0].mxu0
      %v672 = vadd.f32 %v470, %v671
      %v673 = vpop.f32.mrb[0].mxu0
      %v674 = vpop.f32.mrb[0].mxu0
      %v675 = vadd.f32 %v470, %v674
      %v676 = vpop.f32.mrb[0].mxu0
      %677 = vmatprep.mubr.bf16.mxu0 0
      %678 = vmatmul.mubr.bf16.gmra.mrb[0].mxu0 %v519
      %v679 = vpop.f32.mrb[0].mxu0
      %v680 = vadd.f32 %v470, %v679
      %v681 = vpop.f32.mrb[0].mxu0
      %v682 = vpop.f32.mrb[0].mxu0
      %v683 = vadd.f32 %v470, %v682
      %v684 = vpop.f32.mrb[0].mxu0
      %685 = vdwg.mxu0
      %v686 = vsub.f32 0.0, %v560
      %v687 = vsub.f32 0.0, %v563
      %v688 = vsub.f32 0.0, %v568
      %v689 = vsub.f32 0.0, %v571
      %v690 = vsub.f32 0.0, %v576
      %v691 = vsub.f32 0.0, %v579
      %v692 = vsub.f32 0.0, %v584
      %v693 = vsub.f32 0.0, %v587
      %v694 = vsub.f32 0.0, %v592
      %v695 = vsub.f32 0.0, %v595
      %v696 = vsub.f32 0.0, %v600
      %v697 = vsub.f32 0.0, %v603
      %v698 = vsub.f32 0.0, %v608
      %v699 = vsub.f32 0.0, %v611
      %v700 = vsub.f32 0.0, %v616
      %v701 = vsub.f32 0.0, %v619
      %v702 = vsub.f32 0.0, %v624
      %v703 = vsub.f32 0.0, %v627
      %v704 = vsub.f32 0.0, %v632
      %v705 = vsub.f32 0.0, %v635
      %v706 = vsub.f32 0.0, %v640
      %v707 = vsub.f32 0.0, %v643
      %v708 = vsub.f32 0.0, %v648
      %v709 = vsub.f32 0.0, %v651
      %v710 = vsub.f32 0.0, %v656
      %v711 = vsub.f32 0.0, %v659
      %v712 = vsub.f32 0.0, %v664
      %v713 = vsub.f32 0.0, %v667
      %v714 = vsub.f32 0.0, %v672
      %v715 = vsub.f32 0.0, %v675
      %v716 = vsub.f32 0.0, %v680
      %v717 = vsub.f32 0.0, %v683
      %v718 = vmul.f32 %v686, 1.442695
      %v719 = vpow.pop %v718
      %v720 = vmul.f32 %v687, 1.442695
      %v721 = vpow.pop %v720
      %v722 = vmul.f32 %v688, 1.442695
      %v723 = vpow.pop %v722
      %v724 = vmul.f32 %v689, 1.442695
      %v725 = vpow.pop %v724
      %v726 = vmul.f32 %v690, 1.442695
      %v727 = vpow.pop %v726
      %v728 = vmul.f32 %v691, 1.442695
      %v729 = vpow.pop %v728
      %v730 = vmul.f32 %v692, 1.442695
      %v731 = vpow.pop %v730
      %v732 = vmul.f32 %v693, 1.442695
      %v733 = vpow.pop %v732
      %v734 = vmul.f32 %v694, 1.442695
      %v735 = vpow.pop %v734
      %v736 = vmul.f32 %v695, 1.442695
      %v737 = vpow.pop %v736
      %v738 = vmul.f32 %v696, 1.442695
      %v739 = vpow.pop %v738
      %v740 = vmul.f32 %v697, 1.442695
      %v741 = vpow.pop %v740
      %v742 = vmul.f32 %v698, 1.442695
      %v743 = vpow.pop %v742
      %v744 = vmul.f32 %v699, 1.442695
      %v745 = vpow.pop %v744
      %v746 = vmul.f32 %v700, 1.442695
      %v747 = vpow.pop %v746
      %v748 = vmul.f32 %v701, 1.442695
      %v749 = vpow.pop %v748
      %v750 = vmul.f32 %v702, 1.442695
      %v751 = vpow.pop %v750
      %v752 = vmul.f32 %v703, 1.442695
      %v753 = vpow.pop %v752
      %v754 = vmul.f32 %v704, 1.442695
      %v755 = vpow.pop %v754
      %v756 = vmul.f32 %v705, 1.442695
      %v757 = vpow.pop %v756
      %v758 = vmul.f32 %v706, 1.442695
      %v759 = vpow.pop %v758
      %v760 = vmul.f32 %v707, 1.442695
      %v761 = vpow.pop %v760
      %v762 = vmul.f32 %v708, 1.442695
      %v763 = vpow.pop %v762
      %v764 = vmul.f32 %v709, 1.442695
      %v765 = vpow.pop %v764
      %v766 = vmul.f32 %v710, 1.442695
      %v767 = vpow.pop %v766
      %v768 = vmul.f32 %v711, 1.442695
      %v769 = vpow.pop %v768
      %v770 = vmul.f32 %v712, 1.442695
      %v771 = vpow.pop %v770
      %v772 = vmul.f32 %v713, 1.442695
      %v773 = vpow.pop %v772
      %v774 = vmul.f32 %v714, 1.442695
      %v775 = vpow.pop %v774
      %v776 = vmul.f32 %v715, 1.442695
      %v777 = vpow.pop %v776
      %v778 = vmul.f32 %v716, 1.442695
      %v779 = vpow.pop %v778
      %v780 = vmul.f32 %v717, 1.442695
      %v781 = vpow.pop %v780
      %v782 = vadd.f32 %v719, 1.0
      %v783 = vadd.f32 %v721, 1.0
      %v784 = vadd.f32 %v723, 1.0
      %v785 = vadd.f32 %v725, 1.0
      %v786 = vadd.f32 %v727, 1.0
      %v787 = vadd.f32 %v729, 1.0
      %v788 = vadd.f32 %v731, 1.0
      %v789 = vadd.f32 %v733, 1.0
      %v790 = vadd.f32 %v735, 1.0
      %v791 = vadd.f32 %v737, 1.0
      %v792 = vadd.f32 %v739, 1.0
      %v793 = vadd.f32 %v741, 1.0
      %v794 = vadd.f32 %v743, 1.0
      %v795 = vadd.f32 %v745, 1.0
      %v796 = vadd.f32 %v747, 1.0
      %v797 = vadd.f32 %v749, 1.0
      %v798 = vadd.f32 %v751, 1.0
      %v799 = vadd.f32 %v753, 1.0
      %v800 = vadd.f32 %v755, 1.0
      %v801 = vadd.f32 %v757, 1.0
      %v802 = vadd.f32 %v759, 1.0
      %v803 = vadd.f32 %v761, 1.0
      %v804 = vadd.f32 %v763, 1.0
      %v805 = vadd.f32 %v765, 1.0
      %v806 = vadd.f32 %v767, 1.0
      %v807 = vadd.f32 %v769, 1.0
      %v808 = vadd.f32 %v771, 1.0
      %v809 = vadd.f32 %v773, 1.0
      %v810 = vadd.f32 %v775, 1.0
      %v811 = vadd.f32 %v777, 1.0
      %v812 = vadd.f32 %v779, 1.0
      %v813 = vadd.f32 %v781, 1.0
      %v814 = vrcp.pop %v782
      %v815 = vmul.f32 1.0, %v814
      %v816 = vrcp.pop %v783
      %v817 = vmul.f32 1.0, %v816
      %v818 = vrcp.pop %v784
      %v819 = vmul.f32 1.0, %v818
      %v820 = vrcp.pop %v785
      %v821 = vmul.f32 1.0, %v820
      %v822 = vrcp.pop %v786
      %v823 = vmul.f32 1.0, %v822
      %v824 = vrcp.pop %v787
      %v825 = vmul.f32 1.0, %v824
      %v826 = vrcp.pop %v788
      %v827 = vmul.f32 1.0, %v826
      %v828 = vrcp.pop %v789
      %v829 = vmul.f32 1.0, %v828
      %v830 = vrcp.pop %v790
      %v831 = vmul.f32 1.0, %v830
      %v832 = vrcp.pop %v791
      %v833 = vmul.f32 1.0, %v832
      %v834 = vrcp.pop %v792
      %v835 = vmul.f32 1.0, %v834
      %v836 = vrcp.pop %v793
      %v837 = vmul.f32 1.0, %v836
      %v838 = vrcp.pop %v794
      %v839 = vmul.f32 1.0, %v838
      %v840 = vrcp.pop %v795
      %v841 = vmul.f32 1.0, %v840
      %v842 = vrcp.pop %v796
      %v843 = vmul.f32 1.0, %v842
      %v844 = vrcp.pop %v797
      %v845 = vmul.f32 1.0, %v844
      %v846 = vrcp.pop %v798
      %v847 = vmul.f32 1.0, %v846
      %v848 = vrcp.pop %v799
      %v849 = vmul.f32 1.0, %v848
      %v850 = vrcp.pop %v800
      %v851 = vmul.f32 1.0, %v850
      %v852 = vrcp.pop %v801
      %v853 = vmul.f32 1.0, %v852
      %v854 = vrcp.pop %v802
      %v855 = vmul.f32 1.0, %v854
      %v856 = vrcp.pop %v803
      %v857 = vmul.f32 1.0, %v856
      %v858 = vrcp.pop %v804
      %v859 = vmul.f32 1.0, %v858
      %v860 = vrcp.pop %v805
      %v861 = vmul.f32 1.0, %v860
      %v862 = vrcp.pop %v806
      %v863 = vmul.f32 1.0, %v862
      %v864 = vrcp.pop %v807
      %v865 = vmul.f32 1.0, %v864
      %v866 = vrcp.pop %v808
      %v867 = vmul.f32 1.0, %v866
      %v868 = vrcp.pop %v809
      %v869 = vmul.f32 1.0, %v868
      %v870 = vrcp.pop %v810
      %v871 = vmul.f32 1.0, %v870
      %v872 = vrcp.pop %v811
      %v873 = vmul.f32 1.0, %v872
      %v874 = vrcp.pop %v812
      %v875 = vmul.f32 1.0, %v874
      %v876 = vrcp.pop %v813
      %v877 = vmul.f32 1.0, %v876
      %v878 = vmul.f32 %v560, %v815
      %v879 = vmul.f32 %v563, %v817
      %v880 = vmul.f32 %v568, %v819
      %v881 = vmul.f32 %v571, %v821
      %v882 = vmul.f32 %v576, %v823
      %v883 = vmul.f32 %v579, %v825
      %v884 = vmul.f32 %v584, %v827
      %v885 = vmul.f32 %v587, %v829
      %v886 = vmul.f32 %v592, %v831
      %v887 = vmul.f32 %v595, %v833
      %v888 = vmul.f32 %v600, %v835
      %v889 = vmul.f32 %v603, %v837
      %v890 = vmul.f32 %v608, %v839
      %v891 = vmul.f32 %v611, %v841
      %v892 = vmul.f32 %v616, %v843
      %v893 = vmul.f32 %v619, %v845
      %v894 = vmul.f32 %v624, %v847
      %v895 = vmul.f32 %v627, %v849
      %v896 = vmul.f32 %v632, %v851
      %v897 = vmul.f32 %v635, %v853
      %v898 = vmul.f32 %v640, %v855
      %v899 = vmul.f32 %v643, %v857
      %v900 = vmul.f32 %v648, %v859
      %v901 = vmul.f32 %v651, %v861
      %v902 = vmul.f32 %v656, %v863
      %v903 = vmul.f32 %v659, %v865
      %v904 = vmul.f32 %v664, %v867
      %v905 = vmul.f32 %v667, %v869
      %v906 = vmul.f32 %v672, %v871
      %v907 = vmul.f32 %v675, %v873
      %v908 = vmul.f32 %v680, %v875
      %v909 = vmul.f32 %v683, %v877
      %v910 = vld [vmem:[%s3] sm:$0xf]
      %v911 = vpack.c.bf16 %v910, %v910
      %v912 = vld [vmem:[%s4] sm:$0x1]
      %v914 = vlaneseq
      %v915 = vshrl.u32 %v914, 7
      %v916 = vsub.s32 0, %v915
      %v917 = vrot.slane %v912, %v916
      %v920 = vsel %vm521, %v911, 0
      %922 = vmatprep.subr.bf16.mxu0 0
      %923 = vmatpush1.bf16.msra.mxu0 %v920
      %924 = vmatprep.subr.bf16.mxu0 0
      %925 = vmatpush1.bf16.msra.mxu0 0
      %926 = vmatprep.subr.bf16.mxu0 0
      %927 = vmatpush1.bf16.msra.mxu0 0
      %928 = vmatprep.subr.bf16.mxu0 0
      %929 = vmatpush1.bf16.msra.mxu0 0
      %930 = vmatprep.subr.bf16.mxu0 0
      %931 = vmatpush1.bf16.msra.mxu0 0
      %932 = vmatprep.subr.bf16.mxu0 0
      %933 = vmatpush1.bf16.msra.mxu0 0
      %934 = vmatprep.subr.bf16.mxu0 0
      %935 = vmatpush1.bf16.msra.mxu0 0
      %936 = vmatprep.subr.bf16.mxu0 0
      %937 = vmatpush1.bf16.msra.mxu0 0
      %938 = vmatprep.subr.bf16.mxu0 0
      %939 = vmatpush1.bf16.msra.mxu0 0
      %940 = vmatprep.subr.bf16.mxu0 0
      %941 = vmatpush1.bf16.msra.mxu0 0
      %942 = vmatprep.subr.bf16.mxu0 0
      %943 = vmatpush1.bf16.msra.mxu0 0
      %944 = vmatprep.subr.bf16.mxu0 0
      %945 = vmatpush1.bf16.msra.mxu0 0
      %946 = vmatprep.subr.bf16.mxu0 0
      %947 = vmatpush1.bf16.msra.mxu0 0
      %948 = vmatprep.subr.bf16.mxu0 0
      %949 = vmatpush1.bf16.msra.mxu0 0
      %950 = vmatprep.subr.bf16.mxu0 0
      %951 = vmatpush1.bf16.msra.mxu0 0
      %952 = vmatprep.subr.bf16.mxu0 0
      %953 = vmatpush1.bf16.msra.mxu0 0
      %954 = vmatprep.mubr.bf16.mxu0 0
      %955 = vmatmul.mubr.bf16.gmra.mrb[0].mxu0 %v474
      %v956 = vpop.f32.mrb[0].mxu0
      %v957 = vadd.f32 %v917, %v956
      %v958 = vpop.f32.mrb[0].mxu0
      %v959 = vpop.f32.mrb[0].mxu0
      %v960 = vadd.f32 %v917, %v959
      %v961 = vpop.f32.mrb[0].mxu0
      %962 = vmatprep.mubr.bf16.mxu0 0
      %963 = vmatmul.mubr.bf16.gmra.mrb[0].mxu0 %v477
      %v964 = vpop.f32.mrb[0].mxu0
      %v965 = vadd.f32 %v917, %v964
      %v966 = vpop.f32.mrb[0].mxu0
      %v967 = vpop.f32.mrb[0].mxu0
      %v968 = vadd.f32 %v917, %v967
      %v969 = vpop.f32.mrb[0].mxu0
      %970 = vmatprep.mubr.bf16.mxu0 0
      %971 = vmatmul.mubr.bf16.gmra.mrb[0].mxu0 %v480
      %v972 = vpop.f32.mrb[0].mxu0
      %v973 = vadd.f32 %v917, %v972
      %v974 = vpop.f32.mrb[0].mxu0
      %v975 = vpop.f32.mrb[0].mxu0
      %v976 = vadd.f32 %v917, %v975
      %v977 = vpop.f32.mrb[0].mxu0
      %978 = vmatprep.mubr.bf16.mxu0 0
      %979 = vmatmul.mubr.bf16.gmra.mrb[0].mxu0 %v483
      %v980 = vpop.f32.mrb[0].mxu0
      %v981 = vadd.f32 %v917, %v980
      %v982 = vpop.f32.mrb[0].mxu0
      %v983 = vpop.f32.mrb[0].mxu0
      %v984 = vadd.f32 %v917, %v983
      %v985 = vpop.f32.mrb[0].mxu0
      %986 = vmatprep.mubr.bf16.mxu0 0
      %987 = vmatmul.mubr.bf16.gmra.mrb[0].mxu0 %v486
      %v988 = vpop.f32.mrb[0].mxu0
      %v989 = vadd.f32 %v917, %v988
      %v990 = vpop.f32.mrb[0].mxu0
      %v991 = vpop.f32.mrb[0].mxu0
      %v992 = vadd.f32 %v917, %v991
      %v993 = vpop.f32.mrb[0].mxu0
      %994 = vmatprep.mubr.bf16.mxu0 0
      %995 = vmatmul.mubr.bf16.gmra.mrb[0].mxu0 %v489
      %v996 = vpop.f32.mrb[0].mxu0
      %v997 = vadd.f32 %v917, %v996
      %v998 = vpop.f32.mrb[0].mxu0
      %v999 = vpop.f32.mrb[0].mxu0
      %v1000 = vadd.f32 %v917, %v999
      %v1001 = vpop.f32.mrb[0].mxu0
      %1002 = vmatprep.mubr.bf16.mxu0 0
      %1003 = vmatmul.mubr.bf16.gmra.mrb[0].mxu0 %v492
      %v1004 = vpop.f32.mrb[0].mxu0
      %v1005 = vadd.f32 %v917, %v1004
      %v1006 = vpop.f32.mrb[0].mxu0
      %v1007 = vpop.f32.mrb[0].mxu0
      %v1008 = vadd.f32 %v917, %v1007
      %v1009 = vpop.f32.mrb[0].mxu0
      %1010 = vmatprep.mubr.bf16.mxu0 0
      %1011 = vmatmul.mubr.bf16.gmra.mrb[0].mxu0 %v495
      %v1012 = vpop.f32.mrb[0].mxu0
      %v1013 = vadd.f32 %v917, %v1012
      %v1014 = vpop.f32.mrb[0].mxu0
      %v1015 = vpop.f32.mrb[0].mxu0
      %v1016 = vadd.f32 %v917, %v1015
      %v1017 = vpop.f32.mrb[0].mxu0
      %1018 = vmatprep.mubr.bf16.mxu0 0
      %1019 = vmatmul.mubr.bf16.gmra.mrb[0].mxu0 %v498
      %v1020 = vpop.f32.mrb[0].mxu0
      %v1021 = vadd.f32 %v917, %v1020
      %v1022 = vpop.f32.mrb[0].mxu0
      %v1023 = vpop.f32.mrb[0].mxu0
      %v1024 = vadd.f32 %v917, %v1023
      %v1025 = vpop.f32.mrb[0].mxu0
      %1026 = vmatprep.mubr.bf16.mxu0 0
      %1027 = vmatmul.mubr.bf16.gmra.mrb[0].mxu0 %v501
      %v1028 = vpop.f32.mrb[0].mxu0
      %v1029 = vadd.f32 %v917, %v1028
      %v1030 = vpop.f32.mrb[0].mxu0
      %v1031 = vpop.f32.mrb[0].mxu0
      %v1032 = vadd.f32 %v917, %v1031
      %v1033 = vpop.f32.mrb[0].mxu0
      %1034 = vmatprep.mubr.bf16.mxu0 0
      %1035 = vmatmul.mubr.bf16.gmra.mrb[0].mxu0 %v504
      %v1036 = vpop.f32.mrb[0].mxu0
      %v1037 = vadd.f32 %v917, %v1036
      %v1038 = vpop.f32.mrb[0].mxu0
      %v1039 = vpop.f32.mrb[0].mxu0
      %v1040 = vadd.f32 %v917, %v1039
      %v1041 = vpop.f32.mrb[0].mxu0
      %1042 = vmatprep.mubr.bf16.mxu0 0
      %1043 = vmatmul.mubr.bf16.gmra.mrb[0].mxu0 %v507
      %v1044 = vpop.f32.mrb[0].mxu0
      %v1045 = vadd.f32 %v917, %v1044
      %v1046 = vpop.f32.mrb[0].mxu0
      %v1047 = vpop.f32.mrb[0].mxu0
      %v1048 = vadd.f32 %v917, %v1047
      %v1049 = vpop.f32.mrb[0].mxu0
      %1050 = vmatprep.mubr.bf16.mxu0 0
      %1051 = vmatmul.mubr.bf16.gmra.mrb[0].mxu0 %v510
      %v1052 = vpop.f32.mrb[0].mxu0
      %v1053 = vadd.f32 %v917, %v1052
      %v1054 = vpop.f32.mrb[0].mxu0
      %v1055 = vpop.f32.mrb[0].mxu0
      %v1056 = vadd.f32 %v917, %v1055
      %v1057 = vpop.f32.mrb[0].mxu0
      %1058 = vmatprep.mubr.bf16.mxu0 0
      %1059 = vmatmul.mubr.bf16.gmra.mrb[0].mxu0 %v513
      %v1060 = vpop.f32.mrb[0].mxu0
      %v1061 = vadd.f32 %v917, %v1060
      %v1062 = vpop.f32.mrb[0].mxu0
      %v1063 = vpop.f32.mrb[0].mxu0
      %v1064 = vadd.f32 %v917, %v1063
      %v1065 = vpop.f32.mrb[0].mxu0
      %1066 = vmatprep.mubr.bf16.mxu0 0
      %1067 = vmatmul.mubr.bf16.gmra.mrb[0].mxu0 %v516
      %v1068 = vpop.f32.mrb[0].mxu0
      %v1069 = vadd.f32 %v917, %v1068
      %v1070 = vpop.f32.mrb[0].mxu0
      %v1071 = vpop.f32.mrb[0].mxu0
      %v1072 = vadd.f32 %v917, %v1071
      %v1073 = vpop.f32.mrb[0].mxu0
      %1074 = vmatprep.mubr.bf16.mxu0 0
      %1075 = vmatmul.mubr.bf16.gmra.mrb[0].mxu0 %v519
      %v1076 = vpop.f32.mrb[0].mxu0
      %v1077 = vadd.f32 %v917, %v1076
      %v1078 = vpop.f32.mrb[0].mxu0
      %v1079 = vpop.f32.mrb[0].mxu0
      %v1080 = vadd.f32 %v917, %v1079
      %v1081 = vpop.f32.mrb[0].mxu0
      %1082 = vdwg.mxu0
      %v1083 = vsub.f32 0.0, %v957
      %v1084 = vsub.f32 0.0, %v960
      %v1085 = vsub.f32 0.0, %v965
      %v1086 = vsub.f32 0.0, %v968
      %v1087 = vsub.f32 0.0, %v973
      %v1088 = vsub.f32 0.0, %v976
      %v1089 = vsub.f32 0.0, %v981
      %v1090 = vsub.f32 0.0, %v984
      %v1091 = vsub.f32 0.0, %v989
      %v1092 = vsub.f32 0.0, %v992
      %v1093 = vsub.f32 0.0, %v997
      %v1094 = vsub.f32 0.0, %v1000
      %v1095 = vsub.f32 0.0, %v1005
      %v1096 = vsub.f32 0.0, %v1008
      %v1097 = vsub.f32 0.0, %v1013
      %v1098 = vsub.f32 0.0, %v1016
      %v1099 = vsub.f32 0.0, %v1021
      %v1100 = vsub.f32 0.0, %v1024
      %v1101 = vsub.f32 0.0, %v1029
      %v1102 = vsub.f32 0.0, %v1032
      %v1103 = vsub.f32 0.0, %v1037
      %v1104 = vsub.f32 0.0, %v1040
      %v1105 = vsub.f32 0.0, %v1045
      %v1106 = vsub.f32 0.0, %v1048
      %v1107 = vsub.f32 0.0, %v1053
      %v1108 = vsub.f32 0.0, %v1056
      %v1109 = vsub.f32 0.0, %v1061
      %v1110 = vsub.f32 0.0, %v1064
      %v1111 = vsub.f32 0.0, %v1069
      %v1112 = vsub.f32 0.0, %v1072
      %v1113 = vsub.f32 0.0, %v1077
      %v1114 = vsub.f32 0.0, %v1080
      %v1115 = vmul.f32 %v1083, 1.442695
      %v1116 = vpow.pop %v1115
      %v1117 = vmul.f32 %v1084, 1.442695
      %v1118 = vpow.pop %v1117
      %v1119 = vmul.f32 %v1085, 1.442695
      %v1120 = vpow.pop %v1119
      %v1121 = vmul.f32 %v1086, 1.442695
      %v1122 = vpow.pop %v1121
      %v1123 = vmul.f32 %v1087, 1.442695
      %v1124 = vpow.pop %v1123
      %v1125 = vmul.f32 %v1088, 1.442695
      %v1126 = vpow.pop %v1125
      %v1127 = vmul.f32 %v1089, 1.442695
      %v1128 = vpow.pop %v1127
      %v1129 = vmul.f32 %v1090, 1.442695
      %v1130 = vpow.pop %v1129
      %v1131 = vmul.f32 %v1091, 1.442695
      %v1132 = vpow.pop %v1131
      %v1133 = vmul.f32 %v1092, 1.442695
      %v1134 = vpow.pop %v1133
      %v1135 = vmul.f32 %v1093, 1.442695
      %v1136 = vpow.pop %v1135
      %v1137 = vmul.f32 %v1094, 1.442695
      %v1138 = vpow.pop %v1137
      %v1139 = vmul.f32 %v1095, 1.442695
      %v1140 = vpow.pop %v1139
      %v1141 = vmul.f32 %v1096, 1.442695
      %v1142 = vpow.pop %v1141
      %v1143 = vmul.f32 %v1097, 1.442695
      %v1144 = vpow.pop %v1143
      %v1145 = vmul.f32 %v1098, 1.442695
      %v1146 = vpow.pop %v1145
      %v1147 = vmul.f32 %v1099, 1.442695
      %v1148 = vpow.pop %v1147
      %v1149 = vmul.f32 %v1100, 1.442695
      %v1150 = vpow.pop %v1149
      %v1151 = vmul.f32 %v1101, 1.442695
      %v1152 = vpow.pop %v1151
      %v1153 = vmul.f32 %v1102, 1.442695
      %v1154 = vpow.pop %v1153
      %v1155 = vmul.f32 %v1103, 1.442695
      %v1156 = vpow.pop %v1155
      %v1157 = vmul.f32 %v1104, 1.442695
      %v1158 = vpow.pop %v1157
      %v1159 = vmul.f32 %v1105, 1.442695
      %v1160 = vpow.pop %v1159
      %v1161 = vmul.f32 %v1106, 1.442695
      %v1162 = vpow.pop %v1161
      %v1163 = vmul.f32 %v1107, 1.442695
      %v1164 = vpow.pop %v1163
      %v1165 = vmul.f32 %v1108, 1.442695
      %v1166 = vpow.pop %v1165
      %v1167 = vmul.f32 %v1109, 1.442695
      %v1168 = vpow.pop %v1167
      %v1169 = vmul.f32 %v1110, 1.442695
      %v1170 = vpow.pop %v1169
      %v1171 = vmul.f32 %v1111, 1.442695
      %v1172 = vpow.pop %v1171
      %v1173 = vmul.f32 %v1112, 1.442695
      %v1174 = vpow.pop %v1173
      %v1175 = vmul.f32 %v1113, 1.442695
      %v1176 = vpow.pop %v1175
      %v1177 = vmul.f32 %v1114, 1.442695
      %v1178 = vpow.pop %v1177
      %v1179 = vadd.f32 %v1116, 1.0
      %v1180 = vadd.f32 %v1118, 1.0
      %v1181 = vadd.f32 %v1120, 1.0
      %v1182 = vadd.f32 %v1122, 1.0
      %v1183 = vadd.f32 %v1124, 1.0
      %v1184 = vadd.f32 %v1126, 1.0
      %v1185 = vadd.f32 %v1128, 1.0
      %v1186 = vadd.f32 %v1130, 1.0
      %v1187 = vadd.f32 %v1132, 1.0
      %v1188 = vadd.f32 %v1134, 1.0
      %v1189 = vadd.f32 %v1136, 1.0
      %v1190 = vadd.f32 %v1138, 1.0
      %v1191 = vadd.f32 %v1140, 1.0
      %v1192 = vadd.f32 %v1142, 1.0
      %v1193 = vadd.f32 %v1144, 1.0
      %v1194 = vadd.f32 %v1146, 1.0
      %v1195 = vadd.f32 %v1148, 1.0
      %v1196 = vadd.f32 %v1150, 1.0
      %v1197 = vadd.f32 %v1152, 1.0
      %v1198 = vadd.f32 %v1154, 1.0
      %v1199 = vadd.f32 %v1156, 1.0
      %v1200 = vadd.f32 %v1158, 1.0
      %v1201 = vadd.f32 %v1160, 1.0
      %v1202 = vadd.f32 %v1162, 1.0
      %v1203 = vadd.f32 %v1164, 1.0
      %v1204 = vadd.f32 %v1166, 1.0
      %v1205 = vadd.f32 %v1168, 1.0
      %v1206 = vadd.f32 %v1170, 1.0
      %v1207 = vadd.f32 %v1172, 1.0
      %v1208 = vadd.f32 %v1174, 1.0
      %v1209 = vadd.f32 %v1176, 1.0
      %v1210 = vadd.f32 %v1178, 1.0
      %v1211 = vrcp.pop %v1179
      %v1212 = vmul.f32 1.0, %v1211
      %v1213 = vrcp.pop %v1180
      %v1214 = vmul.f32 1.0, %v1213
      %v1215 = vrcp.pop %v1181
      %v1216 = vmul.f32 1.0, %v1215
      %v1217 = vrcp.pop %v1182
      %v1218 = vmul.f32 1.0, %v1217
      %v1219 = vrcp.pop %v1183
      %v1220 = vmul.f32 1.0, %v1219
      %v1221 = vrcp.pop %v1184
      %v1222 = vmul.f32 1.0, %v1221
      %v1223 = vrcp.pop %v1185
      %v1224 = vmul.f32 1.0, %v1223
      %v1225 = vrcp.pop %v1186
      %v1226 = vmul.f32 1.0, %v1225
      %v1227 = vrcp.pop %v1187
      %v1228 = vmul.f32 1.0, %v1227
      %v1229 = vrcp.pop %v1188
      %v1230 = vmul.f32 1.0, %v1229
      %v1231 = vrcp.pop %v1189
      %v1232 = vmul.f32 1.0, %v1231
      %v1233 = vrcp.pop %v1190
      %v1234 = vmul.f32 1.0, %v1233
      %v1235 = vrcp.pop %v1191
      %v1236 = vmul.f32 1.0, %v1235
      %v1237 = vrcp.pop %v1192
      %v1238 = vmul.f32 1.0, %v1237
      %v1239 = vrcp.pop %v1193
      %v1240 = vmul.f32 1.0, %v1239
      %v1241 = vrcp.pop %v1194
      %v1242 = vmul.f32 1.0, %v1241
      %v1243 = vrcp.pop %v1195
      %v1244 = vmul.f32 1.0, %v1243
      %v1245 = vrcp.pop %v1196
      %v1246 = vmul.f32 1.0, %v1245
      %v1247 = vrcp.pop %v1197
      %v1248 = vmul.f32 1.0, %v1247
      %v1249 = vrcp.pop %v1198
      %v1250 = vmul.f32 1.0, %v1249
      %v1251 = vrcp.pop %v1199
      %v1252 = vmul.f32 1.0, %v1251
      %v1253 = vrcp.pop %v1200
      %v1254 = vmul.f32 1.0, %v1253
      %v1255 = vrcp.pop %v1201
      %v1256 = vmul.f32 1.0, %v1255
      %v1257 = vrcp.pop %v1202
      %v1258 = vmul.f32 1.0, %v1257
      %v1259 = vrcp.pop %v1203
      %v1260 = vmul.f32 1.0, %v1259
      %v1261 = vrcp.pop %v1204
      %v1262 = vmul.f32 1.0, %v1261
      %v1263 = vrcp.pop %v1205
      %v1264 = vmul.f32 1.0, %v1263
      %v1265 = vrcp.pop %v1206
      %v1266 = vmul.f32 1.0, %v1265
      %v1267 = vrcp.pop %v1207
      %v1268 = vmul.f32 1.0, %v1267
      %v1269 = vrcp.pop %v1208
      %v1270 = vmul.f32 1.0, %v1269
      %v1271 = vrcp.pop %v1209
      %v1272 = vmul.f32 1.0, %v1271
      %v1273 = vrcp.pop %v1210
      %v1274 = vmul.f32 1.0, %v1273
      %v1275 = vmul.f32 %v957, %v1212
      %v1276 = vmul.f32 %v960, %v1214
      %v1277 = vmul.f32 %v965, %v1216
      %v1278 = vmul.f32 %v968, %v1218
      %v1279 = vmul.f32 %v973, %v1220
      %v1280 = vmul.f32 %v976, %v1222
      %v1281 = vmul.f32 %v981, %v1224
      %v1282 = vmul.f32 %v984, %v1226
      %v1283 = vmul.f32 %v989, %v1228
      %v1284 = vmul.f32 %v992, %v1230
      %v1285 = vmul.f32 %v997, %v1232
      %v1286 = vmul.f32 %v1000, %v1234
      %v1287 = vmul.f32 %v1005, %v1236
      %v1288 = vmul.f32 %v1008, %v1238
      %v1289 = vmul.f32 %v1013, %v1240
      %v1290 = vmul.f32 %v1016, %v1242
      %v1291 = vmul.f32 %v1021, %v1244
      %v1292 = vmul.f32 %v1024, %v1246
      %v1293 = vmul.f32 %v1029, %v1248
      %v1294 = vmul.f32 %v1032, %v1250
      %v1295 = vmul.f32 %v1037, %v1252
      %v1296 = vmul.f32 %v1040, %v1254
      %v1297 = vmul.f32 %v1045, %v1256
      %v1298 = vmul.f32 %v1048, %v1258
      %v1299 = vmul.f32 %v1053, %v1260
      %v1300 = vmul.f32 %v1056, %v1262
      %v1301 = vmul.f32 %v1061, %v1264
      %v1302 = vmul.f32 %v1064, %v1266
      %v1303 = vmul.f32 %v1069, %v1268
      %v1304 = vmul.f32 %v1072, %v1270
      %v1305 = vmul.f32 %v1077, %v1272
      %v1306 = vmul.f32 %v1080, %v1274
      %v1307 = vld [vmem:[%s5] sm:$0xf]
      %v1308 = vpack.c.bf16 %v879, %v878
      %v1309 = vpack.c.bf16 %v881, %v880
      %v1310 = vpack.c.bf16 %v883, %v882
      %v1311 = vpack.c.bf16 %v885, %v884
      %v1312 = vpack.c.bf16 %v887, %v886
      %v1313 = vpack.c.bf16 %v889, %v888
      %v1314 = vpack.c.bf16 %v891, %v890
      %v1315 = vpack.c.bf16 %v893, %v892
      %v1316 = vpack.c.bf16 %v895, %v894
      %v1317 = vpack.c.bf16 %v897, %v896
      %v1318 = vpack.c.bf16 %v899, %v898
      %v1319 = vpack.c.bf16 %v901, %v900
      %v1320 = vpack.c.bf16 %v903, %v902
      %v1321 = vpack.c.bf16 %v905, %v904
      %v1322 = vpack.c.bf16 %v907, %v906
      %v1323 = vpack.c.bf16 %v909, %v908
      %v1324 = vpack.c.bf16 %v1307, %v1307
      %v1325 = vld [vmem:[%s6] sm:$0x1]
      %v1327 = vlaneseq
      %v1328 = vshrl.u32 %v1327, 7
      %v1329 = vsub.s32 0, %v1328
      %v1330 = vrot.slane %v1325, %v1329
      %v1333 = vsel %vm472, %v1308, 0
      %v1336 = vsel %vm472, %v1309, 0
      %v1339 = vsel %vm472, %v1310, 0
      %v1342 = vsel %vm472, %v1311, 0
      %v1345 = vsel %vm472, %v1312, 0
      %v1348 = vsel %vm472, %v1313, 0
      %v1351 = vsel %vm472, %v1314, 0
      %v1354 = vsel %vm472, %v1315, 0
      %v1357 = vsel %vm472, %v1316, 0
      %v1360 = vsel %vm472, %v1317, 0
      %v1363 = vsel %vm472, %v1318, 0
      %v1366 = vsel %vm472, %v1319, 0
      %v1369 = vsel %vm472, %v1320, 0
      %v1372 = vsel %vm472, %v1321, 0
      %v1375 = vsel %vm472, %v1322, 0
      %v1378 = vsel %vm472, %v1323, 0
      %v1381 = vsel %vm521, %v1324, 0
      %1383 = vmatprep.subr.bf16.mxu0 0
      %1384 = vmatpush1.bf16.msra.mxu0 %v1381
      %1385 = vmatprep.subr.bf16.mxu0 0
      %1386 = vmatpush1.bf16.msra.mxu0 0
      %1387 = vmatprep.subr.bf16.mxu0 0
      %1388 = vmatpush1.bf16.msra.mxu0 0
      %1389 = vmatprep.subr.bf16.mxu0 0
      %1390 = vmatpush1.bf16.msra.mxu0 0
      %1391 = vmatprep.subr.bf16.mxu0 0
      %1392 = vmatpush1.bf16.msra.mxu0 0
      %1393 = vmatprep.subr.bf16.mxu0 0
      %1394 = vmatpush1.bf16.msra.mxu0 0
      %1395 = vmatprep.subr.bf16.mxu0 0
      %1396 = vmatpush1.bf16.msra.mxu0 0
      %1397 = vmatprep.subr.bf16.mxu0 0
      %1398 = vmatpush1.bf16.msra.mxu0 0
      %1399 = vmatprep.subr.bf16.mxu0 0
      %1400 = vmatpush1.bf16.msra.mxu0 0
      %1401 = vmatprep.subr.bf16.mxu0 0
      %1402 = vmatpush1.bf16.msra.mxu0 0
      %1403 = vmatprep.subr.bf16.mxu0 0
      %1404 = vmatpush1.bf16.msra.mxu0 0
      %1405 = vmatprep.subr.bf16.mxu0 0
      %1406 = vmatpush1.bf16.msra.mxu0 0
      %1407 = vmatprep.subr.bf16.mxu0 0
      %1408 = vmatpush1.bf16.msra.mxu0 0
      %1409 = vmatprep.subr.bf16.mxu0 0
      %1410 = vmatpush1.bf16.msra.mxu0 0
      %1411 = vmatprep.subr.bf16.mxu0 0
      %1412 = vmatpush1.bf16.msra.mxu0 0
      %1413 = vmatprep.subr.bf16.mxu0 0
      %1414 = vmatpush1.bf16.msra.mxu0 0
      %1415 = vmatprep.mubr.bf16.mxu0 0
      %1416 = vmatmul.mubr.bf16.gmra.mrb[0].mxu0 %v1333
      %v1417 = vpop.f32.mrb[0].mxu0
      %v1418 = vadd.f32 %v1330, %v1417
      %v1419 = vpop.f32.mrb[0].mxu0
      %v1420 = vpop.f32.mrb[0].mxu0
      %v1421 = vadd.f32 %v1330, %v1420
      %v1422 = vpop.f32.mrb[0].mxu0
      %1423 = vmatprep.mubr.bf16.mxu0 0
      %1424 = vmatmul.mubr.bf16.gmra.mrb[0].mxu0 %v1336
      %v1425 = vpop.f32.mrb[0].mxu0
      %v1426 = vadd.f32 %v1330, %v1425
      %v1427 = vpop.f32.mrb[0].mxu0
      %v1428 = vpop.f32.mrb[0].mxu0
      %v1429 = vadd.f32 %v1330, %v1428
      %v1430 = vpop.f32.mrb[0].mxu0
      %1431 = vmatprep.mubr.bf16.mxu0 0
      %1432 = vmatmul.mubr.bf16.gmra.mrb[0].mxu0 %v1339
      %v1433 = vpop.f32.mrb[0].mxu0
      %v1434 = vadd.f32 %v1330, %v1433
      %v1435 = vpop.f32.mrb[0].mxu0
      %v1436 = vpop.f32.mrb[0].mxu0
      %v1437 = vadd.f32 %v1330, %v1436
      %v1438 = vpop.f32.mrb[0].mxu0
      %1439 = vmatprep.mubr.bf16.mxu0 0
      %1440 = vmatmul.mubr.bf16.gmra.mrb[0].mxu0 %v1342
      %v1441 = vpop.f32.mrb[0].mxu0
      %v1442 = vadd.f32 %v1330, %v1441
      %v1443 = vpop.f32.mrb[0].mxu0
      %v1444 = vpop.f32.mrb[0].mxu0
      %v1445 = vadd.f32 %v1330, %v1444
      %v1446 = vpop.f32.mrb[0].mxu0
      %1447 = vmatprep.mubr.bf16.mxu0 0
      %1448 = vmatmul.mubr.bf16.gmra.mrb[0].mxu0 %v1345
      %v1449 = vpop.f32.mrb[0].mxu0
      %v1450 = vadd.f32 %v1330, %v1449
      %v1451 = vpop.f32.mrb[0].mxu0
      %v1452 = vpop.f32.mrb[0].mxu0
      %v1453 = vadd.f32 %v1330, %v1452
      %v1454 = vpop.f32.mrb[0].mxu0
      %1455 = vmatprep.mubr.bf16.mxu0 0
      %1456 = vmatmul.mubr.bf16.gmra.mrb[0].mxu0 %v1348
      %v1457 = vpop.f32.mrb[0].mxu0
      %v1458 = vadd.f32 %v1330, %v1457
      %v1459 = vpop.f32.mrb[0].mxu0
      %v1460 = vpop.f32.mrb[0].mxu0
      %v1461 = vadd.f32 %v1330, %v1460
      %v1462 = vpop.f32.mrb[0].mxu0
      %1463 = vmatprep.mubr.bf16.mxu0 0
      %1464 = vmatmul.mubr.bf16.gmra.mrb[0].mxu0 %v1351
      %v1465 = vpop.f32.mrb[0].mxu0
      %v1466 = vadd.f32 %v1330, %v1465
      %v1467 = vpop.f32.mrb[0].mxu0
      %v1468 = vpop.f32.mrb[0].mxu0
      %v1469 = vadd.f32 %v1330, %v1468
      %v1470 = vpop.f32.mrb[0].mxu0
      %1471 = vmatprep.mubr.bf16.mxu0 0
      %1472 = vmatmul.mubr.bf16.gmra.mrb[0].mxu0 %v1354
      %v1473 = vpop.f32.mrb[0].mxu0
      %v1474 = vadd.f32 %v1330, %v1473
      %v1475 = vpop.f32.mrb[0].mxu0
      %v1476 = vpop.f32.mrb[0].mxu0
      %v1477 = vadd.f32 %v1330, %v1476
      %v1478 = vpop.f32.mrb[0].mxu0
      %1479 = vmatprep.mubr.bf16.mxu0 0
      %1480 = vmatmul.mubr.bf16.gmra.mrb[0].mxu0 %v1357
      %v1481 = vpop.f32.mrb[0].mxu0
      %v1482 = vadd.f32 %v1330, %v1481
      %v1483 = vpop.f32.mrb[0].mxu0
      %v1484 = vpop.f32.mrb[0].mxu0
      %v1485 = vadd.f32 %v1330, %v1484
      %v1486 = vpop.f32.mrb[0].mxu0
      %1487 = vmatprep.mubr.bf16.mxu0 0
      %1488 = vmatmul.mubr.bf16.gmra.mrb[0].mxu0 %v1360
      %v1489 = vpop.f32.mrb[0].mxu0
      %v1490 = vadd.f32 %v1330, %v1489
      %v1491 = vpop.f32.mrb[0].mxu0
      %v1492 = vpop.f32.mrb[0].mxu0
      %v1493 = vadd.f32 %v1330, %v1492
      %v1494 = vpop.f32.mrb[0].mxu0
      %1495 = vmatprep.mubr.bf16.mxu0 0
      %1496 = vmatmul.mubr.bf16.gmra.mrb[0].mxu0 %v1363
      %v1497 = vpop.f32.mrb[0].mxu0
      %v1498 = vadd.f32 %v1330, %v1497
      %v1499 = vpop.f32.mrb[0].mxu0
      %v1500 = vpop.f32.mrb[0].mxu0
      %v1501 = vadd.f32 %v1330, %v1500
      %v1502 = vpop.f32.mrb[0].mxu0
      %1503 = vmatprep.mubr.bf16.mxu0 0
      %1504 = vmatmul.mubr.bf16.gmra.mrb[0].mxu0 %v1366
      %v1505 = vpop.f32.mrb[0].mxu0
      %v1506 = vadd.f32 %v1330, %v1505
      %v1507 = vpop.f32.mrb[0].mxu0
      %v1508 = vpop.f32.mrb[0].mxu0
      %v1509 = vadd.f32 %v1330, %v1508
      %v1510 = vpop.f32.mrb[0].mxu0
      %1511 = vmatprep.mubr.bf16.mxu0 0
      %1512 = vmatmul.mubr.bf16.gmra.mrb[0].mxu0 %v1369
      %v1513 = vpop.f32.mrb[0].mxu0
      %v1514 = vadd.f32 %v1330, %v1513
      %v1515 = vpop.f32.mrb[0].mxu0
      %v1516 = vpop.f32.mrb[0].mxu0
      %v1517 = vadd.f32 %v1330, %v1516
      %v1518 = vpop.f32.mrb[0].mxu0
      %1519 = vmatprep.mubr.bf16.mxu0 0
      %1520 = vmatmul.mubr.bf16.gmra.mrb[0].mxu0 %v1372
      %v1521 = vpop.f32.mrb[0].mxu0
      %v1522 = vadd.f32 %v1330, %v1521
      %v1523 = vpop.f32.mrb[0].mxu0
      %v1524 = vpop.f32.mrb[0].mxu0
      %v1525 = vadd.f32 %v1330, %v1524
      %v1526 = vpop.f32.mrb[0].mxu0
      %1527 = vmatprep.mubr.bf16.mxu0 0
      %1528 = vmatmul.mubr.bf16.gmra.mrb[0].mxu0 %v1375
      %v1529 = vpop.f32.mrb[0].mxu0
      %v1530 = vadd.f32 %v1330, %v1529
      %v1531 = vpop.f32.mrb[0].mxu0
      %v1532 = vpop.f32.mrb[0].mxu0
      %v1533 = vadd.f32 %v1330, %v1532
      %v1534 = vpop.f32.mrb[0].mxu0
      %1535 = vmatprep.mubr.bf16.mxu0 0
      %1536 = vmatmul.mubr.bf16.gmra.mrb[0].mxu0 %v1378
      %v1537 = vpop.f32.mrb[0].mxu0
      %v1538 = vadd.f32 %v1330, %v1537
      %v1539 = vpop.f32.mrb[0].mxu0
      %v1540 = vpop.f32.mrb[0].mxu0
      %v1541 = vadd.f32 %v1330, %v1540
      %v1542 = vpop.f32.mrb[0].mxu0
      %1543 = vdwg.mxu0
      %v1544 = vsub.f32 0.0, %v1418
      %v1545 = vsub.f32 0.0, %v1421
      %v1546 = vsub.f32 0.0, %v1426
      %v1547 = vsub.f32 0.0, %v1429
      %v1548 = vsub.f32 0.0, %v1434
      %v1549 = vsub.f32 0.0, %v1437
      %v1550 = vsub.f32 0.0, %v1442
      %v1551 = vsub.f32 0.0, %v1445
      %v1552 = vsub.f32 0.0, %v1450
      %v1553 = vsub.f32 0.0, %v1453
      %v1554 = vsub.f32 0.0, %v1458
      %v1555 = vsub.f32 0.0, %v1461
      %v1556 = vsub.f32 0.0, %v1466
      %v1557 = vsub.f32 0.0, %v1469
      %v1558 = vsub.f32 0.0, %v1474
      %v1559 = vsub.f32 0.0, %v1477
      %v1560 = vsub.f32 0.0, %v1482
      %v1561 = vsub.f32 0.0, %v1485
      %v1562 = vsub.f32 0.0, %v1490
      %v1563 = vsub.f32 0.0, %v1493
      %v1564 = vsub.f32 0.0, %v1498
      %v1565 = vsub.f32 0.0, %v1501
      %v1566 = vsub.f32 0.0, %v1506
      %v1567 = vsub.f32 0.0, %v1509
      %v1568 = vsub.f32 0.0, %v1514
      %v1569 = vsub.f32 0.0, %v1517
      %v1570 = vsub.f32 0.0, %v1522
      %v1571 = vsub.f32 0.0, %v1525
      %v1572 = vsub.f32 0.0, %v1530
      %v1573 = vsub.f32 0.0, %v1533
      %v1574 = vsub.f32 0.0, %v1538
      %v1575 = vsub.f32 0.0, %v1541
      %v1576 = vmul.f32 %v1544, 1.442695
      %v1577 = vpow.pop %v1576
      %v1578 = vmul.f32 %v1545, 1.442695
      %v1579 = vpow.pop %v1578
      %v1580 = vmul.f32 %v1546, 1.442695
      %v1581 = vpow.pop %v1580
      %v1582 = vmul.f32 %v1547, 1.442695
      %v1583 = vpow.pop %v1582
      %v1584 = vmul.f32 %v1548, 1.442695
      %v1585 = vpow.pop %v1584
      %v1586 = vmul.f32 %v1549, 1.442695
      %v1587 = vpow.pop %v1586
      %v1588 = vmul.f32 %v1550, 1.442695
      %v1589 = vpow.pop %v1588
      %v1590 = vmul.f32 %v1551, 1.442695
      %v1591 = vpow.pop %v1590
      %v1592 = vmul.f32 %v1552, 1.442695
      %v1593 = vpow.pop %v1592
      %v1594 = vmul.f32 %v1553, 1.442695
      %v1595 = vpow.pop %v1594
      %v1596 = vmul.f32 %v1554, 1.442695
      %v1597 = vpow.pop %v1596
      %v1598 = vmul.f32 %v1555, 1.442695
      %v1599 = vpow.pop %v1598
      %v1600 = vmul.f32 %v1556, 1.442695
      %v1601 = vpow.pop %v1600
      %v1602 = vmul.f32 %v1557, 1.442695
      %v1603 = vpow.pop %v1602
      %v1604 = vmul.f32 %v1558, 1.442695
      %v1605 = vpow.pop %v1604
      %v1606 = vmul.f32 %v1559, 1.442695
      %v1607 = vpow.pop %v1606
      %v1608 = vmul.f32 %v1560, 1.442695
      %v1609 = vpow.pop %v1608
      %v1610 = vmul.f32 %v1561, 1.442695
      %v1611 = vpow.pop %v1610
      %v1612 = vmul.f32 %v1562, 1.442695
      %v1613 = vpow.pop %v1612
      %v1614 = vmul.f32 %v1563, 1.442695
      %v1615 = vpow.pop %v1614
      %v1616 = vmul.f32 %v1564, 1.442695
      %v1617 = vpow.pop %v1616
      %v1618 = vmul.f32 %v1565, 1.442695
      %v1619 = vpow.pop %v1618
      %v1620 = vmul.f32 %v1566, 1.442695
      %v1621 = vpow.pop %v1620
      %v1622 = vmul.f32 %v1567, 1.442695
      %v1623 = vpow.pop %v1622
      %v1624 = vmul.f32 %v1568, 1.442695
      %v1625 = vpow.pop %v1624
      %v1626 = vmul.f32 %v1569, 1.442695
      %v1627 = vpow.pop %v1626
      %v1628 = vmul.f32 %v1570, 1.442695
      %v1629 = vpow.pop %v1628
      %v1630 = vmul.f32 %v1571, 1.442695
      %v1631 = vpow.pop %v1630
      %v1632 = vmul.f32 %v1572, 1.442695
      %v1633 = vpow.pop %v1632
      %v1634 = vmul.f32 %v1573, 1.442695
      %v1635 = vpow.pop %v1634
      %v1636 = vmul.f32 %v1574, 1.442695
      %v1637 = vpow.pop %v1636
      %v1638 = vmul.f32 %v1575, 1.442695
      %v1639 = vpow.pop %v1638
      %v1640 = vadd.f32 %v1577, 1.0
      %v1641 = vadd.f32 %v1579, 1.0
      %v1642 = vadd.f32 %v1581, 1.0
      %v1643 = vadd.f32 %v1583, 1.0
      %v1644 = vadd.f32 %v1585, 1.0
      %v1645 = vadd.f32 %v1587, 1.0
      %v1646 = vadd.f32 %v1589, 1.0
      %v1647 = vadd.f32 %v1591, 1.0
      %v1648 = vadd.f32 %v1593, 1.0
      %v1649 = vadd.f32 %v1595, 1.0
      %v1650 = vadd.f32 %v1597, 1.0
      %v1651 = vadd.f32 %v1599, 1.0
      %v1652 = vadd.f32 %v1601, 1.0
      %v1653 = vadd.f32 %v1603, 1.0
      %v1654 = vadd.f32 %v1605, 1.0
      %v1655 = vadd.f32 %v1607, 1.0
      %v1656 = vadd.f32 %v1609, 1.0
      %v1657 = vadd.f32 %v1611, 1.0
      %v1658 = vadd.f32 %v1613, 1.0
      %v1659 = vadd.f32 %v1615, 1.0
      %v1660 = vadd.f32 %v1617, 1.0
      %v1661 = vadd.f32 %v1619, 1.0
      %v1662 = vadd.f32 %v1621, 1.0
      %v1663 = vadd.f32 %v1623, 1.0
      %v1664 = vadd.f32 %v1625, 1.0
      %v1665 = vadd.f32 %v1627, 1.0
      %v1666 = vadd.f32 %v1629, 1.0
      %v1667 = vadd.f32 %v1631, 1.0
      %v1668 = vadd.f32 %v1633, 1.0
      %v1669 = vadd.f32 %v1635, 1.0
      %v1670 = vadd.f32 %v1637, 1.0
      %v1671 = vadd.f32 %v1639, 1.0
      %v1672 = vrcp.pop %v1640
      %v1673 = vmul.f32 1.0, %v1672
      %v1674 = vrcp.pop %v1641
      %v1675 = vmul.f32 1.0, %v1674
      %v1676 = vrcp.pop %v1642
      %v1677 = vmul.f32 1.0, %v1676
      %v1678 = vrcp.pop %v1643
      %v1679 = vmul.f32 1.0, %v1678
      %v1680 = vrcp.pop %v1644
      %v1681 = vmul.f32 1.0, %v1680
      %v1682 = vrcp.pop %v1645
      %v1683 = vmul.f32 1.0, %v1682
      %v1684 = vrcp.pop %v1646
      %v1685 = vmul.f32 1.0, %v1684
      %v1686 = vrcp.pop %v1647
      %v1687 = vmul.f32 1.0, %v1686
      %v1688 = vrcp.pop %v1648
      %v1689 = vmul.f32 1.0, %v1688
      %v1690 = vrcp.pop %v1649
      %v1691 = vmul.f32 1.0, %v1690
      %v1692 = vrcp.pop %v1650
      %v1693 = vmul.f32 1.0, %v1692
      %v1694 = vrcp.pop %v1651
      %v1695 = vmul.f32 1.0, %v1694
      %v1696 = vrcp.pop %v1652
      %v1697 = vmul.f32 1.0, %v1696
      %v1698 = vrcp.pop %v1653
      %v1699 = vmul.f32 1.0, %v1698
      %v1700 = vrcp.pop %v1654
      %v1701 = vmul.f32 1.0, %v1700
      %v1702 = vrcp.pop %v1655
      %v1703 = vmul.f32 1.0, %v1702
      %v1704 = vrcp.pop %v1656
      %v1705 = vmul.f32 1.0, %v1704
      %v1706 = vrcp.pop %v1657
      %v1707 = vmul.f32 1.0, %v1706
      %v1708 = vrcp.pop %v1658
      %v1709 = vmul.f32 1.0, %v1708
      %v1710 = vrcp.pop %v1659
      %v1711 = vmul.f32 1.0, %v1710
      %v1712 = vrcp.pop %v1660
      %v1713 = vmul.f32 1.0, %v1712
      %v1714 = vrcp.pop %v1661
      %v1715 = vmul.f32 1.0, %v1714
      %v1716 = vrcp.pop %v1662
      %v1717 = vmul.f32 1.0, %v1716
      %v1718 = vrcp.pop %v1663
      %v1719 = vmul.f32 1.0, %v1718
      %v1720 = vrcp.pop %v1664
      %v1721 = vmul.f32 1.0, %v1720
      %v1722 = vrcp.pop %v1665
      %v1723 = vmul.f32 1.0, %v1722
      %v1724 = vrcp.pop %v1666
      %v1725 = vmul.f32 1.0, %v1724
      %v1726 = vrcp.pop %v1667
      %v1727 = vmul.f32 1.0, %v1726
      %v1728 = vrcp.pop %v1668
      %v1729 = vmul.f32 1.0, %v1728
      %v1730 = vrcp.pop %v1669
      %v1731 = vmul.f32 1.0, %v1730
      %v1732 = vrcp.pop %v1670
      %v1733 = vmul.f32 1.0, %v1732
      %v1734 = vrcp.pop %v1671
      %v1735 = vmul.f32 1.0, %v1734
      %v1736 = vmul.f32 %v1418, %v1673
      %v1737 = vmul.f32 %v1421, %v1675
      %v1738 = vmul.f32 %v1426, %v1677
      %v1739 = vmul.f32 %v1429, %v1679
      %v1740 = vmul.f32 %v1434, %v1681
      %v1741 = vmul.f32 %v1437, %v1683
      %v1742 = vmul.f32 %v1442, %v1685
      %v1743 = vmul.f32 %v1445, %v1687
      %v1744 = vmul.f32 %v1450, %v1689
      %v1745 = vmul.f32 %v1453, %v1691
      %v1746 = vmul.f32 %v1458, %v1693
      %v1747 = vmul.f32 %v1461, %v1695
      %v1748 = vmul.f32 %v1466, %v1697
      %v1749 = vmul.f32 %v1469, %v1699
      %v1750 = vmul.f32 %v1474, %v1701
      %v1751 = vmul.f32 %v1477, %v1703
      %v1752 = vmul.f32 %v1482, %v1705
      %v1753 = vmul.f32 %v1485, %v1707
      %v1754 = vmul.f32 %v1490, %v1709
      %v1755 = vmul.f32 %v1493, %v1711
      %v1756 = vmul.f32 %v1498, %v1713
      %v1757 = vmul.f32 %v1501, %v1715
      %v1758 = vmul.f32 %v1506, %v1717
      %v1759 = vmul.f32 %v1509, %v1719
      %v1760 = vmul.f32 %v1514, %v1721
      %v1761 = vmul.f32 %v1517, %v1723
      %v1762 = vmul.f32 %v1522, %v1725
      %v1763 = vmul.f32 %v1525, %v1727
      %v1764 = vmul.f32 %v1530, %v1729
      %v1765 = vmul.f32 %v1533, %v1731
      %v1766 = vmul.f32 %v1538, %v1733
      %v1767 = vmul.f32 %v1541, %v1735
      %vm1801 = vcmask 1040384
      %v1802 = vrot.slane 0.0, 7
      %v1803 = vsel %vm1801, %v1802, %v1802
      %v1804 = vrot.slane %v1736, 7
      %v1805 = vrot.slane %v1737, 7
      %v1806 = vsel %vm1801, %v1804, %v1805
      %v1807 = vrot.slane %v1738, 7
      %v1808 = vrot.slane %v1739, 7
      %v1809 = vsel %vm1801, %v1807, %v1808
      %v1810 = vrot.slane %v1740, 7
      %v1811 = vrot.slane %v1741, 7
      %v1812 = vsel %vm1801, %v1810, %v1811
      %v1813 = vrot.slane %v1742, 7
      %v1814 = vrot.slane %v1743, 7
      %v1815 = vsel %vm1801, %v1813, %v1814
      %v1816 = vrot.slane %v1744, 7
      %v1817 = vrot.slane %v1745, 7
      %v1818 = vsel %vm1801, %v1816, %v1817
      %v1819 = vrot.slane %v1746, 7
      %v1820 = vrot.slane %v1747, 7
      %v1821 = vsel %vm1801, %v1819, %v1820
      %v1822 = vrot.slane %v1748, 7
      %v1823 = vrot.slane %v1749, 7
      %v1824 = vsel %vm1801, %v1822, %v1823
      %v1825 = vrot.slane %v1750, 7
      %v1826 = vrot.slane %v1751, 7
      %v1827 = vsel %vm1801, %v1825, %v1826
      %v1828 = vrot.slane %v1752, 7
      %v1829 = vrot.slane %v1753, 7
      %v1830 = vsel %vm1801, %v1828, %v1829
      %v1831 = vrot.slane %v1754, 7
      %v1832 = vrot.slane %v1755, 7
      %v1833 = vsel %vm1801, %v1831, %v1832
      %v1834 = vrot.slane %v1756, 7
      %v1835 = vrot.slane %v1757, 7
      %v1836 = vsel %vm1801, %v1834, %v1835
      %v1837 = vrot.slane %v1758, 7
      %v1838 = vrot.slane %v1759, 7
      %v1839 = vsel %vm1801, %v1837, %v1838
      %v1840 = vrot.slane %v1760, 7
      %v1841 = vrot.slane %v1761, 7
      %v1842 = vsel %vm1801, %v1840, %v1841
      %v1843 = vrot.slane %v1762, 7
      %v1844 = vrot.slane %v1763, 7
      %v1845 = vsel %vm1801, %v1843, %v1844
      %v1846 = vrot.slane %v1764, 7
      %v1847 = vrot.slane %v1765, 7
      %v1848 = vsel %vm1801, %v1846, %v1847
      %v1849 = vrot.slane %v1766, 7
      %v1850 = vrot.slane %v1767, 7
      %v1851 = vsel %vm1801, %v1849, %v1850
      %v1902 = vsel %vm1801, 0.0, %v1802
      %v1903 = vsel %vm1801, 0.0, %v1804
      %v1904 = vsel %vm1801, 0.0, %v1807
      %v1905 = vsel %vm1801, 0.0, %v1810
      %v1906 = vsel %vm1801, 0.0, %v1813
      %v1907 = vsel %vm1801, 0.0, %v1816
      %v1908 = vsel %vm1801, 0.0, %v1819
      %v1909 = vsel %vm1801, 0.0, %v1822
      %v1910 = vsel %vm1801, 0.0, %v1825
      %v1911 = vsel %vm1801, 0.0, %v1828
      %v1912 = vsel %vm1801, 0.0, %v1831
      %v1913 = vsel %vm1801, 0.0, %v1834
      %v1914 = vsel %vm1801, 0.0, %v1837
      %v1915 = vsel %vm1801, 0.0, %v1840
      %v1916 = vsel %vm1801, 0.0, %v1843
      %v1917 = vsel %vm1801, 0.0, %v1846
      %v1918 = vsel %vm1801, 0.0, %v1849
      %v1919 = vsel %vm1801, %v1802, 0.0
      %v1920 = vsel %vm1801, %v1805, 0.0
      %v1921 = vsel %vm1801, %v1808, 0.0
      %v1922 = vsel %vm1801, %v1811, 0.0
      %v1923 = vsel %vm1801, %v1814, 0.0
      %v1924 = vsel %vm1801, %v1817, 0.0
      %v1925 = vsel %vm1801, %v1820, 0.0
      %v1926 = vsel %vm1801, %v1823, 0.0
      %v1927 = vsel %vm1801, %v1826, 0.0
      %v1928 = vsel %vm1801, %v1829, 0.0
      %v1929 = vsel %vm1801, %v1832, 0.0
      %v1930 = vsel %vm1801, %v1835, 0.0
      %v1931 = vsel %vm1801, %v1838, 0.0
      %v1932 = vsel %vm1801, %v1841, 0.0
      %v1933 = vsel %vm1801, %v1844, 0.0
      %v1934 = vsel %vm1801, %v1847, 0.0
      %v1935 = vsel %vm1801, %v1850, 0.0
      %v1936 = vld [vmem:[%s8] sm:$0x1]
      %v1938 = vlaneseq
      %v1939 = vshrl.u32 %v1938, 7
      %v1940 = vsub.s32 0, %v1939
      %v1941 = vrot.slane %v1936, %v1940
      %v1943 = vadd.f32 %v1941, 0.0
      %v1944 = vld [vmem:[%s7] sm:$0xf]
      %v1945 = vpack.c.bf16 %v1803, %v1902
      %v1946 = vpack.c.bf16 %v1806, %v1903
      %v1947 = vpack.c.bf16 %v1809, %v1904
      %v1948 = vpack.c.bf16 %v1812, %v1905
      %v1949 = vpack.c.bf16 %v1815, %v1906
      %v1950 = vpack.c.bf16 %v1818, %v1907
      %v1951 = vpack.c.bf16 %v1821, %v1908
      %v1952 = vpack.c.bf16 %v1824, %v1909
      %v1953 = vpack.c.bf16 %v1827, %v1910
      %v1954 = vpack.c.bf16 %v1830, %v1911
      %v1955 = vpack.c.bf16 %v1833, %v1912
      %v1956 = vpack.c.bf16 %v1836, %v1913
      %v1957 = vpack.c.bf16 %v1839, %v1914
      %v1958 = vpack.c.bf16 %v1842, %v1915
      %v1959 = vpack.c.bf16 %v1845, %v1916
      %v1960 = vpack.c.bf16 %v1848, %v1917
      %v1961 = vpack.c.bf16 %v1944, %v1944
      %v1963 = vsel %vm472, %v1945, 0
      %v1966 = vsel %vm472, %v1946, 0
      %v1969 = vsel %vm472, %v1947, 0
      %v1972 = vsel %vm472, %v1948, 0
      %v1975 = vsel %vm472, %v1949, 0
      %v1978 = vsel %vm472, %v1950, 0
      %v1981 = vsel %vm472, %v1951, 0
      %v1984 = vsel %vm472, %v1952, 0
      %v1987 = vsel %vm472, %v1953, 0
      %v1990 = vsel %vm472, %v1954, 0
      %v1993 = vsel %vm472, %v1955, 0
      %v1996 = vsel %vm472, %v1956, 0
      %v1999 = vsel %vm472, %v1957, 0
      %v2002 = vsel %vm472, %v1958, 0
      %v2005 = vsel %vm472, %v1959, 0
      %v2008 = vsel %vm472, %v1960, 0
      %v2011 = vsel %vm521, %v1961, 0
      %2013 = vmatprep.subr.bf16.mxu0 0
      %2014 = vmatpush1.bf16.msra.mxu0 %v2011
      %2015 = vmatprep.subr.bf16.mxu0 0
      %2016 = vmatpush1.bf16.msra.mxu0 0
      %2017 = vmatprep.subr.bf16.mxu0 0
      %2018 = vmatpush1.bf16.msra.mxu0 0
      %2019 = vmatprep.subr.bf16.mxu0 0
      %2020 = vmatpush1.bf16.msra.mxu0 0
      %2021 = vmatprep.subr.bf16.mxu0 0
      %2022 = vmatpush1.bf16.msra.mxu0 0
      %2023 = vmatprep.subr.bf16.mxu0 0
      %2024 = vmatpush1.bf16.msra.mxu0 0
      %2025 = vmatprep.subr.bf16.mxu0 0
      %2026 = vmatpush1.bf16.msra.mxu0 0
      %2027 = vmatprep.subr.bf16.mxu0 0
      %2028 = vmatpush1.bf16.msra.mxu0 0
      %2029 = vmatprep.subr.bf16.mxu0 0
      %2030 = vmatpush1.bf16.msra.mxu0 0
      %2031 = vmatprep.subr.bf16.mxu0 0
      %2032 = vmatpush1.bf16.msra.mxu0 0
      %2033 = vmatprep.subr.bf16.mxu0 0
      %2034 = vmatpush1.bf16.msra.mxu0 0
      %2035 = vmatprep.subr.bf16.mxu0 0
      %2036 = vmatpush1.bf16.msra.mxu0 0
      %2037 = vmatprep.subr.bf16.mxu0 0
      %2038 = vmatpush1.bf16.msra.mxu0 0
      %2039 = vmatprep.subr.bf16.mxu0 0
      %2040 = vmatpush1.bf16.msra.mxu0 0
      %2041 = vmatprep.subr.bf16.mxu0 0
      %2042 = vmatpush1.bf16.msra.mxu0 0
      %2043 = vmatprep.subr.bf16.mxu0 0
      %2044 = vmatpush1.bf16.msra.mxu0 0
      %2045 = vmatprep.mubr.bf16.mxu0 0
      %2046 = vmatmul.mubr.bf16.gmra.mrb[0].mxu0 %v1963
      %v2047 = vpop.f32.mrb[0].mxu0
      %v2048 = vadd.f32 0.0, %v2047
      %v2049 = vpop.f32.mrb[0].mxu0
      %v2050 = vpop.f32.mrb[0].mxu0
      %v2051 = vadd.f32 0.0, %v2050
      %v2052 = vpop.f32.mrb[0].mxu0
      %2053 = vmatprep.mubr.bf16.mxu0 0
      %2054 = vmatmul.mubr.bf16.gmra.mrb[0].mxu0 %v1966
      %v2055 = vpop.f32.mrb[0].mxu0
      %v2056 = vadd.f32 0.0, %v2055
      %v2057 = vpop.f32.mrb[0].mxu0
      %v2058 = vpop.f32.mrb[0].mxu0
      %v2059 = vadd.f32 0.0, %v2058
      %v2060 = vpop.f32.mrb[0].mxu0
      %2061 = vmatprep.mubr.bf16.mxu0 0
      %2062 = vmatmul.mubr.bf16.gmra.mrb[0].mxu0 %v1969
      %v2063 = vpop.f32.mrb[0].mxu0
      %v2064 = vadd.f32 0.0, %v2063
      %v2065 = vpop.f32.mrb[0].mxu0
      %v2066 = vpop.f32.mrb[0].mxu0
      %v2067 = vadd.f32 0.0, %v2066
      %v2068 = vpop.f32.mrb[0].mxu0
      %2069 = vmatprep.mubr.bf16.mxu0 0
      %2070 = vmatmul.mubr.bf16.gmra.mrb[0].mxu0 %v1972
      %v2071 = vpop.f32.mrb[0].mxu0
      %v2072 = vadd.f32 0.0, %v2071
      %v2073 = vpop.f32.mrb[0].mxu0
      %v2074 = vpop.f32.mrb[0].mxu0
      %v2075 = vadd.f32 0.0, %v2074
      %v2076 = vpop.f32.mrb[0].mxu0
      %2077 = vmatprep.mubr.bf16.mxu0 0
      %2078 = vmatmul.mubr.bf16.gmra.mrb[0].mxu0 %v1975
      %v2079 = vpop.f32.mrb[0].mxu0
      %v2080 = vadd.f32 0.0, %v2079
      %v2081 = vpop.f32.mrb[0].mxu0
      %v2082 = vpop.f32.mrb[0].mxu0
      %v2083 = vadd.f32 0.0, %v2082
      %v2084 = vpop.f32.mrb[0].mxu0
      %2085 = vmatprep.mubr.bf16.mxu0 0
      %2086 = vmatmul.mubr.bf16.gmra.mrb[0].mxu0 %v1978
      %v2087 = vpop.f32.mrb[0].mxu0
      %v2088 = vadd.f32 0.0, %v2087
      %v2089 = vpop.f32.mrb[0].mxu0
      %v2090 = vpop.f32.mrb[0].mxu0
      %v2091 = vadd.f32 0.0, %v2090
      %v2092 = vpop.f32.mrb[0].mxu0
      %2093 = vmatprep.mubr.bf16.mxu0 0
      %2094 = vmatmul.mubr.bf16.gmra.mrb[0].mxu0 %v1981
      %v2095 = vpop.f32.mrb[0].mxu0
      %v2096 = vadd.f32 0.0, %v2095
      %v2097 = vpop.f32.mrb[0].mxu0
      %v2098 = vpop.f32.mrb[0].mxu0
      %v2099 = vadd.f32 0.0, %v2098
      %v2100 = vpop.f32.mrb[0].mxu0
      %2101 = vmatprep.mubr.bf16.mxu0 0
      %2102 = vmatmul.mubr.bf16.gmra.mrb[0].mxu0 %v1984
      %v2103 = vpop.f32.mrb[0].mxu0
      %v2104 = vadd.f32 0.0, %v2103
      %v2105 = vpop.f32.mrb[0].mxu0
      %v2106 = vpop.f32.mrb[0].mxu0
      %v2107 = vadd.f32 0.0, %v2106
      %v2108 = vpop.f32.mrb[0].mxu0
      %2109 = vmatprep.mubr.bf16.mxu0 0
      %2110 = vmatmul.mubr.bf16.gmra.mrb[0].mxu0 %v1987
      %v2111 = vpop.f32.mrb[0].mxu0
      %v2112 = vadd.f32 0.0, %v2111
      %v2113 = vpop.f32.mrb[0].mxu0
      %v2114 = vpop.f32.mrb[0].mxu0
      %v2115 = vadd.f32 0.0, %v2114
      %v2116 = vpop.f32.mrb[0].mxu0
      %2117 = vmatprep.mubr.bf16.mxu0 0
      %2118 = vmatmul.mubr.bf16.gmra.mrb[0].mxu0 %v1990
      %v2119 = vpop.f32.mrb[0].mxu0
      %v2120 = vadd.f32 0.0, %v2119
      %v2121 = vpop.f32.mrb[0].mxu0
      %v2122 = vpop.f32.mrb[0].mxu0
      %v2123 = vadd.f32 0.0, %v2122
      %v2124 = vpop.f32.mrb[0].mxu0
      %2125 = vmatprep.mubr.bf16.mxu0 0
      %2126 = vmatmul.mubr.bf16.gmra.mrb[0].mxu0 %v1993
      %v2127 = vpop.f32.mrb[0].mxu0
      %v2128 = vadd.f32 0.0, %v2127
      %v2129 = vpop.f32.mrb[0].mxu0
      %v2130 = vpop.f32.mrb[0].mxu0
      %v2131 = vadd.f32 0.0, %v2130
      %v2132 = vpop.f32.mrb[0].mxu0
      %2133 = vmatprep.mubr.bf16.mxu0 0
      %2134 = vmatmul.mubr.bf16.gmra.mrb[0].mxu0 %v1996
      %v2135 = vpop.f32.mrb[0].mxu0
      %v2136 = vadd.f32 0.0, %v2135
      %v2137 = vpop.f32.mrb[0].mxu0
      %v2138 = vpop.f32.mrb[0].mxu0
      %v2139 = vadd.f32 0.0, %v2138
      %v2140 = vpop.f32.mrb[0].mxu0
      %2141 = vmatprep.mubr.bf16.mxu0 0
      %2142 = vmatmul.mubr.bf16.gmra.mrb[0].mxu0 %v1999
      %v2143 = vpop.f32.mrb[0].mxu0
      %v2144 = vadd.f32 0.0, %v2143
      %v2145 = vpop.f32.mrb[0].mxu0
      %v2146 = vpop.f32.mrb[0].mxu0
      %v2147 = vadd.f32 0.0, %v2146
      %v2148 = vpop.f32.mrb[0].mxu0
      %2149 = vmatprep.mubr.bf16.mxu0 0
      %2150 = vmatmul.mubr.bf16.gmra.mrb[0].mxu0 %v2002
      %v2151 = vpop.f32.mrb[0].mxu0
      %v2152 = vadd.f32 0.0, %v2151
      %v2153 = vpop.f32.mrb[0].mxu0
      %v2154 = vpop.f32.mrb[0].mxu0
      %v2155 = vadd.f32 0.0, %v2154
      %v2156 = vpop.f32.mrb[0].mxu0
      %2157 = vmatprep.mubr.bf16.mxu0 0
      %2158 = vmatmul.mubr.bf16.gmra.mrb[0].mxu0 %v2005
      %v2159 = vpop.f32.mrb[0].mxu0
      %v2160 = vadd.f32 0.0, %v2159
      %v2161 = vpop.f32.mrb[0].mxu0
      %v2162 = vpop.f32.mrb[0].mxu0
      %v2163 = vadd.f32 0.0, %v2162
      %v2164 = vpop.f32.mrb[0].mxu0
      %2165 = vmatprep.mubr.bf16.mxu0 0
      %2166 = vmatmul.mubr.bf16.gmra.mrb[0].mxu0 %v2008
      %v2167 = vpop.f32.mrb[0].mxu0
      %v2168 = vadd.f32 0.0, %v2167
      %v2169 = vpop.f32.mrb[0].mxu0
      %v2170 = vpop.f32.mrb[0].mxu0
      %v2171 = vadd.f32 0.0, %v2170
      %v2172 = vpop.f32.mrb[0].mxu0
      %2173 = vdwg.mxu0
      %v2174 = vadd.f32 %v1943, %v2048
      %v2175 = vadd.f32 %v1943, %v2051
      %v2176 = vadd.f32 %v1943, %v2056
      %v2177 = vadd.f32 %v1943, %v2059
      %v2178 = vadd.f32 %v1943, %v2064
      %v2179 = vadd.f32 %v1943, %v2067
      %v2180 = vadd.f32 %v1943, %v2072
      %v2181 = vadd.f32 %v1943, %v2075
      %v2182 = vadd.f32 %v1943, %v2080
      %v2183 = vadd.f32 %v1943, %v2083
      %v2184 = vadd.f32 %v1943, %v2088
      %v2185 = vadd.f32 %v1943, %v2091
      %v2186 = vadd.f32 %v1943, %v2096
      %v2187 = vadd.f32 %v1943, %v2099
      %v2188 = vadd.f32 %v1943, %v2104
      %v2189 = vadd.f32 %v1943, %v2107
      %v2190 = vadd.f32 %v1943, %v2112
      %v2191 = vadd.f32 %v1943, %v2115
      %v2192 = vadd.f32 %v1943, %v2120
      %v2193 = vadd.f32 %v1943, %v2123
      %v2194 = vadd.f32 %v1943, %v2128
      %v2195 = vadd.f32 %v1943, %v2131
      %v2196 = vadd.f32 %v1943, %v2136
      %v2197 = vadd.f32 %v1943, %v2139
      %v2198 = vadd.f32 %v1943, %v2144
      %v2199 = vadd.f32 %v1943, %v2147
      %v2200 = vadd.f32 %v1943, %v2152
      %v2201 = vadd.f32 %v1943, %v2155
      %v2202 = vadd.f32 %v1943, %v2160
      %v2203 = vadd.f32 %v1943, %v2163
      %v2204 = vadd.f32 %v1943, %v2168
      %v2205 = vadd.f32 %v1943, %v2171
      %vm2238 = vcmask 1046528
      %v2239 = vrot.slane %v1902, 1
      %v2240 = vrot.slane %v1803, 1
      %v2241 = vsel %vm2238, %v2239, %v2240
      %v2242 = vrot.slane %v1919, 1
      %v2243 = vsel %vm2238, %v2240, %v2242
      %v2244 = vrot.slane %v1903, 1
      %v2245 = vrot.slane %v1806, 1
      %v2246 = vsel %vm2238, %v2244, %v2245
      %v2247 = vrot.slane %v1920, 1
      %v2248 = vsel %vm2238, %v2245, %v2247
      %v2249 = vrot.slane %v1904, 1
      %v2250 = vrot.slane %v1809, 1
      %v2251 = vsel %vm2238, %v2249, %v2250
      %v2252 = vrot.slane %v1921, 1
      %v2253 = vsel %vm2238, %v2250, %v2252
      %v2254 = vrot.slane %v1905, 1
      %v2255 = vrot.slane %v1812, 1
      %v2256 = vsel %vm2238, %v2254, %v2255
      %v2257 = vrot.slane %v1922, 1
      %v2258 = vsel %vm2238, %v2255, %v2257
      %v2259 = vrot.slane %v1906, 1
      %v2260 = vrot.slane %v1815, 1
      %v2261 = vsel %vm2238, %v2259, %v2260
      %v2262 = vrot.slane %v1923, 1
      %v2263 = vsel %vm2238, %v2260, %v2262
      %v2264 = vrot.slane %v1907, 1
      %v2265 = vrot.slane %v1818, 1
      %v2266 = vsel %vm2238, %v2264, %v2265
      %v2267 = vrot.slane %v1924, 1
      %v2268 = vsel %vm2238, %v2265, %v2267
      %v2269 = vrot.slane %v1908, 1
      %v2270 = vrot.slane %v1821, 1
      %v2271 = vsel %vm2238, %v2269, %v2270
      %v2272 = vrot.slane %v1925, 1
      %v2273 = vsel %vm2238, %v2270, %v2272
      %v2274 = vrot.slane %v1909, 1
      %v2275 = vrot.slane %v1824, 1
      %v2276 = vsel %vm2238, %v2274, %v2275
      %v2277 = vrot.slane %v1926, 1
      %v2278 = vsel %vm2238, %v2275, %v2277
      %v2279 = vrot.slane %v1910, 1
      %v2280 = vrot.slane %v1827, 1
      %v2281 = vsel %vm2238, %v2279, %v2280
      %v2282 = vrot.slane %v1927, 1
      %v2283 = vsel %vm2238, %v2280, %v2282
      %v2284 = vrot.slane %v1911, 1
      %v2285 = vrot.slane %v1830, 1
      %v2286 = vsel %vm2238, %v2284, %v2285
      %v2287 = vrot.slane %v1928, 1
      %v2288 = vsel %vm2238, %v2285, %v2287
      %v2289 = vrot.slane %v1912, 1
      %v2290 = vrot.slane %v1833, 1
      %v2291 = vsel %vm2238, %v2289, %v2290
      %v2292 = vrot.slane %v1929, 1
      %v2293 = vsel %vm2238, %v2290, %v2292
      %v2294 = vrot.slane %v1913, 1
      %v2295 = vrot.slane %v1836, 1
      %v2296 = vsel %vm2238, %v2294, %v2295
      %v2297 = vrot.slane %v1930, 1
      %v2298 = vsel %vm2238, %v2295, %v2297
      %v2299 = vrot.slane %v1914, 1
      %v2300 = vrot.slane %v1839, 1
      %v2301 = vsel %vm2238, %v2299, %v2300
      %v2302 = vrot.slane %v1931, 1
      %v2303 = vsel %vm2238, %v2300, %v2302
      %v2304 = vrot.slane %v1915, 1
      %v2305 = vrot.slane %v1842, 1
      %v2306 = vsel %vm2238, %v2304, %v2305
      %v2307 = vrot.slane %v1932, 1
      %v2308 = vsel %vm2238, %v2305, %v2307
      %v2309 = vrot.slane %v1916, 1
      %v2310 = vrot.slane %v1845, 1
      %v2311 = vsel %vm2238, %v2309, %v2310
      %v2312 = vrot.slane %v1933, 1
      %v2313 = vsel %vm2238, %v2310, %v2312
      %v2314 = vrot.slane %v1917, 1
      %v2315 = vrot.slane %v1848, 1
      %v2316 = vsel %vm2238, %v2314, %v2315
      %v2317 = vrot.slane %v1934, 1
      %v2318 = vsel %vm2238, %v2315, %v2317
      %s2351 = scalar_lea.vmem %s7, 4
      %v2352 = vld [vmem:[%s2351] sm:$0xf]
      %v2353 = vpack.c.bf16 %v2243, %v2241
      %v2354 = vpack.c.bf16 %v2248, %v2246
      %v2355 = vpack.c.bf16 %v2253, %v2251
      %v2356 = vpack.c.bf16 %v2258, %v2256
      %v2357 = vpack.c.bf16 %v2263, %v2261
      %v2358 = vpack.c.bf16 %v2268, %v2266
      %v2359 = vpack.c.bf16 %v2273, %v2271
      %v2360 = vpack.c.bf16 %v2278, %v2276
      %v2361 = vpack.c.bf16 %v2283, %v2281
      %v2362 = vpack.c.bf16 %v2288, %v2286
      %v2363 = vpack.c.bf16 %v2293, %v2291
      %v2364 = vpack.c.bf16 %v2298, %v2296
      %v2365 = vpack.c.bf16 %v2303, %v2301
      %v2366 = vpack.c.bf16 %v2308, %v2306
      %v2367 = vpack.c.bf16 %v2313, %v2311
      %v2368 = vpack.c.bf16 %v2318, %v2316
      %v2369 = vpack.c.bf16 %v2352, %v2352
      %v2371 = vsel %vm472, %v2353, 0
      %v2374 = vsel %vm472, %v2354, 0
      %v2377 = vsel %vm472, %v2355, 0
      %v2380 = vsel %vm472, %v2356, 0
      %v2383 = vsel %vm472, %v2357, 0
      %v2386 = vsel %vm472, %v2358, 0
      %v2389 = vsel %vm472, %v2359, 0
      %v2392 = vsel %vm472, %v2360, 0
      %v2395 = vsel %vm472, %v2361, 0
      %v2398 = vsel %vm472, %v2362, 0
      %v2401 = vsel %vm472, %v2363, 0
      %v2404 = vsel %vm472, %v2364, 0
      %v2407 = vsel %vm472, %v2365, 0
      %v2410 = vsel %vm472, %v2366, 0
      %v2413 = vsel %vm472, %v2367, 0
      %v2416 = vsel %vm472, %v2368, 0
      %v2419 = vsel %vm521, %v2369, 0
      %2421 = vmatprep.subr.bf16.mxu0 0
      %2422 = vmatpush1.bf16.msra.mxu0 %v2419
      %2423 = vmatprep.subr.bf16.mxu0 0
      %2424 = vmatpush1.bf16.msra.mxu0 0
      %2425 = vmatprep.subr.bf16.mxu0 0
      %2426 = vmatpush1.bf16.msra.mxu0 0
      %2427 = vmatprep.subr.bf16.mxu0 0
      %2428 = vmatpush1.bf16.msra.mxu0 0
      %2429 = vmatprep.subr.bf16.mxu0 0
      %2430 = vmatpush1.bf16.msra.mxu0 0
      %2431 = vmatprep.subr.bf16.mxu0 0
      %2432 = vmatpush1.bf16.msra.mxu0 0
      %2433 = vmatprep.subr.bf16.mxu0 0
      %2434 = vmatpush1.bf16.msra.mxu0 0
      %2435 = vmatprep.subr.bf16.mxu0 0
      %2436 = vmatpush1.bf16.msra.mxu0 0
      %2437 = vmatprep.subr.bf16.mxu0 0
      %2438 = vmatpush1.bf16.msra.mxu0 0
      %2439 = vmatprep.subr.bf16.mxu0 0
      %2440 = vmatpush1.bf16.msra.mxu0 0
      %2441 = vmatprep.subr.bf16.mxu0 0
      %2442 = vmatpush1.bf16.msra.mxu0 0
      %2443 = vmatprep.subr.bf16.mxu0 0
      %2444 = vmatpush1.bf16.msra.mxu0 0
      %2445 = vmatprep.subr.bf16.mxu0 0
      %2446 = vmatpush1.bf16.msra.mxu0 0
      %2447 = vmatprep.subr.bf16.mxu0 0
      %2448 = vmatpush1.bf16.msra.mxu0 0
      %2449 = vmatprep.subr.bf16.mxu0 0
      %2450 = vmatpush1.bf16.msra.mxu0 0
      %2451 = vmatprep.subr.bf16.mxu0 0
      %2452 = vmatpush1.bf16.msra.mxu0 0
      %2453 = vmatprep.mubr.bf16.mxu0 0
      %2454 = vmatmul.mubr.bf16.gmra.mrb[0].mxu0 %v2371
      %v2455 = vpop.f32.mrb[0].mxu0
      %v2456 = vadd.f32 0.0, %v2455
      %v2457 = vpop.f32.mrb[0].mxu0
      %v2458 = vpop.f32.mrb[0].mxu0
      %v2459 = vadd.f32 0.0, %v2458
      %v2460 = vpop.f32.mrb[0].mxu0
      %2461 = vmatprep.mubr.bf16.mxu0 0
      %2462 = vmatmul.mubr.bf16.gmra.mrb[0].mxu0 %v2374
      %v2463 = vpop.f32.mrb[0].mxu0
      %v2464 = vadd.f32 0.0, %v2463
      %v2465 = vpop.f32.mrb[0].mxu0
      %v2466 = vpop.f32.mrb[0].mxu0
      %v2467 = vadd.f32 0.0, %v2466
      %v2468 = vpop.f32.mrb[0].mxu0
      %2469 = vmatprep.mubr.bf16.mxu0 0
      %2470 = vmatmul.mubr.bf16.gmra.mrb[0].mxu0 %v2377
      %v2471 = vpop.f32.mrb[0].mxu0
      %v2472 = vadd.f32 0.0, %v2471
      %v2473 = vpop.f32.mrb[0].mxu0
      %v2474 = vpop.f32.mrb[0].mxu0
      %v2475 = vadd.f32 0.0, %v2474
      %v2476 = vpop.f32.mrb[0].mxu0
      %2477 = vmatprep.mubr.bf16.mxu0 0
      %2478 = vmatmul.mubr.bf16.gmra.mrb[0].mxu0 %v2380
      %v2479 = vpop.f32.mrb[0].mxu0
      %v2480 = vadd.f32 0.0, %v2479
      %v2481 = vpop.f32.mrb[0].mxu0
      %v2482 = vpop.f32.mrb[0].mxu0
      %v2483 = vadd.f32 0.0, %v2482
      %v2484 = vpop.f32.mrb[0].mxu0
      %2485 = vmatprep.mubr.bf16.mxu0 0
      %2486 = vmatmul.mubr.bf16.gmra.mrb[0].mxu0 %v2383
      %v2487 = vpop.f32.mrb[0].mxu0
      %v2488 = vadd.f32 0.0, %v2487
      %v2489 = vpop.f32.mrb[0].mxu0
      %v2490 = vpop.f32.mrb[0].mxu0
      %v2491 = vadd.f32 0.0, %v2490
      %v2492 = vpop.f32.mrb[0].mxu0
      %2493 = vmatprep.mubr.bf16.mxu0 0
      %2494 = vmatmul.mubr.bf16.gmra.mrb[0].mxu0 %v2386
      %v2495 = vpop.f32.mrb[0].mxu0
      %v2496 = vadd.f32 0.0, %v2495
      %v2497 = vpop.f32.mrb[0].mxu0
      %v2498 = vpop.f32.mrb[0].mxu0
      %v2499 = vadd.f32 0.0, %v2498
      %v2500 = vpop.f32.mrb[0].mxu0
      %2501 = vmatprep.mubr.bf16.mxu0 0
      %2502 = vmatmul.mubr.bf16.gmra.mrb[0].mxu0 %v2389
      %v2503 = vpop.f32.mrb[0].mxu0
      %v2504 = vadd.f32 0.0, %v2503
      %v2505 = vpop.f32.mrb[0].mxu0
      %v2506 = vpop.f32.mrb[0].mxu0
      %v2507 = vadd.f32 0.0, %v2506
      %v2508 = vpop.f32.mrb[0].mxu0
      %2509 = vmatprep.mubr.bf16.mxu0 0
      %2510 = vmatmul.mubr.bf16.gmra.mrb[0].mxu0 %v2392
      %v2511 = vpop.f32.mrb[0].mxu0
      %v2512 = vadd.f32 0.0, %v2511
      %v2513 = vpop.f32.mrb[0].mxu0
      %v2514 = vpop.f32.mrb[0].mxu0
      %v2515 = vadd.f32 0.0, %v2514
      %v2516 = vpop.f32.mrb[0].mxu0
      %2517 = vmatprep.mubr.bf16.mxu0 0
      %2518 = vmatmul.mubr.bf16.gmra.mrb[0].mxu0 %v2395
      %v2519 = vpop.f32.mrb[0].mxu0
      %v2520 = vadd.f32 0.0, %v2519
      %v2521 = vpop.f32.mrb[0].mxu0
      %v2522 = vpop.f32.mrb[0].mxu0
      %v2523 = vadd.f32 0.0, %v2522
      %v2524 = vpop.f32.mrb[0].mxu0
      %2525 = vmatprep.mubr.bf16.mxu0 0
      %2526 = vmatmul.mubr.bf16.gmra.mrb[0].mxu0 %v2398
      %v2527 = vpop.f32.mrb[0].mxu0
      %v2528 = vadd.f32 0.0, %v2527
      %v2529 = vpop.f32.mrb[0].mxu0
      %v2530 = vpop.f32.mrb[0].mxu0
      %v2531 = vadd.f32 0.0, %v2530
      %v2532 = vpop.f32.mrb[0].mxu0
      %2533 = vmatprep.mubr.bf16.mxu0 0
      %2534 = vmatmul.mubr.bf16.gmra.mrb[0].mxu0 %v2401
      %v2535 = vpop.f32.mrb[0].mxu0
      %v2536 = vadd.f32 0.0, %v2535
      %v2537 = vpop.f32.mrb[0].mxu0
      %v2538 = vpop.f32.mrb[0].mxu0
      %v2539 = vadd.f32 0.0, %v2538
      %v2540 = vpop.f32.mrb[0].mxu0
      %2541 = vmatprep.mubr.bf16.mxu0 0
      %2542 = vmatmul.mubr.bf16.gmra.mrb[0].mxu0 %v2404
      %v2543 = vpop.f32.mrb[0].mxu0
      %v2544 = vadd.f32 0.0, %v2543
      %v2545 = vpop.f32.mrb[0].mxu0
      %v2546 = vpop.f32.mrb[0].mxu0
      %v2547 = vadd.f32 0.0, %v2546
      %v2548 = vpop.f32.mrb[0].mxu0
      %2549 = vmatprep.mubr.bf16.mxu0 0
      %2550 = vmatmul.mubr.bf16.gmra.mrb[0].mxu0 %v2407
      %v2551 = vpop.f32.mrb[0].mxu0
      %v2552 = vadd.f32 0.0, %v2551
      %v2553 = vpop.f32.mrb[0].mxu0
      %v2554 = vpop.f32.mrb[0].mxu0
      %v2555 = vadd.f32 0.0, %v2554
      %v2556 = vpop.f32.mrb[0].mxu0
      %2557 = vmatprep.mubr.bf16.mxu0 0
      %2558 = vmatmul.mubr.bf16.gmra.mrb[0].mxu0 %v2410
      %v2559 = vpop.f32.mrb[0].mxu0
      %v2560 = vadd.f32 0.0, %v2559
      %v2561 = vpop.f32.mrb[0].mxu0
      %v2562 = vpop.f32.mrb[0].mxu0
      %v2563 = vadd.f32 0.0, %v2562
      %v2564 = vpop.f32.mrb[0].mxu0
      %2565 = vmatprep.mubr.bf16.mxu0 0
      %2566 = vmatmul.mubr.bf16.gmra.mrb[0].mxu0 %v2413
      %v2567 = vpop.f32.mrb[0].mxu0
      %v2568 = vadd.f32 0.0, %v2567
      %v2569 = vpop.f32.mrb[0].mxu0
      %v2570 = vpop.f32.mrb[0].mxu0
      %v2571 = vadd.f32 0.0, %v2570
      %v2572 = vpop.f32.mrb[0].mxu0
      %2573 = vmatprep.mubr.bf16.mxu0 0
      %2574 = vmatmul.mubr.bf16.gmra.mrb[0].mxu0 %v2416
      %v2575 = vpop.f32.mrb[0].mxu0
      %v2576 = vadd.f32 0.0, %v2575
      %v2577 = vpop.f32.mrb[0].mxu0
      %v2578 = vpop.f32.mrb[0].mxu0
      %v2579 = vadd.f32 0.0, %v2578
      %v2580 = vpop.f32.mrb[0].mxu0
      %2581 = vdwg.mxu0
      %v2582 = vadd.f32 %v2174, %v2456
      %v2583 = vadd.f32 %v2175, %v2459
      %v2584 = vadd.f32 %v2176, %v2464
      %v2585 = vadd.f32 %v2177, %v2467
      %v2586 = vadd.f32 %v2178, %v2472
      %v2587 = vadd.f32 %v2179, %v2475
      %v2588 = vadd.f32 %v2180, %v2480
      %v2589 = vadd.f32 %v2181, %v2483
      %v2590 = vadd.f32 %v2182, %v2488
      %v2591 = vadd.f32 %v2183, %v2491
      %v2592 = vadd.f32 %v2184, %v2496
      %v2593 = vadd.f32 %v2185, %v2499
      %v2594 = vadd.f32 %v2186, %v2504
      %v2595 = vadd.f32 %v2187, %v2507
      %v2596 = vadd.f32 %v2188, %v2512
      %v2597 = vadd.f32 %v2189, %v2515
      %v2598 = vadd.f32 %v2190, %v2520
      %v2599 = vadd.f32 %v2191, %v2523
      %v2600 = vadd.f32 %v2192, %v2528
      %v2601 = vadd.f32 %v2193, %v2531
      %v2602 = vadd.f32 %v2194, %v2536
      %v2603 = vadd.f32 %v2195, %v2539
      %v2604 = vadd.f32 %v2196, %v2544
      %v2605 = vadd.f32 %v2197, %v2547
      %v2606 = vadd.f32 %v2198, %v2552
      %v2607 = vadd.f32 %v2199, %v2555
      %v2608 = vadd.f32 %v2200, %v2560
      %v2609 = vadd.f32 %v2201, %v2563
      %v2610 = vadd.f32 %v2202, %v2568
      %v2611 = vadd.f32 %v2203, %v2571
      %v2612 = vadd.f32 %v2204, %v2576
      %v2613 = vadd.f32 %v2205, %v2579
      %vm2614 = vcmask 1045504
      %v2615 = vrot.slane %v1902, 2
      %v2616 = vrot.slane %v1803, 2
      %v2617 = vsel %vm2614, %v2615, %v2616
      %v2618 = vrot.slane %v1919, 2
      %v2619 = vsel %vm2614, %v2616, %v2618
      %v2620 = vrot.slane %v1903, 2
      %v2621 = vrot.slane %v1806, 2
      %v2622 = vsel %vm2614, %v2620, %v2621
      %v2623 = vrot.slane %v1920, 2
      %v2624 = vsel %vm2614, %v2621, %v2623
      %v2625 = vrot.slane %v1904, 2
      %v2626 = vrot.slane %v1809, 2
      %v2627 = vsel %vm2614, %v2625, %v2626
      %v2628 = vrot.slane %v1921, 2
      %v2629 = vsel %vm2614, %v2626, %v2628
      %v2630 = vrot.slane %v1905, 2
      %v2631 = vrot.slane %v1812, 2
      %v2632 = vsel %vm2614, %v2630, %v2631
      %v2633 = vrot.slane %v1922, 2
      %v2634 = vsel %vm2614, %v2631, %v2633
      %v2635 = vrot.slane %v1906, 2
      %v2636 = vrot.slane %v1815, 2
      %v2637 = vsel %vm2614, %v2635, %v2636
      %v2638 = vrot.slane %v1923, 2
      %v2639 = vsel %vm2614, %v2636, %v2638
      %v2640 = vrot.slane %v1907, 2
      %v2641 = vrot.slane %v1818, 2
      %v2642 = vsel %vm2614, %v2640, %v2641
      %v2643 = vrot.slane %v1924, 2
      %v2644 = vsel %vm2614, %v2641, %v2643
      %v2645 = vrot.slane %v1908, 2
      %v2646 = vrot.slane %v1821, 2
      %v2647 = vsel %vm2614, %v2645, %v2646
      %v2648 = vrot.slane %v1925, 2
      %v2649 = vsel %vm2614, %v2646, %v2648
      %v2650 = vrot.slane %v1909, 2
      %v2651 = vrot.slane %v1824, 2
      %v2652 = vsel %vm2614, %v2650, %v2651
      %v2653 = vrot.slane %v1926, 2
      %v2654 = vsel %vm2614, %v2651, %v2653
      %v2655 = vrot.slane %v1910, 2
      %v2656 = vrot.slane %v1827, 2
      %v2657 = vsel %vm2614, %v2655, %v2656
      %v2658 = vrot.slane %v1927, 2
      %v2659 = vsel %vm2614, %v2656, %v2658
      %v2660 = vrot.slane %v1911, 2
      %v2661 = vrot.slane %v1830, 2
      %v2662 = vsel %vm2614, %v2660, %v2661
      %v2663 = vrot.slane %v1928, 2
      %v2664 = vsel %vm2614, %v2661, %v2663
      %v2665 = vrot.slane %v1912, 2
      %v2666 = vrot.slane %v1833, 2
      %v2667 = vsel %vm2614, %v2665, %v2666
      %v2668 = vrot.slane %v1929, 2
      %v2669 = vsel %vm2614, %v2666, %v2668
      %v2670 = vrot.slane %v1913, 2
      %v2671 = vrot.slane %v1836, 2
      %v2672 = vsel %vm2614, %v2670, %v2671
      %v2673 = vrot.slane %v1930, 2
      %v2674 = vsel %vm2614, %v2671, %v2673
      %v2675 = vrot.slane %v1914, 2
      %v2676 = vrot.slane %v1839, 2
      %v2677 = vsel %vm2614, %v2675, %v2676
      %v2678 = vrot.slane %v1931, 2
      %v2679 = vsel %vm2614, %v2676, %v2678
      %v2680 = vrot.slane %v1915, 2
      %v2681 = vrot.slane %v1842, 2
      %v2682 = vsel %vm2614, %v2680, %v2681
      %v2683 = vrot.slane %v1932, 2
      %v2684 = vsel %vm2614, %v2681, %v2683
      %v2685 = vrot.slane %v1916, 2
      %v2686 = vrot.slane %v1845, 2
      %v2687 = vsel %vm2614, %v2685, %v2686
      %v2688 = vrot.slane %v1933, 2
      %v2689 = vsel %vm2614, %v2686, %v2688
      %v2690 = vrot.slane %v1917, 2
      %v2691 = vrot.slane %v1848, 2
      %v2692 = vsel %vm2614, %v2690, %v2691
      %v2693 = vrot.slane %v1934, 2
      %v2694 = vsel %vm2614, %v2691, %v2693
      %s2727 = scalar_lea.vmem %s7, 8
      %v2728 = vld [vmem:[%s2727] sm:$0xf]
      %v2729 = vpack.c.bf16 %v2619, %v2617
      %v2730 = vpack.c.bf16 %v2624, %v2622
      %v2731 = vpack.c.bf16 %v2629, %v2627
      %v2732 = vpack.c.bf16 %v2634, %v2632
      %v2733 = vpack.c.bf16 %v2639, %v2637
      %v2734 = vpack.c.bf16 %v2644, %v2642
      %v2735 = vpack.c.bf16 %v2649, %v2647
      %v2736 = vpack.c.bf16 %v2654, %v2652
      %v2737 = vpack.c.bf16 %v2659, %v2657
      %v2738 = vpack.c.bf16 %v2664, %v2662
      %v2739 = vpack.c.bf16 %v2669, %v2667
      %v2740 = vpack.c.bf16 %v2674, %v2672
      %v2741 = vpack.c.bf16 %v2679, %v2677
      %v2742 = vpack.c.bf16 %v2684, %v2682
      %v2743 = vpack.c.bf16 %v2689, %v2687
      %v2744 = vpack.c.bf16 %v2694, %v2692
      %v2745 = vpack.c.bf16 %v2728, %v2728
      %v2747 = vsel %vm472, %v2729, 0
      %v2750 = vsel %vm472, %v2730, 0
      %v2753 = vsel %vm472, %v2731, 0
      %v2756 = vsel %vm472, %v2732, 0
      %v2759 = vsel %vm472, %v2733, 0
      %v2762 = vsel %vm472, %v2734, 0
      %v2765 = vsel %vm472, %v2735, 0
      %v2768 = vsel %vm472, %v2736, 0
      %v2771 = vsel %vm472, %v2737, 0
      %v2774 = vsel %vm472, %v2738, 0
      %v2777 = vsel %vm472, %v2739, 0
      %v2780 = vsel %vm472, %v2740, 0
      %v2783 = vsel %vm472, %v2741, 0
      %v2786 = vsel %vm472, %v2742, 0
      %v2789 = vsel %vm472, %v2743, 0
      %v2792 = vsel %vm472, %v2744, 0
      %v2795 = vsel %vm521, %v2745, 0
      %2797 = vmatprep.subr.bf16.mxu0 0
      %2798 = vmatpush1.bf16.msra.mxu0 %v2795
      %2799 = vmatprep.subr.bf16.mxu0 0
      %2800 = vmatpush1.bf16.msra.mxu0 0
      %2801 = vmatprep.subr.bf16.mxu0 0
      %2802 = vmatpush1.bf16.msra.mxu0 0
      %2803 = vmatprep.subr.bf16.mxu0 0
      %2804 = vmatpush1.bf16.msra.mxu0 0
      %2805 = vmatprep.subr.bf16.mxu0 0
      %2806 = vmatpush1.bf16.msra.mxu0 0
      %2807 = vmatprep.subr.bf16.mxu0 0
      %2808 = vmatpush1.bf16.msra.mxu0 0
      %2809 = vmatprep.subr.bf16.mxu0 0
      %2810 = vmatpush1.bf16.msra.mxu0 0
      %2811 = vmatprep.subr.bf16.mxu0 0
      %2812 = vmatpush1.bf16.msra.mxu0 0
      %2813 = vmatprep.subr.bf16.mxu0 0
      %2814 = vmatpush1.bf16.msra.mxu0 0
      %2815 = vmatprep.subr.bf16.mxu0 0
      %2816 = vmatpush1.bf16.msra.mxu0 0
      %2817 = vmatprep.subr.bf16.mxu0 0
      %2818 = vmatpush1.bf16.msra.mxu0 0
      %2819 = vmatprep.subr.bf16.mxu0 0
      %2820 = vmatpush1.bf16.msra.mxu0 0
      %2821 = vmatprep.subr.bf16.mxu0 0
      %2822 = vmatpush1.bf16.msra.mxu0 0
      %2823 = vmatprep.subr.bf16.mxu0 0
      %2824 = vmatpush1.bf16.msra.mxu0 0
      %2825 = vmatprep.subr.bf16.mxu0 0
      %2826 = vmatpush1.bf16.msra.mxu0 0
      %2827 = vmatprep.subr.bf16.mxu0 0
      %2828 = vmatpush1.bf16.msra.mxu0 0
      %2829 = vmatprep.mubr.bf16.mxu0 0
      %2830 = vmatmul.mubr.bf16.gmra.mrb[0].mxu0 %v2747
      %v2831 = vpop.f32.mrb[0].mxu0
      %v2832 = vadd.f32 0.0, %v2831
      %v2833 = vpop.f32.mrb[0].mxu0
      %v2834 = vpop.f32.mrb[0].mxu0
      %v2835 = vadd.f32 0.0, %v2834
      %v2836 = vpop.f32.mrb[0].mxu0
      %2837 = vmatprep.mubr.bf16.mxu0 0
      %2838 = vmatmul.mubr.bf16.gmra.mrb[0].mxu0 %v2750
      %v2839 = vpop.f32.mrb[0].mxu0
      %v2840 = vadd.f32 0.0, %v2839
      %v2841 = vpop.f32.mrb[0].mxu0
      %v2842 = vpop.f32.mrb[0].mxu0
      %v2843 = vadd.f32 0.0, %v2842
      %v2844 = vpop.f32.mrb[0].mxu0
      %2845 = vmatprep.mubr.bf16.mxu0 0
      %2846 = vmatmul.mubr.bf16.gmra.mrb[0].mxu0 %v2753
      %v2847 = vpop.f32.mrb[0].mxu0
      %v2848 = vadd.f32 0.0, %v2847
      %v2849 = vpop.f32.mrb[0].mxu0
      %v2850 = vpop.f32.mrb[0].mxu0
      %v2851 = vadd.f32 0.0, %v2850
      %v2852 = vpop.f32.mrb[0].mxu0
      %2853 = vmatprep.mubr.bf16.mxu0 0
      %2854 = vmatmul.mubr.bf16.gmra.mrb[0].mxu0 %v2756
      %v2855 = vpop.f32.mrb[0].mxu0
      %v2856 = vadd.f32 0.0, %v2855
      %v2857 = vpop.f32.mrb[0].mxu0
      %v2858 = vpop.f32.mrb[0].mxu0
      %v2859 = vadd.f32 0.0, %v2858
      %v2860 = vpop.f32.mrb[0].mxu0
      %2861 = vmatprep.mubr.bf16.mxu0 0
      %2862 = vmatmul.mubr.bf16.gmra.mrb[0].mxu0 %v2759
      %v2863 = vpop.f32.mrb[0].mxu0
      %v2864 = vadd.f32 0.0, %v2863
      %v2865 = vpop.f32.mrb[0].mxu0
      %v2866 = vpop.f32.mrb[0].mxu0
      %v2867 = vadd.f32 0.0, %v2866
      %v2868 = vpop.f32.mrb[0].mxu0
      %2869 = vmatprep.mubr.bf16.mxu0 0
      %2870 = vmatmul.mubr.bf16.gmra.mrb[0].mxu0 %v2762
      %v2871 = vpop.f32.mrb[0].mxu0
      %v2872 = vadd.f32 0.0, %v2871
      %v2873 = vpop.f32.mrb[0].mxu0
      %v2874 = vpop.f32.mrb[0].mxu0
      %v2875 = vadd.f32 0.0, %v2874
      %v2876 = vpop.f32.mrb[0].mxu0
      %2877 = vmatprep.mubr.bf16.mxu0 0
      %2878 = vmatmul.mubr.bf16.gmra.mrb[0].mxu0 %v2765
      %v2879 = vpop.f32.mrb[0].mxu0
      %v2880 = vadd.f32 0.0, %v2879
      %v2881 = vpop.f32.mrb[0].mxu0
      %v2882 = vpop.f32.mrb[0].mxu0
      %v2883 = vadd.f32 0.0, %v2882
      %v2884 = vpop.f32.mrb[0].mxu0
      %2885 = vmatprep.mubr.bf16.mxu0 0
      %2886 = vmatmul.mubr.bf16.gmra.mrb[0].mxu0 %v2768
      %v2887 = vpop.f32.mrb[0].mxu0
      %v2888 = vadd.f32 0.0, %v2887
      %v2889 = vpop.f32.mrb[0].mxu0
      %v2890 = vpop.f32.mrb[0].mxu0
      %v2891 = vadd.f32 0.0, %v2890
      %v2892 = vpop.f32.mrb[0].mxu0
      %2893 = vmatprep.mubr.bf16.mxu0 0
      %2894 = vmatmul.mubr.bf16.gmra.mrb[0].mxu0 %v2771
      %v2895 = vpop.f32.mrb[0].mxu0
      %v2896 = vadd.f32 0.0, %v2895
      %v2897 = vpop.f32.mrb[0].mxu0
      %v2898 = vpop.f32.mrb[0].mxu0
      %v2899 = vadd.f32 0.0, %v2898
      %v2900 = vpop.f32.mrb[0].mxu0
      %2901 = vmatprep.mubr.bf16.mxu0 0
      %2902 = vmatmul.mubr.bf16.gmra.mrb[0].mxu0 %v2774
      %v2903 = vpop.f32.mrb[0].mxu0
      %v2904 = vadd.f32 0.0, %v2903
      %v2905 = vpop.f32.mrb[0].mxu0
      %v2906 = vpop.f32.mrb[0].mxu0
      %v2907 = vadd.f32 0.0, %v2906
      %v2908 = vpop.f32.mrb[0].mxu0
      %2909 = vmatprep.mubr.bf16.mxu0 0
      %2910 = vmatmul.mubr.bf16.gmra.mrb[0].mxu0 %v2777
      %v2911 = vpop.f32.mrb[0].mxu0
      %v2912 = vadd.f32 0.0, %v2911
      %v2913 = vpop.f32.mrb[0].mxu0
      %v2914 = vpop.f32.mrb[0].mxu0
      %v2915 = vadd.f32 0.0, %v2914
      %v2916 = vpop.f32.mrb[0].mxu0
      %2917 = vmatprep.mubr.bf16.mxu0 0
      %2918 = vmatmul.mubr.bf16.gmra.mrb[0].mxu0 %v2780
      %v2919 = vpop.f32.mrb[0].mxu0
      %v2920 = vadd.f32 0.0, %v2919
      %v2921 = vpop.f32.mrb[0].mxu0
      %v2922 = vpop.f32.mrb[0].mxu0
      %v2923 = vadd.f32 0.0, %v2922
      %v2924 = vpop.f32.mrb[0].mxu0
      %2925 = vmatprep.mubr.bf16.mxu0 0
      %2926 = vmatmul.mubr.bf16.gmra.mrb[0].mxu0 %v2783
      %v2927 = vpop.f32.mrb[0].mxu0
      %v2928 = vadd.f32 0.0, %v2927
      %v2929 = vpop.f32.mrb[0].mxu0
      %v2930 = vpop.f32.mrb[0].mxu0
      %v2931 = vadd.f32 0.0, %v2930
      %v2932 = vpop.f32.mrb[0].mxu0
      %2933 = vmatprep.mubr.bf16.mxu0 0
      %2934 = vmatmul.mubr.bf16.gmra.mrb[0].mxu0 %v2786
      %v2935 = vpop.f32.mrb[0].mxu0
      %v2936 = vadd.f32 0.0, %v2935
      %v2937 = vpop.f32.mrb[0].mxu0
      %v2938 = vpop.f32.mrb[0].mxu0
      %v2939 = vadd.f32 0.0, %v2938
      %v2940 = vpop.f32.mrb[0].mxu0
      %2941 = vmatprep.mubr.bf16.mxu0 0
      %2942 = vmatmul.mubr.bf16.gmra.mrb[0].mxu0 %v2789
      %v2943 = vpop.f32.mrb[0].mxu0
      %v2944 = vadd.f32 0.0, %v2943
      %v2945 = vpop.f32.mrb[0].mxu0
      %v2946 = vpop.f32.mrb[0].mxu0
      %v2947 = vadd.f32 0.0, %v2946
      %v2948 = vpop.f32.mrb[0].mxu0
      %2949 = vmatprep.mubr.bf16.mxu0 0
      %2950 = vmatmul.mubr.bf16.gmra.mrb[0].mxu0 %v2792
      %v2951 = vpop.f32.mrb[0].mxu0
      %v2952 = vadd.f32 0.0, %v2951
      %v2953 = vpop.f32.mrb[0].mxu0
      %v2954 = vpop.f32.mrb[0].mxu0
      %v2955 = vadd.f32 0.0, %v2954
      %v2956 = vpop.f32.mrb[0].mxu0
      %2957 = vdwg.mxu0
      %v2958 = vadd.f32 %v2582, %v2832
      %v2959 = vadd.f32 %v2583, %v2835
      %v2960 = vadd.f32 %v2584, %v2840
      %v2961 = vadd.f32 %v2585, %v2843
      %v2962 = vadd.f32 %v2586, %v2848
      %v2963 = vadd.f32 %v2587, %v2851
      %v2964 = vadd.f32 %v2588, %v2856
      %v2965 = vadd.f32 %v2589, %v2859
      %v2966 = vadd.f32 %v2590, %v2864
      %v2967 = vadd.f32 %v2591, %v2867
      %v2968 = vadd.f32 %v2592, %v2872
      %v2969 = vadd.f32 %v2593, %v2875
      %v2970 = vadd.f32 %v2594, %v2880
      %v2971 = vadd.f32 %v2595, %v2883
      %v2972 = vadd.f32 %v2596, %v2888
      %v2973 = vadd.f32 %v2597, %v2891
      %v2974 = vadd.f32 %v2598, %v2896
      %v2975 = vadd.f32 %v2599, %v2899
      %v2976 = vadd.f32 %v2600, %v2904
      %v2977 = vadd.f32 %v2601, %v2907
      %v2978 = vadd.f32 %v2602, %v2912
      %v2979 = vadd.f32 %v2603, %v2915
      %v2980 = vadd.f32 %v2604, %v2920
      %v2981 = vadd.f32 %v2605, %v2923
      %v2982 = vadd.f32 %v2606, %v2928
      %v2983 = vadd.f32 %v2607, %v2931
      %v2984 = vadd.f32 %v2608, %v2936
      %v2985 = vadd.f32 %v2609, %v2939
      %v2986 = vadd.f32 %v2610, %v2944
      %v2987 = vadd.f32 %v2611, %v2947
      %v2988 = vadd.f32 %v2612, %v2952
      %v2989 = vadd.f32 %v2613, %v2955
      %s2990 = scalar_lea.vmem %s7, 12
      %v2991 = vld [vmem:[%s2990] sm:$0xf]
      %v2992 = vpack.c.bf16 %v1851, %v1918
      %v2993 = vpack.c.bf16 %v2991, %v2991
      %v2995 = vsel %vm472, %v2992, 0
      %v2998 = vsel %vm521, %v2993, 0
      %3000 = vmatprep.subr.bf16.mxu0 0
      %3001 = vmatpush1.bf16.msra.mxu0 %v2998
      %3002 = vmatprep.subr.bf16.mxu0 0
      %3003 = vmatpush1.bf16.msra.mxu0 0
      %3004 = vmatprep.subr.bf16.mxu0 0
      %3005 = vmatpush1.bf16.msra.mxu0 0
      %3006 = vmatprep.subr.bf16.mxu0 0
      %3007 = vmatpush1.bf16.msra.mxu0 0
      %3008 = vmatprep.subr.bf16.mxu0 0
      %3009 = vmatpush1.bf16.msra.mxu0 0
      %3010 = vmatprep.subr.bf16.mxu0 0
      %3011 = vmatpush1.bf16.msra.mxu0 0
      %3012 = vmatprep.subr.bf16.mxu0 0
      %3013 = vmatpush1.bf16.msra.mxu0 0
      %3014 = vmatprep.subr.bf16.mxu0 0
      %3015 = vmatpush1.bf16.msra.mxu0 0
      %3016 = vmatprep.subr.bf16.mxu0 0
      %3017 = vmatpush1.bf16.msra.mxu0 0
      %3018 = vmatprep.subr.bf16.mxu0 0
      %3019 = vmatpush1.bf16.msra.mxu0 0
      %3020 = vmatprep.subr.bf16.mxu0 0
      %3021 = vmatpush1.bf16.msra.mxu0 0
      %3022 = vmatprep.subr.bf16.mxu0 0
      %3023 = vmatpush1.bf16.msra.mxu0 0
      %3024 = vmatprep.subr.bf16.mxu0 0
      %3025 = vmatpush1.bf16.msra.mxu0 0
      %3026 = vmatprep.subr.bf16.mxu0 0
      %3027 = vmatpush1.bf16.msra.mxu0 0
      %3028 = vmatprep.subr.bf16.mxu0 0
      %3029 = vmatpush1.bf16.msra.mxu0 0
      %3030 = vmatprep.subr.bf16.mxu0 0
      %3031 = vmatpush1.bf16.msra.mxu0 0
      %3032 = vmatprep.mubr.bf16.mxu0 0
      %3033 = vmatmul.mubr.bf16.gmra.mrb[0].mxu0 %v1966
      %v3034 = vpop.f32.mrb[0].mxu0
      %v3035 = vadd.f32 0.0, %v3034
      %v3036 = vpop.f32.mrb[0].mxu0
      %v3037 = vpop.f32.mrb[0].mxu0
      %v3038 = vadd.f32 0.0, %v3037
      %v3039 = vpop.f32.mrb[0].mxu0
      %3040 = vmatprep.mubr.bf16.mxu0 0
      %3041 = vmatmul.mubr.bf16.gmra.mrb[0].mxu0 %v1969
      %v3042 = vpop.f32.mrb[0].mxu0
      %v3043 = vadd.f32 0.0, %v3042
      %v3044 = vpop.f32.mrb[0].mxu0
      %v3045 = vpop.f32.mrb[0].mxu0
      %v3046 = vadd.f32 0.0, %v3045
      %v3047 = vpop.f32.mrb[0].mxu0
      %3048 = vmatprep.mubr.bf16.mxu0 0
      %3049 = vmatmul.mubr.bf16.gmra.mrb[0].mxu0 %v1972
      %v3050 = vpop.f32.mrb[0].mxu0
      %v3051 = vadd.f32 0.0, %v3050
      %v3052 = vpop.f32.mrb[0].mxu0
      %v3053 = vpop.f32.mrb[0].mxu0
      %v3054 = vadd.f32 0.0, %v3053
      %v3055 = vpop.f32.mrb[0].mxu0
      %3056 = vmatprep.mubr.bf16.mxu0 0
      %3057 = vmatmul.mubr.bf16.gmra.mrb[0].mxu0 %v1975
      %v3058 = vpop.f32.mrb[0].mxu0
      %v3059 = vadd.f32 0.0, %v3058
      %v3060 = vpop.f32.mrb[0].mxu0
      %v3061 = vpop.f32.mrb[0].mxu0
      %v3062 = vadd.f32 0.0, %v3061
      %v3063 = vpop.f32.mrb[0].mxu0
      %3064 = vmatprep.mubr.bf16.mxu0 0
      %3065 = vmatmul.mubr.bf16.gmra.mrb[0].mxu0 %v1978
      %v3066 = vpop.f32.mrb[0].mxu0
      %v3067 = vadd.f32 0.0, %v3066
      %v3068 = vpop.f32.mrb[0].mxu0
      %v3069 = vpop.f32.mrb[0].mxu0
      %v3070 = vadd.f32 0.0, %v3069
      %v3071 = vpop.f32.mrb[0].mxu0
      %3072 = vmatprep.mubr.bf16.mxu0 0
      %3073 = vmatmul.mubr.bf16.gmra.mrb[0].mxu0 %v1981
      %v3074 = vpop.f32.mrb[0].mxu0
      %v3075 = vadd.f32 0.0, %v3074
      %v3076 = vpop.f32.mrb[0].mxu0
      %v3077 = vpop.f32.mrb[0].mxu0
      %v3078 = vadd.f32 0.0, %v3077
      %v3079 = vpop.f32.mrb[0].mxu0
      %3080 = vmatprep.mubr.bf16.mxu0 0
      %3081 = vmatmul.mubr.bf16.gmra.mrb[0].mxu0 %v1984
      %v3082 = vpop.f32.mrb[0].mxu0
      %v3083 = vadd.f32 0.0, %v3082
      %v3084 = vpop.f32.mrb[0].mxu0
      %v3085 = vpop.f32.mrb[0].mxu0
      %v3086 = vadd.f32 0.0, %v3085
      %v3087 = vpop.f32.mrb[0].mxu0
      %3088 = vmatprep.mubr.bf16.mxu0 0
      %3089 = vmatmul.mubr.bf16.gmra.mrb[0].mxu0 %v1987
      %v3090 = vpop.f32.mrb[0].mxu0
      %v3091 = vadd.f32 0.0, %v3090
      %v3092 = vpop.f32.mrb[0].mxu0
      %v3093 = vpop.f32.mrb[0].mxu0
      %v3094 = vadd.f32 0.0, %v3093
      %v3095 = vpop.f32.mrb[0].mxu0
      %3096 = vmatprep.mubr.bf16.mxu0 0
      %3097 = vmatmul.mubr.bf16.gmra.mrb[0].mxu0 %v1990
      %v3098 = vpop.f32.mrb[0].mxu0
      %v3099 = vadd.f32 0.0, %v3098
      %v3100 = vpop.f32.mrb[0].mxu0
      %v3101 = vpop.f32.mrb[0].mxu0
      %v3102 = vadd.f32 0.0, %v3101
      %v3103 = vpop.f32.mrb[0].mxu0
      %3104 = vmatprep.mubr.bf16.mxu0 0
      %3105 = vmatmul.mubr.bf16.gmra.mrb[0].mxu0 %v1993
      %v3106 = vpop.f32.mrb[0].mxu0
      %v3107 = vadd.f32 0.0, %v3106
      %v3108 = vpop.f32.mrb[0].mxu0
      %v3109 = vpop.f32.mrb[0].mxu0
      %v3110 = vadd.f32 0.0, %v3109
      %v3111 = vpop.f32.mrb[0].mxu0
      %3112 = vmatprep.mubr.bf16.mxu0 0
      %3113 = vmatmul.mubr.bf16.gmra.mrb[0].mxu0 %v1996
      %v3114 = vpop.f32.mrb[0].mxu0
      %v3115 = vadd.f32 0.0, %v3114
      %v3116 = vpop.f32.mrb[0].mxu0
      %v3117 = vpop.f32.mrb[0].mxu0
      %v3118 = vadd.f32 0.0, %v3117
      %v3119 = vpop.f32.mrb[0].mxu0
      %3120 = vmatprep.mubr.bf16.mxu0 0
      %3121 = vmatmul.mubr.bf16.gmra.mrb[0].mxu0 %v1999
      %v3122 = vpop.f32.mrb[0].mxu0
      %v3123 = vadd.f32 0.0, %v3122
      %v3124 = vpop.f32.mrb[0].mxu0
      %v3125 = vpop.f32.mrb[0].mxu0
      %v3126 = vadd.f32 0.0, %v3125
      %v3127 = vpop.f32.mrb[0].mxu0
      %3128 = vmatprep.mubr.bf16.mxu0 0
      %3129 = vmatmul.mubr.bf16.gmra.mrb[0].mxu0 %v2002
      %v3130 = vpop.f32.mrb[0].mxu0
      %v3131 = vadd.f32 0.0, %v3130
      %v3132 = vpop.f32.mrb[0].mxu0
      %v3133 = vpop.f32.mrb[0].mxu0
      %v3134 = vadd.f32 0.0, %v3133
      %v3135 = vpop.f32.mrb[0].mxu0
      %3136 = vmatprep.mubr.bf16.mxu0 0
      %3137 = vmatmul.mubr.bf16.gmra.mrb[0].mxu0 %v2005
      %v3138 = vpop.f32.mrb[0].mxu0
      %v3139 = vadd.f32 0.0, %v3138
      %v3140 = vpop.f32.mrb[0].mxu0
      %v3141 = vpop.f32.mrb[0].mxu0
      %v3142 = vadd.f32 0.0, %v3141
      %v3143 = vpop.f32.mrb[0].mxu0
      %3144 = vmatprep.mubr.bf16.mxu0 0
      %3145 = vmatmul.mubr.bf16.gmra.mrb[0].mxu0 %v2008
      %v3146 = vpop.f32.mrb[0].mxu0
      %v3147 = vadd.f32 0.0, %v3146
      %v3148 = vpop.f32.mrb[0].mxu0
      %v3149 = vpop.f32.mrb[0].mxu0
      %v3150 = vadd.f32 0.0, %v3149
      %v3151 = vpop.f32.mrb[0].mxu0
      %3152 = vmatprep.mubr.bf16.mxu0 0
      %3153 = vmatmul.mubr.bf16.gmra.mrb[0].mxu0 %v2995
      %v3154 = vpop.f32.mrb[0].mxu0
      %v3155 = vadd.f32 0.0, %v3154
      %v3156 = vpop.f32.mrb[0].mxu0
      %v3157 = vpop.f32.mrb[0].mxu0
      %v3158 = vadd.f32 0.0, %v3157
      %v3159 = vpop.f32.mrb[0].mxu0
      %3160 = vdwg.mxu0
      %v3161 = vadd.f32 %v2958, %v3035
      %v3162 = vadd.f32 %v2959, %v3038
      %v3163 = vadd.f32 %v2960, %v3043
      %v3164 = vadd.f32 %v2961, %v3046
      %v3165 = vadd.f32 %v2962, %v3051
      %v3166 = vadd.f32 %v2963, %v3054
      %v3167 = vadd.f32 %v2964, %v3059
      %v3168 = vadd.f32 %v2965, %v3062
      %v3169 = vadd.f32 %v2966, %v3067
      %v3170 = vadd.f32 %v2967, %v3070
      %v3171 = vadd.f32 %v2968, %v3075
      %v3172 = vadd.f32 %v2969, %v3078
      %v3173 = vadd.f32 %v2970, %v3083
      %v3174 = vadd.f32 %v2971, %v3086
      %v3175 = vadd.f32 %v2972, %v3091
      %v3176 = vadd.f32 %v2973, %v3094
      %v3177 = vadd.f32 %v2974, %v3099
      %v3178 = vadd.f32 %v2975, %v3102
      %v3179 = vadd.f32 %v2976, %v3107
      %v3180 = vadd.f32 %v2977, %v3110
      %v3181 = vadd.f32 %v2978, %v3115
      %v3182 = vadd.f32 %v2979, %v3118
      %v3183 = vadd.f32 %v2980, %v3123
      %v3184 = vadd.f32 %v2981, %v3126
      %v3185 = vadd.f32 %v2982, %v3131
      %v3186 = vadd.f32 %v2983, %v3134
      %v3187 = vadd.f32 %v2984, %v3139
      %v3188 = vadd.f32 %v2985, %v3142
      %v3189 = vadd.f32 %v2986, %v3147
      %v3190 = vadd.f32 %v2987, %v3150
      %v3191 = vadd.f32 %v2988, %v3155
      %v3192 = vadd.f32 %v2989, %v3158
      %v3195 = vrot.slane %v1918, 1
      %v3196 = vrot.slane %v1851, 1
      %v3197 = vsel %vm2238, %v3195, %v3196
      %v3198 = vrot.slane %v1935, 1
      %v3199 = vsel %vm2238, %v3196, %v3198
      %s3202 = scalar_lea.vmem %s7, 16
      %v3203 = vld [vmem:[%s3202] sm:$0xf]
      %v3204 = vpack.c.bf16 %v3199, %v3197
      %v3205 = vpack.c.bf16 %v3203, %v3203
      %v3207 = vsel %vm472, %v3204, 0
      %v3210 = vsel %vm521, %v3205, 0
      %3212 = vmatprep.subr.bf16.mxu0 0
      %3213 = vmatpush1.bf16.msra.mxu0 %v3210
      %3214 = vmatprep.subr.bf16.mxu0 0
      %3215 = vmatpush1.bf16.msra.mxu0 0
      %3216 = vmatprep.subr.bf16.mxu0 0
      %3217 = vmatpush1.bf16.msra.mxu0 0
      %3218 = vmatprep.subr.bf16.mxu0 0
      %3219 = vmatpush1.bf16.msra.mxu0 0
      %3220 = vmatprep.subr.bf16.mxu0 0
      %3221 = vmatpush1.bf16.msra.mxu0 0
      %3222 = vmatprep.subr.bf16.mxu0 0
      %3223 = vmatpush1.bf16.msra.mxu0 0
      %3224 = vmatprep.subr.bf16.mxu0 0
      %3225 = vmatpush1.bf16.msra.mxu0 0
      %3226 = vmatprep.subr.bf16.mxu0 0
      %3227 = vmatpush1.bf16.msra.mxu0 0
      %3228 = vmatprep.subr.bf16.mxu0 0
      %3229 = vmatpush1.bf16.msra.mxu0 0
      %3230 = vmatprep.subr.bf16.mxu0 0
      %3231 = vmatpush1.bf16.msra.mxu0 0
      %3232 = vmatprep.subr.bf16.mxu0 0
      %3233 = vmatpush1.bf16.msra.mxu0 0
      %3234 = vmatprep.subr.bf16.mxu0 0
      %3235 = vmatpush1.bf16.msra.mxu0 0
      %3236 = vmatprep.subr.bf16.mxu0 0
      %3237 = vmatpush1.bf16.msra.mxu0 0
      %3238 = vmatprep.subr.bf16.mxu0 0
      %3239 = vmatpush1.bf16.msra.mxu0 0
      %3240 = vmatprep.subr.bf16.mxu0 0
      %3241 = vmatpush1.bf16.msra.mxu0 0
      %3242 = vmatprep.subr.bf16.mxu0 0
      %3243 = vmatpush1.bf16.msra.mxu0 0
      %3244 = vmatprep.mubr.bf16.mxu0 0
      %3245 = vmatmul.mubr.bf16.gmra.mrb[0].mxu0 %v2374
      %v3246 = vpop.f32.mrb[0].mxu0
      %v3247 = vadd.f32 0.0, %v3246
      %v3248 = vpop.f32.mrb[0].mxu0
      %v3249 = vpop.f32.mrb[0].mxu0
      %v3250 = vadd.f32 0.0, %v3249
      %v3251 = vpop.f32.mrb[0].mxu0
      %3252 = vmatprep.mubr.bf16.mxu0 0
      %3253 = vmatmul.mubr.bf16.gmra.mrb[0].mxu0 %v2377
      %v3254 = vpop.f32.mrb[0].mxu0
      %v3255 = vadd.f32 0.0, %v3254
      %v3256 = vpop.f32.mrb[0].mxu0
      %v3257 = vpop.f32.mrb[0].mxu0
      %v3258 = vadd.f32 0.0, %v3257
      %v3259 = vpop.f32.mrb[0].mxu0
      %3260 = vmatprep.mubr.bf16.mxu0 0
      %3261 = vmatmul.mubr.bf16.gmra.mrb[0].mxu0 %v2380
      %v3262 = vpop.f32.mrb[0].mxu0
      %v3263 = vadd.f32 0.0, %v3262
      %v3264 = vpop.f32.mrb[0].mxu0
      %v3265 = vpop.f32.mrb[0].mxu0
      %v3266 = vadd.f32 0.0, %v3265
      %v3267 = vpop.f32.mrb[0].mxu0
      %3268 = vmatprep.mubr.bf16.mxu0 0
      %3269 = vmatmul.mubr.bf16.gmra.mrb[0].mxu0 %v2383
      %v3270 = vpop.f32.mrb[0].mxu0
      %v3271 = vadd.f32 0.0, %v3270
      %v3272 = vpop.f32.mrb[0].mxu0
      %v3273 = vpop.f32.mrb[0].mxu0
      %v3274 = vadd.f32 0.0, %v3273
      %v3275 = vpop.f32.mrb[0].mxu0
      %3276 = vmatprep.mubr.bf16.mxu0 0
      %3277 = vmatmul.mubr.bf16.gmra.mrb[0].mxu0 %v2386
      %v3278 = vpop.f32.mrb[0].mxu0
      %v3279 = vadd.f32 0.0, %v3278
      %v3280 = vpop.f32.mrb[0].mxu0
      %v3281 = vpop.f32.mrb[0].mxu0
      %v3282 = vadd.f32 0.0, %v3281
      %v3283 = vpop.f32.mrb[0].mxu0
      %3284 = vmatprep.mubr.bf16.mxu0 0
      %3285 = vmatmul.mubr.bf16.gmra.mrb[0].mxu0 %v2389
      %v3286 = vpop.f32.mrb[0].mxu0
      %v3287 = vadd.f32 0.0, %v3286
      %v3288 = vpop.f32.mrb[0].mxu0
      %v3289 = vpop.f32.mrb[0].mxu0
      %v3290 = vadd.f32 0.0, %v3289
      %v3291 = vpop.f32.mrb[0].mxu0
      %3292 = vmatprep.mubr.bf16.mxu0 0
      %3293 = vmatmul.mubr.bf16.gmra.mrb[0].mxu0 %v2392
      %v3294 = vpop.f32.mrb[0].mxu0
      %v3295 = vadd.f32 0.0, %v3294
      %v3296 = vpop.f32.mrb[0].mxu0
      %v3297 = vpop.f32.mrb[0].mxu0
      %v3298 = vadd.f32 0.0, %v3297
      %v3299 = vpop.f32.mrb[0].mxu0
      %3300 = vmatprep.mubr.bf16.mxu0 0
      %3301 = vmatmul.mubr.bf16.gmra.mrb[0].mxu0 %v2395
      %v3302 = vpop.f32.mrb[0].mxu0
      %v3303 = vadd.f32 0.0, %v3302
      %v3304 = vpop.f32.mrb[0].mxu0
      %v3305 = vpop.f32.mrb[0].mxu0
      %v3306 = vadd.f32 0.0, %v3305
      %v3307 = vpop.f32.mrb[0].mxu0
      %3308 = vmatprep.mubr.bf16.mxu0 0
      %3309 = vmatmul.mubr.bf16.gmra.mrb[0].mxu0 %v2398
      %v3310 = vpop.f32.mrb[0].mxu0
      %v3311 = vadd.f32 0.0, %v3310
      %v3312 = vpop.f32.mrb[0].mxu0
      %v3313 = vpop.f32.mrb[0].mxu0
      %v3314 = vadd.f32 0.0, %v3313
      %v3315 = vpop.f32.mrb[0].mxu0
      %3316 = vmatprep.mubr.bf16.mxu0 0
      %3317 = vmatmul.mubr.bf16.gmra.mrb[0].mxu0 %v2401
      %v3318 = vpop.f32.mrb[0].mxu0
      %v3319 = vadd.f32 0.0, %v3318
      %v3320 = vpop.f32.mrb[0].mxu0
      %v3321 = vpop.f32.mrb[0].mxu0
      %v3322 = vadd.f32 0.0, %v3321
      %v3323 = vpop.f32.mrb[0].mxu0
      %3324 = vmatprep.mubr.bf16.mxu0 0
      %3325 = vmatmul.mubr.bf16.gmra.mrb[0].mxu0 %v2404
      %v3326 = vpop.f32.mrb[0].mxu0
      %v3327 = vadd.f32 0.0, %v3326
      %v3328 = vpop.f32.mrb[0].mxu0
      %v3329 = vpop.f32.mrb[0].mxu0
      %v3330 = vadd.f32 0.0, %v3329
      %v3331 = vpop.f32.mrb[0].mxu0
      %3332 = vmatprep.mubr.bf16.mxu0 0
      %3333 = vmatmul.mubr.bf16.gmra.mrb[0].mxu0 %v2407
      %v3334 = vpop.f32.mrb[0].mxu0
      %v3335 = vadd.f32 0.0, %v3334
      %v3336 = vpop.f32.mrb[0].mxu0
      %v3337 = vpop.f32.mrb[0].mxu0
      %v3338 = vadd.f32 0.0, %v3337
      %v3339 = vpop.f32.mrb[0].mxu0
      %3340 = vmatprep.mubr.bf16.mxu0 0
      %3341 = vmatmul.mubr.bf16.gmra.mrb[0].mxu0 %v2410
      %v3342 = vpop.f32.mrb[0].mxu0
      %v3343 = vadd.f32 0.0, %v3342
      %v3344 = vpop.f32.mrb[0].mxu0
      %v3345 = vpop.f32.mrb[0].mxu0
      %v3346 = vadd.f32 0.0, %v3345
      %v3347 = vpop.f32.mrb[0].mxu0
      %3348 = vmatprep.mubr.bf16.mxu0 0
      %3349 = vmatmul.mubr.bf16.gmra.mrb[0].mxu0 %v2413
      %v3350 = vpop.f32.mrb[0].mxu0
      %v3351 = vadd.f32 0.0, %v3350
      %v3352 = vpop.f32.mrb[0].mxu0
      %v3353 = vpop.f32.mrb[0].mxu0
      %v3354 = vadd.f32 0.0, %v3353
      %v3355 = vpop.f32.mrb[0].mxu0
      %3356 = vmatprep.mubr.bf16.mxu0 0
      %3357 = vmatmul.mubr.bf16.gmra.mrb[0].mxu0 %v2416
      %v3358 = vpop.f32.mrb[0].mxu0
      %v3359 = vadd.f32 0.0, %v3358
      %v3360 = vpop.f32.mrb[0].mxu0
      %v3361 = vpop.f32.mrb[0].mxu0
      %v3362 = vadd.f32 0.0, %v3361
      %v3363 = vpop.f32.mrb[0].mxu0
      %3364 = vmatprep.mubr.bf16.mxu0 0
      %3365 = vmatmul.mubr.bf16.gmra.mrb[0].mxu0 %v3207
      %v3366 = vpop.f32.mrb[0].mxu0
      %v3367 = vadd.f32 0.0, %v3366
      %v3368 = vpop.f32.mrb[0].mxu0
      %v3369 = vpop.f32.mrb[0].mxu0
      %v3370 = vadd.f32 0.0, %v3369
      %v3371 = vpop.f32.mrb[0].mxu0
      %3372 = vdwg.mxu0
      %v3373 = vadd.f32 %v3161, %v3247
      %v3374 = vadd.f32 %v3162, %v3250
      %v3375 = vadd.f32 %v3163, %v3255
      %v3376 = vadd.f32 %v3164, %v3258
      %v3377 = vadd.f32 %v3165, %v3263
      %v3378 = vadd.f32 %v3166, %v3266
      %v3379 = vadd.f32 %v3167, %v3271
      %v3380 = vadd.f32 %v3168, %v3274
      %v3381 = vadd.f32 %v3169, %v3279
      %v3382 = vadd.f32 %v3170, %v3282
      %v3383 = vadd.f32 %v3171, %v3287
      %v3384 = vadd.f32 %v3172, %v3290
      %v3385 = vadd.f32 %v3173, %v3295
      %v3386 = vadd.f32 %v3174, %v3298
      %v3387 = vadd.f32 %v3175, %v3303
      %v3388 = vadd.f32 %v3176, %v3306
      %v3389 = vadd.f32 %v3177, %v3311
      %v3390 = vadd.f32 %v3178, %v3314
      %v3391 = vadd.f32 %v3179, %v3319
      %v3392 = vadd.f32 %v3180, %v3322
      %v3393 = vadd.f32 %v3181, %v3327
      %v3394 = vadd.f32 %v3182, %v3330
      %v3395 = vadd.f32 %v3183, %v3335
      %v3396 = vadd.f32 %v3184, %v3338
      %v3397 = vadd.f32 %v3185, %v3343
      %v3398 = vadd.f32 %v3186, %v3346
      %v3399 = vadd.f32 %v3187, %v3351
      %v3400 = vadd.f32 %v3188, %v3354
      %v3401 = vadd.f32 %v3189, %v3359
      %v3402 = vadd.f32 %v3190, %v3362
      %v3403 = vadd.f32 %v3191, %v3367
      %v3404 = vadd.f32 %v3192, %v3370
      %v3405 = vrot.slane %v1918, 2
      %v3406 = vrot.slane %v1851, 2
      %v3407 = vsel %vm2614, %v3405, %v3406
      %v3408 = vrot.slane %v1935, 2
      %v3409 = vsel %vm2614, %v3406, %v3408
      %s3412 = scalar_lea.vmem %s7, 20
      %v3413 = vld [vmem:[%s3412] sm:$0xf]
      %v3414 = vpack.c.bf16 %v3409, %v3407
      %v3415 = vpack.c.bf16 %v3413, %v3413
      %v3417 = vsel %vm472, %v3414, 0
      %v3420 = vsel %vm521, %v3415, 0
      %3422 = vmatprep.subr.bf16.mxu0 0
      %3423 = vmatpush1.bf16.msra.mxu0 %v3420
      %3424 = vmatprep.subr.bf16.mxu0 0
      %3425 = vmatpush1.bf16.msra.mxu0 0
      %3426 = vmatprep.subr.bf16.mxu0 0
      %3427 = vmatpush1.bf16.msra.mxu0 0
      %3428 = vmatprep.subr.bf16.mxu0 0
      %3429 = vmatpush1.bf16.msra.mxu0 0
      %3430 = vmatprep.subr.bf16.mxu0 0
      %3431 = vmatpush1.bf16.msra.mxu0 0
      %3432 = vmatprep.subr.bf16.mxu0 0
      %3433 = vmatpush1.bf16.msra.mxu0 0
      %3434 = vmatprep.subr.bf16.mxu0 0
      %3435 = vmatpush1.bf16.msra.mxu0 0
      %3436 = vmatprep.subr.bf16.mxu0 0
      %3437 = vmatpush1.bf16.msra.mxu0 0
      %3438 = vmatprep.subr.bf16.mxu0 0
      %3439 = vmatpush1.bf16.msra.mxu0 0
      %3440 = vmatprep.subr.bf16.mxu0 0
      %3441 = vmatpush1.bf16.msra.mxu0 0
      %3442 = vmatprep.subr.bf16.mxu0 0
      %3443 = vmatpush1.bf16.msra.mxu0 0
      %3444 = vmatprep.subr.bf16.mxu0 0
      %3445 = vmatpush1.bf16.msra.mxu0 0
      %3446 = vmatprep.subr.bf16.mxu0 0
      %3447 = vmatpush1.bf16.msra.mxu0 0
      %3448 = vmatprep.subr.bf16.mxu0 0
      %3449 = vmatpush1.bf16.msra.mxu0 0
      %3450 = vmatprep.subr.bf16.mxu0 0
      %3451 = vmatpush1.bf16.msra.mxu0 0
      %3452 = vmatprep.subr.bf16.mxu0 0
      %3453 = vmatpush1.bf16.msra.mxu0 0
      %3454 = vmatprep.mubr.bf16.mxu0 0
      %3455 = vmatmul.mubr.bf16.gmra.mrb[0].mxu0 %v2750
      %v3456 = vpop.f32.mrb[0].mxu0
      %v3457 = vadd.f32 0.0, %v3456
      %v3458 = vpop.f32.mrb[0].mxu0
      %v3459 = vpop.f32.mrb[0].mxu0
      %v3460 = vadd.f32 0.0, %v3459
      %v3461 = vpop.f32.mrb[0].mxu0
      %3462 = vmatprep.mubr.bf16.mxu0 0
      %3463 = vmatmul.mubr.bf16.gmra.mrb[0].mxu0 %v2753
      %v3464 = vpop.f32.mrb[0].mxu0
      %v3465 = vadd.f32 0.0, %v3464
      %v3466 = vpop.f32.mrb[0].mxu0
      %v3467 = vpop.f32.mrb[0].mxu0
      %v3468 = vadd.f32 0.0, %v3467
      %v3469 = vpop.f32.mrb[0].mxu0
      %3470 = vmatprep.mubr.bf16.mxu0 0
      %3471 = vmatmul.mubr.bf16.gmra.mrb[0].mxu0 %v2756
      %v3472 = vpop.f32.mrb[0].mxu0
      %v3473 = vadd.f32 0.0, %v3472
      %v3474 = vpop.f32.mrb[0].mxu0
      %v3475 = vpop.f32.mrb[0].mxu0
      %v3476 = vadd.f32 0.0, %v3475
      %v3477 = vpop.f32.mrb[0].mxu0
      %3478 = vmatprep.mubr.bf16.mxu0 0
      %3479 = vmatmul.mubr.bf16.gmra.mrb[0].mxu0 %v2759
      %v3480 = vpop.f32.mrb[0].mxu0
      %v3481 = vadd.f32 0.0, %v3480
      %v3482 = vpop.f32.mrb[0].mxu0
      %v3483 = vpop.f32.mrb[0].mxu0
      %v3484 = vadd.f32 0.0, %v3483
      %v3485 = vpop.f32.mrb[0].mxu0
      %3486 = vmatprep.mubr.bf16.mxu0 0
      %3487 = vmatmul.mubr.bf16.gmra.mrb[0].mxu0 %v2762
      %v3488 = vpop.f32.mrb[0].mxu0
      %v3489 = vadd.f32 0.0, %v3488
      %v3490 = vpop.f32.mrb[0].mxu0
      %v3491 = vpop.f32.mrb[0].mxu0
      %v3492 = vadd.f32 0.0, %v3491
      %v3493 = vpop.f32.mrb[0].mxu0
      %3494 = vmatprep.mubr.bf16.mxu0 0
      %3495 = vmatmul.mubr.bf16.gmra.mrb[0].mxu0 %v2765
      %v3496 = vpop.f32.mrb[0].mxu0
      %v3497 = vadd.f32 0.0, %v3496
      %v3498 = vpop.f32.mrb[0].mxu0
      %v3499 = vpop.f32.mrb[0].mxu0
      %v3500 = vadd.f32 0.0, %v3499
      %v3501 = vpop.f32.mrb[0].mxu0
      %3502 = vmatprep.mubr.bf16.mxu0 0
      %3503 = vmatmul.mubr.bf16.gmra.mrb[0].mxu0 %v2768
      %v3504 = vpop.f32.mrb[0].mxu0
      %v3505 = vadd.f32 0.0, %v3504
      %v3506 = vpop.f32.mrb[0].mxu0
      %v3507 = vpop.f32.mrb[0].mxu0
      %v3508 = vadd.f32 0.0, %v3507
      %v3509 = vpop.f32.mrb[0].mxu0
      %3510 = vmatprep.mubr.bf16.mxu0 0
      %3511 = vmatmul.mubr.bf16.gmra.mrb[0].mxu0 %v2771
      %v3512 = vpop.f32.mrb[0].mxu0
      %v3513 = vadd.f32 0.0, %v3512
      %v3514 = vpop.f32.mrb[0].mxu0
      %v3515 = vpop.f32.mrb[0].mxu0
      %v3516 = vadd.f32 0.0, %v3515
      %v3517 = vpop.f32.mrb[0].mxu0
      %3518 = vmatprep.mubr.bf16.mxu0 0
      %3519 = vmatmul.mubr.bf16.gmra.mrb[0].mxu0 %v2774
      %v3520 = vpop.f32.mrb[0].mxu0
      %v3521 = vadd.f32 0.0, %v3520
      %v3522 = vpop.f32.mrb[0].mxu0
      %v3523 = vpop.f32.mrb[0].mxu0
      %v3524 = vadd.f32 0.0, %v3523
      %v3525 = vpop.f32.mrb[0].mxu0
      %3526 = vmatprep.mubr.bf16.mxu0 0
      %3527 = vmatmul.mubr.bf16.gmra.mrb[0].mxu0 %v2777
      %v3528 = vpop.f32.mrb[0].mxu0
      %v3529 = vadd.f32 0.0, %v3528
      %v3530 = vpop.f32.mrb[0].mxu0
      %v3531 = vpop.f32.mrb[0].mxu0
      %v3532 = vadd.f32 0.0, %v3531
      %v3533 = vpop.f32.mrb[0].mxu0
      %3534 = vmatprep.mubr.bf16.mxu0 0
      %3535 = vmatmul.mubr.bf16.gmra.mrb[0].mxu0 %v2780
      %v3536 = vpop.f32.mrb[0].mxu0
      %v3537 = vadd.f32 0.0, %v3536
      %v3538 = vpop.f32.mrb[0].mxu0
      %v3539 = vpop.f32.mrb[0].mxu0
      %v3540 = vadd.f32 0.0, %v3539
      %v3541 = vpop.f32.mrb[0].mxu0
      %3542 = vmatprep.mubr.bf16.mxu0 0
      %3543 = vmatmul.mubr.bf16.gmra.mrb[0].mxu0 %v2783
      %v3544 = vpop.f32.mrb[0].mxu0
      %v3545 = vadd.f32 0.0, %v3544
      %v3546 = vpop.f32.mrb[0].mxu0
      %v3547 = vpop.f32.mrb[0].mxu0
      %v3548 = vadd.f32 0.0, %v3547
      %v3549 = vpop.f32.mrb[0].mxu0
      %3550 = vmatprep.mubr.bf16.mxu0 0
      %3551 = vmatmul.mubr.bf16.gmra.mrb[0].mxu0 %v2786
      %v3552 = vpop.f32.mrb[0].mxu0
      %v3553 = vadd.f32 0.0, %v3552
      %v3554 = vpop.f32.mrb[0].mxu0
      %v3555 = vpop.f32.mrb[0].mxu0
      %v3556 = vadd.f32 0.0, %v3555
      %v3557 = vpop.f32.mrb[0].mxu0
      %3558 = vmatprep.mubr.bf16.mxu0 0
      %3559 = vmatmul.mubr.bf16.gmra.mrb[0].mxu0 %v2789
      %v3560 = vpop.f32.mrb[0].mxu0
      %v3561 = vadd.f32 0.0, %v3560
      %v3562 = vpop.f32.mrb[0].mxu0
      %v3563 = vpop.f32.mrb[0].mxu0
      %v3564 = vadd.f32 0.0, %v3563
      %v3565 = vpop.f32.mrb[0].mxu0
      %3566 = vmatprep.mubr.bf16.mxu0 0
      %3567 = vmatmul.mubr.bf16.gmra.mrb[0].mxu0 %v2792
      %v3568 = vpop.f32.mrb[0].mxu0
      %v3569 = vadd.f32 0.0, %v3568
      %v3570 = vpop.f32.mrb[0].mxu0
      %v3571 = vpop.f32.mrb[0].mxu0
      %v3572 = vadd.f32 0.0, %v3571
      %v3573 = vpop.f32.mrb[0].mxu0
      %3574 = vmatprep.mubr.bf16.mxu0 0
      %3575 = vmatmul.mubr.bf16.gmra.mrb[0].mxu0 %v3417
      %v3576 = vpop.f32.mrb[0].mxu0
      %v3577 = vadd.f32 0.0, %v3576
      %v3578 = vpop.f32.mrb[0].mxu0
      %v3579 = vpop.f32.mrb[0].mxu0
      %v3580 = vadd.f32 0.0, %v3579
      %v3581 = vpop.f32.mrb[0].mxu0
      %3582 = vdwg.mxu0
      %v3583 = vadd.f32 %v3373, %v3457
      %v3584 = vadd.f32 %v3374, %v3460
      %v3585 = vadd.f32 %v3375, %v3465
      %v3586 = vadd.f32 %v3376, %v3468
      %v3587 = vadd.f32 %v3377, %v3473
      %v3588 = vadd.f32 %v3378, %v3476
      %v3589 = vadd.f32 %v3379, %v3481
      %v3590 = vadd.f32 %v3380, %v3484
      %v3591 = vadd.f32 %v3381, %v3489
      %v3592 = vadd.f32 %v3382, %v3492
      %v3593 = vadd.f32 %v3383, %v3497
      %v3594 = vadd.f32 %v3384, %v3500
      %v3595 = vadd.f32 %v3385, %v3505
      %v3596 = vadd.f32 %v3386, %v3508
      %v3597 = vadd.f32 %v3387, %v3513
      %v3598 = vadd.f32 %v3388, %v3516
      %v3599 = vadd.f32 %v3389, %v3521
      %v3600 = vadd.f32 %v3390, %v3524
      %v3601 = vadd.f32 %v3391, %v3529
      %v3602 = vadd.f32 %v3392, %v3532
      %v3603 = vadd.f32 %v3393, %v3537
      %v3604 = vadd.f32 %v3394, %v3540
      %v3605 = vadd.f32 %v3395, %v3545
      %v3606 = vadd.f32 %v3396, %v3548
      %v3607 = vadd.f32 %v3397, %v3553
      %v3608 = vadd.f32 %v3398, %v3556
      %v3609 = vadd.f32 %v3399, %v3561
      %v3610 = vadd.f32 %v3400, %v3564
      %v3611 = vadd.f32 %v3401, %v3569
      %v3612 = vadd.f32 %v3402, %v3572
      %v3613 = vadd.f32 %v3403, %v3577
      %v3614 = vadd.f32 %v3404, %v3580
      %s3615 = scalar_lea.vmem %s7, 24
      %v3616 = vld [vmem:[%s3615] sm:$0xf]
      %v3617 = vpack.c.bf16 %v3616, %v3616
      %v3619 = vsel %vm521, %v3617, 0
      %3621 = vmatprep.subr.bf16.mxu0 0
      %3622 = vmatpush1.bf16.msra.mxu0 %v3619
      %3623 = vmatprep.subr.bf16.mxu0 0
      %3624 = vmatpush1.bf16.msra.mxu0 0
      %3625 = vmatprep.subr.bf16.mxu0 0
      %3626 = vmatpush1.bf16.msra.mxu0 0
      %3627 = vmatprep.subr.bf16.mxu0 0
      %3628 = vmatpush1.bf16.msra.mxu0 0
      %3629 = vmatprep.subr.bf16.mxu0 0
      %3630 = vmatpush1.bf16.msra.mxu0 0
      %3631 = vmatprep.subr.bf16.mxu0 0
      %3632 = vmatpush1.bf16.msra.mxu0 0
      %3633 = vmatprep.subr.bf16.mxu0 0
      %3634 = vmatpush1.bf16.msra.mxu0 0
      %3635 = vmatprep.subr.bf16.mxu0 0
      %3636 = vmatpush1.bf16.msra.mxu0 0
      %3637 = vmatprep.subr.bf16.mxu0 0
      %3638 = vmatpush1.bf16.msra.mxu0 0
      %3639 = vmatprep.subr.bf16.mxu0 0
      %3640 = vmatpush1.bf16.msra.mxu0 0
      %3641 = vmatprep.subr.bf16.mxu0 0
      %3642 = vmatpush1.bf16.msra.mxu0 0
      %3643 = vmatprep.subr.bf16.mxu0 0
      %3644 = vmatpush1.bf16.msra.mxu0 0
      %3645 = vmatprep.subr.bf16.mxu0 0
      %3646 = vmatpush1.bf16.msra.mxu0 0
      %3647 = vmatprep.subr.bf16.mxu0 0
      %3648 = vmatpush1.bf16.msra.mxu0 0
      %3649 = vmatprep.subr.bf16.mxu0 0
      %3650 = vmatpush1.bf16.msra.mxu0 0
      %3651 = vmatprep.subr.bf16.mxu0 0
      %3652 = vmatpush1.bf16.msra.mxu0 0
      %3653 = vmatprep.mubr.bf16.mxu0 0
      %3654 = vmatmul.mubr.bf16.gmra.mrb[0].mxu0 %v1969
      %v3655 = vpop.f32.mrb[0].mxu0
      %v3656 = vadd.f32 0.0, %v3655
      %v3657 = vpop.f32.mrb[0].mxu0
      %v3658 = vpop.f32.mrb[0].mxu0
      %v3659 = vadd.f32 0.0, %v3658
      %v3660 = vpop.f32.mrb[0].mxu0
      %3661 = vmatprep.mubr.bf16.mxu0 0
      %3662 = vmatmul.mubr.bf16.gmra.mrb[0].mxu0 %v1972
      %v3663 = vpop.f32.mrb[0].mxu0
      %v3664 = vadd.f32 0.0, %v3663
      %v3665 = vpop.f32.mrb[0].mxu0
      %v3666 = vpop.f32.mrb[0].mxu0
      %v3667 = vadd.f32 0.0, %v3666
      %v3668 = vpop.f32.mrb[0].mxu0
      %3669 = vmatprep.mubr.bf16.mxu0 0
      %3670 = vmatmul.mubr.bf16.gmra.mrb[0].mxu0 %v1975
      %v3671 = vpop.f32.mrb[0].mxu0
      %v3672 = vadd.f32 0.0, %v3671
      %v3673 = vpop.f32.mrb[0].mxu0
      %v3674 = vpop.f32.mrb[0].mxu0
      %v3675 = vadd.f32 0.0, %v3674
      %v3676 = vpop.f32.mrb[0].mxu0
      %3677 = vmatprep.mubr.bf16.mxu0 0
      %3678 = vmatmul.mubr.bf16.gmra.mrb[0].mxu0 %v1978
      %v3679 = vpop.f32.mrb[0].mxu0
      %v3680 = vadd.f32 0.0, %v3679
      %v3681 = vpop.f32.mrb[0].mxu0
      %v3682 = vpop.f32.mrb[0].mxu0
      %v3683 = vadd.f32 0.0, %v3682
      %v3684 = vpop.f32.mrb[0].mxu0
      %3685 = vmatprep.mubr.bf16.mxu0 0
      %3686 = vmatmul.mubr.bf16.gmra.mrb[0].mxu0 %v1981
      %v3687 = vpop.f32.mrb[0].mxu0
      %v3688 = vadd.f32 0.0, %v3687
      %v3689 = vpop.f32.mrb[0].mxu0
      %v3690 = vpop.f32.mrb[0].mxu0
      %v3691 = vadd.f32 0.0, %v3690
      %v3692 = vpop.f32.mrb[0].mxu0
      %3693 = vmatprep.mubr.bf16.mxu0 0
      %3694 = vmatmul.mubr.bf16.gmra.mrb[0].mxu0 %v1984
      %v3695 = vpop.f32.mrb[0].mxu0
      %v3696 = vadd.f32 0.0, %v3695
      %v3697 = vpop.f32.mrb[0].mxu0
      %v3698 = vpop.f32.mrb[0].mxu0
      %v3699 = vadd.f32 0.0, %v3698
      %v3700 = vpop.f32.mrb[0].mxu0
      %3701 = vmatprep.mubr.bf16.mxu0 0
      %3702 = vmatmul.mubr.bf16.gmra.mrb[0].mxu0 %v1987
      %v3703 = vpop.f32.mrb[0].mxu0
      %v3704 = vadd.f32 0.0, %v3703
      %v3705 = vpop.f32.mrb[0].mxu0
      %v3706 = vpop.f32.mrb[0].mxu0
      %v3707 = vadd.f32 0.0, %v3706
      %v3708 = vpop.f32.mrb[0].mxu0
      %3709 = vmatprep.mubr.bf16.mxu0 0
      %3710 = vmatmul.mubr.bf16.gmra.mrb[0].mxu0 %v1990
      %v3711 = vpop.f32.mrb[0].mxu0
      %v3712 = vadd.f32 0.0, %v3711
      %v3713 = vpop.f32.mrb[0].mxu0
      %v3714 = vpop.f32.mrb[0].mxu0
      %v3715 = vadd.f32 0.0, %v3714
      %v3716 = vpop.f32.mrb[0].mxu0
      %3717 = vmatprep.mubr.bf16.mxu0 0
      %3718 = vmatmul.mubr.bf16.gmra.mrb[0].mxu0 %v1993
      %v3719 = vpop.f32.mrb[0].mxu0
      %v3720 = vadd.f32 0.0, %v3719
      %v3721 = vpop.f32.mrb[0].mxu0
      %v3722 = vpop.f32.mrb[0].mxu0
      %v3723 = vadd.f32 0.0, %v3722
      %v3724 = vpop.f32.mrb[0].mxu0
      %3725 = vmatprep.mubr.bf16.mxu0 0
      %3726 = vmatmul.mubr.bf16.gmra.mrb[0].mxu0 %v1996
      %v3727 = vpop.f32.mrb[0].mxu0
      %v3728 = vadd.f32 0.0, %v3727
      %v3729 = vpop.f32.mrb[0].mxu0
      %v3730 = vpop.f32.mrb[0].mxu0
      %v3731 = vadd.f32 0.0, %v3730
      %v3732 = vpop.f32.mrb[0].mxu0
      %3733 = vmatprep.mubr.bf16.mxu0 0
      %3734 = vmatmul.mubr.bf16.gmra.mrb[0].mxu0 %v1999
      %v3735 = vpop.f32.mrb[0].mxu0
      %v3736 = vadd.f32 0.0, %v3735
      %v3737 = vpop.f32.mrb[0].mxu0
      %v3738 = vpop.f32.mrb[0].mxu0
      %v3739 = vadd.f32 0.0, %v3738
      %v3740 = vpop.f32.mrb[0].mxu0
      %3741 = vmatprep.mubr.bf16.mxu0 0
      %3742 = vmatmul.mubr.bf16.gmra.mrb[0].mxu0 %v2002
      %v3743 = vpop.f32.mrb[0].mxu0
      %v3744 = vadd.f32 0.0, %v3743
      %v3745 = vpop.f32.mrb[0].mxu0
      %v3746 = vpop.f32.mrb[0].mxu0
      %v3747 = vadd.f32 0.0, %v3746
      %v3748 = vpop.f32.mrb[0].mxu0
      %3749 = vmatprep.mubr.bf16.mxu0 0
      %3750 = vmatmul.mubr.bf16.gmra.mrb[0].mxu0 %v2005
      %v3751 = vpop.f32.mrb[0].mxu0
      %v3752 = vadd.f32 0.0, %v3751
      %v3753 = vpop.f32.mrb[0].mxu0
      %v3754 = vpop.f32.mrb[0].mxu0
      %v3755 = vadd.f32 0.0, %v3754
      %v3756 = vpop.f32.mrb[0].mxu0
      %3757 = vmatprep.mubr.bf16.mxu0 0
      %3758 = vmatmul.mubr.bf16.gmra.mrb[0].mxu0 %v2008
      %v3759 = vpop.f32.mrb[0].mxu0
      %v3760 = vadd.f32 0.0, %v3759
      %v3761 = vpop.f32.mrb[0].mxu0
      %v3762 = vpop.f32.mrb[0].mxu0
      %v3763 = vadd.f32 0.0, %v3762
      %v3764 = vpop.f32.mrb[0].mxu0
      %3765 = vmatprep.mubr.bf16.mxu0 0
      %3766 = vmatmul.mubr.bf16.gmra.mrb[0].mxu0 %v2995
      %v3767 = vpop.f32.mrb[0].mxu0
      %v3768 = vadd.f32 0.0, %v3767
      %v3769 = vpop.f32.mrb[0].mxu0
      %v3770 = vpop.f32.mrb[0].mxu0
      %v3771 = vadd.f32 0.0, %v3770
      %v3772 = vpop.f32.mrb[0].mxu0
      %3773 = vmatprep.mubr.bf16.mxu0 0
      %3774 = vmatmul.mubr.bf16.gmra.mrb[0].mxu0 %v1963
      %v3775 = vpop.f32.mrb[0].mxu0
      %v3776 = vadd.f32 0.0, %v3775
      %v3777 = vpop.f32.mrb[0].mxu0
      %v3778 = vpop.f32.mrb[0].mxu0
      %v3779 = vadd.f32 0.0, %v3778
      %v3780 = vpop.f32.mrb[0].mxu0
      %3781 = vdwg.mxu0
      %v3782 = vadd.f32 %v3583, %v3656
      %v3783 = vadd.f32 %v3584, %v3659
      %v3784 = vadd.f32 %v3585, %v3664
      %v3785 = vadd.f32 %v3586, %v3667
      %v3786 = vadd.f32 %v3587, %v3672
      %v3787 = vadd.f32 %v3588, %v3675
      %v3788 = vadd.f32 %v3589, %v3680
      %v3789 = vadd.f32 %v3590, %v3683
      %v3790 = vadd.f32 %v3591, %v3688
      %v3791 = vadd.f32 %v3592, %v3691
      %v3792 = vadd.f32 %v3593, %v3696
      %v3793 = vadd.f32 %v3594, %v3699
      %v3794 = vadd.f32 %v3595, %v3704
      %v3795 = vadd.f32 %v3596, %v3707
      %v3796 = vadd.f32 %v3597, %v3712
      %v3797 = vadd.f32 %v3598, %v3715
      %v3798 = vadd.f32 %v3599, %v3720
      %v3799 = vadd.f32 %v3600, %v3723
      %v3800 = vadd.f32 %v3601, %v3728
      %v3801 = vadd.f32 %v3602, %v3731
      %v3802 = vadd.f32 %v3603, %v3736
      %v3803 = vadd.f32 %v3604, %v3739
      %v3804 = vadd.f32 %v3605, %v3744
      %v3805 = vadd.f32 %v3606, %v3747
      %v3806 = vadd.f32 %v3607, %v3752
      %v3807 = vadd.f32 %v3608, %v3755
      %v3808 = vadd.f32 %v3609, %v3760
      %v3809 = vadd.f32 %v3610, %v3763
      %v3810 = vadd.f32 %v3611, %v3768
      %v3811 = vadd.f32 %v3612, %v3771
      %v3812 = vadd.f32 %v3613, %v3776
      %v3813 = vadd.f32 %v3614, %v3779
      %s3814 = scalar_lea.vmem %s7, 28
      %v3815 = vld [vmem:[%s3814] sm:$0xf]
      %v3816 = vpack.c.bf16 %v3815, %v3815
      %v3818 = vsel %vm521, %v3816, 0
      %3820 = vmatprep.subr.bf16.mxu0 0
      %3821 = vmatpush1.bf16.msra.mxu0 %v3818
      %3822 = vmatprep.subr.bf16.mxu0 0
      %3823 = vmatpush1.bf16.msra.mxu0 0
      %3824 = vmatprep.subr.bf16.mxu0 0
      %3825 = vmatpush1.bf16.msra.mxu0 0
      %3826 = vmatprep.subr.bf16.mxu0 0
      %3827 = vmatpush1.bf16.msra.mxu0 0
      %3828 = vmatprep.subr.bf16.mxu0 0
      %3829 = vmatpush1.bf16.msra.mxu0 0
      %3830 = vmatprep.subr.bf16.mxu0 0
      %3831 = vmatpush1.bf16.msra.mxu0 0
      %3832 = vmatprep.subr.bf16.mxu0 0
      %3833 = vmatpush1.bf16.msra.mxu0 0
      %3834 = vmatprep.subr.bf16.mxu0 0
      %3835 = vmatpush1.bf16.msra.mxu0 0
      %3836 = vmatprep.subr.bf16.mxu0 0
      %3837 = vmatpush1.bf16.msra.mxu0 0
      %3838 = vmatprep.subr.bf16.mxu0 0
      %3839 = vmatpush1.bf16.msra.mxu0 0
      %3840 = vmatprep.subr.bf16.mxu0 0
      %3841 = vmatpush1.bf16.msra.mxu0 0
      %3842 = vmatprep.subr.bf16.mxu0 0
      %3843 = vmatpush1.bf16.msra.mxu0 0
      %3844 = vmatprep.subr.bf16.mxu0 0
      %3845 = vmatpush1.bf16.msra.mxu0 0
      %3846 = vmatprep.subr.bf16.mxu0 0
      %3847 = vmatpush1.bf16.msra.mxu0 0
      %3848 = vmatprep.subr.bf16.mxu0 0
      %3849 = vmatpush1.bf16.msra.mxu0 0
      %3850 = vmatprep.subr.bf16.mxu0 0
      %3851 = vmatpush1.bf16.msra.mxu0 0
      %3852 = vmatprep.mubr.bf16.mxu0 0
      %3853 = vmatmul.mubr.bf16.gmra.mrb[0].mxu0 %v2377
      %v3854 = vpop.f32.mrb[0].mxu0
      %v3855 = vadd.f32 0.0, %v3854
      %v3856 = vpop.f32.mrb[0].mxu0
      %v3857 = vpop.f32.mrb[0].mxu0
      %v3858 = vadd.f32 0.0, %v3857
      %v3859 = vpop.f32.mrb[0].mxu0
      %3860 = vmatprep.mubr.bf16.mxu0 0
      %3861 = vmatmul.mubr.bf16.gmra.mrb[0].mxu0 %v2380
      %v3862 = vpop.f32.mrb[0].mxu0
      %v3863 = vadd.f32 0.0, %v3862
      %v3864 = vpop.f32.mrb[0].mxu0
      %v3865 = vpop.f32.mrb[0].mxu0
      %v3866 = vadd.f32 0.0, %v3865
      %v3867 = vpop.f32.mrb[0].mxu0
      %3868 = vmatprep.mubr.bf16.mxu0 0
      %3869 = vmatmul.mubr.bf16.gmra.mrb[0].mxu0 %v2383
      %v3870 = vpop.f32.mrb[0].mxu0
      %v3871 = vadd.f32 0.0, %v3870
      %v3872 = vpop.f32.mrb[0].mxu0
      %v3873 = vpop.f32.mrb[0].mxu0
      %v3874 = vadd.f32 0.0, %v3873
      %v3875 = vpop.f32.mrb[0].mxu0
      %3876 = vmatprep.mubr.bf16.mxu0 0
      %3877 = vmatmul.mubr.bf16.gmra.mrb[0].mxu0 %v2386
      %v3878 = vpop.f32.mrb[0].mxu0
      %v3879 = vadd.f32 0.0, %v3878
      %v3880 = vpop.f32.mrb[0].mxu0
      %v3881 = vpop.f32.mrb[0].mxu0
      %v3882 = vadd.f32 0.0, %v3881
      %v3883 = vpop.f32.mrb[0].mxu0
      %3884 = vmatprep.mubr.bf16.mxu0 0
      %3885 = vmatmul.mubr.bf16.gmra.mrb[0].mxu0 %v2389
      %v3886 = vpop.f32.mrb[0].mxu0
      %v3887 = vadd.f32 0.0, %v3886
      %v3888 = vpop.f32.mrb[0].mxu0
      %v3889 = vpop.f32.mrb[0].mxu0
      %v3890 = vadd.f32 0.0, %v3889
      %v3891 = vpop.f32.mrb[0].mxu0
      %3892 = vmatprep.mubr.bf16.mxu0 0
      %3893 = vmatmul.mubr.bf16.gmra.mrb[0].mxu0 %v2392
      %v3894 = vpop.f32.mrb[0].mxu0
      %v3895 = vadd.f32 0.0, %v3894
      %v3896 = vpop.f32.mrb[0].mxu0
      %v3897 = vpop.f32.mrb[0].mxu0
      %v3898 = vadd.f32 0.0, %v3897
      %v3899 = vpop.f32.mrb[0].mxu0
      %3900 = vmatprep.mubr.bf16.mxu0 0
      %3901 = vmatmul.mubr.bf16.gmra.mrb[0].mxu0 %v2395
      %v3902 = vpop.f32.mrb[0].mxu0
      %v3903 = vadd.f32 0.0, %v3902
      %v3904 = vpop.f32.mrb[0].mxu0
      %v3905 = vpop.f32.mrb[0].mxu0
      %v3906 = vadd.f32 0.0, %v3905
      %v3907 = vpop.f32.mrb[0].mxu0
      %3908 = vmatprep.mubr.bf16.mxu0 0
      %3909 = vmatmul.mubr.bf16.gmra.mrb[0].mxu0 %v2398
      %v3910 = vpop.f32.mrb[0].mxu0
      %v3911 = vadd.f32 0.0, %v3910
      %v3912 = vpop.f32.mrb[0].mxu0
      %v3913 = vpop.f32.mrb[0].mxu0
      %v3914 = vadd.f32 0.0, %v3913
      %v3915 = vpop.f32.mrb[0].mxu0
      %3916 = vmatprep.mubr.bf16.mxu0 0
      %3917 = vmatmul.mubr.bf16.gmra.mrb[0].mxu0 %v2401
      %v3918 = vpop.f32.mrb[0].mxu0
      %v3919 = vadd.f32 0.0, %v3918
      %v3920 = vpop.f32.mrb[0].mxu0
      %v3921 = vpop.f32.mrb[0].mxu0
      %v3922 = vadd.f32 0.0, %v3921
      %v3923 = vpop.f32.mrb[0].mxu0
      %3924 = vmatprep.mubr.bf16.mxu0 0
      %3925 = vmatmul.mubr.bf16.gmra.mrb[0].mxu0 %v2404
      %v3926 = vpop.f32.mrb[0].mxu0
      %v3927 = vadd.f32 0.0, %v3926
      %v3928 = vpop.f32.mrb[0].mxu0
      %v3929 = vpop.f32.mrb[0].mxu0
      %v3930 = vadd.f32 0.0, %v3929
      %v3931 = vpop.f32.mrb[0].mxu0
      %3932 = vmatprep.mubr.bf16.mxu0 0
      %3933 = vmatmul.mubr.bf16.gmra.mrb[0].mxu0 %v2407
      %v3934 = vpop.f32.mrb[0].mxu0
      %v3935 = vadd.f32 0.0, %v3934
      %v3936 = vpop.f32.mrb[0].mxu0
      %v3937 = vpop.f32.mrb[0].mxu0
      %v3938 = vadd.f32 0.0, %v3937
      %v3939 = vpop.f32.mrb[0].mxu0
      %3940 = vmatprep.mubr.bf16.mxu0 0
      %3941 = vmatmul.mubr.bf16.gmra.mrb[0].mxu0 %v2410
      %v3942 = vpop.f32.mrb[0].mxu0
      %v3943 = vadd.f32 0.0, %v3942
      %v3944 = vpop.f32.mrb[0].mxu0
      %v3945 = vpop.f32.mrb[0].mxu0
      %v3946 = vadd.f32 0.0, %v3945
      %v3947 = vpop.f32.mrb[0].mxu0
      %3948 = vmatprep.mubr.bf16.mxu0 0
      %3949 = vmatmul.mubr.bf16.gmra.mrb[0].mxu0 %v2413
      %v3950 = vpop.f32.mrb[0].mxu0
      %v3951 = vadd.f32 0.0, %v3950
      %v3952 = vpop.f32.mrb[0].mxu0
      %v3953 = vpop.f32.mrb[0].mxu0
      %v3954 = vadd.f32 0.0, %v3953
      %v3955 = vpop.f32.mrb[0].mxu0
      %3956 = vmatprep.mubr.bf16.mxu0 0
      %3957 = vmatmul.mubr.bf16.gmra.mrb[0].mxu0 %v2416
      %v3958 = vpop.f32.mrb[0].mxu0
      %v3959 = vadd.f32 0.0, %v3958
      %v3960 = vpop.f32.mrb[0].mxu0
      %v3961 = vpop.f32.mrb[0].mxu0
      %v3962 = vadd.f32 0.0, %v3961
      %v3963 = vpop.f32.mrb[0].mxu0
      %3964 = vmatprep.mubr.bf16.mxu0 0
      %3965 = vmatmul.mubr.bf16.gmra.mrb[0].mxu0 %v3207
      %v3966 = vpop.f32.mrb[0].mxu0
      %v3967 = vadd.f32 0.0, %v3966
      %v3968 = vpop.f32.mrb[0].mxu0
      %v3969 = vpop.f32.mrb[0].mxu0
      %v3970 = vadd.f32 0.0, %v3969
      %v3971 = vpop.f32.mrb[0].mxu0
      %3972 = vmatprep.mubr.bf16.mxu0 0
      %3973 = vmatmul.mubr.bf16.gmra.mrb[0].mxu0 %v2371
      %v3974 = vpop.f32.mrb[0].mxu0
      %v3975 = vadd.f32 0.0, %v3974
      %v3976 = vpop.f32.mrb[0].mxu0
      %v3977 = vpop.f32.mrb[0].mxu0
      %v3978 = vadd.f32 0.0, %v3977
      %v3979 = vpop.f32.mrb[0].mxu0
      %3980 = vdwg.mxu0
      %v3981 = vadd.f32 %v3782, %v3855
      %v3982 = vadd.f32 %v3783, %v3858
      %v3983 = vadd.f32 %v3784, %v3863
      %v3984 = vadd.f32 %v3785, %v3866
      %v3985 = vadd.f32 %v3786, %v3871
      %v3986 = vadd.f32 %v3787, %v3874
      %v3987 = vadd.f32 %v3788, %v3879
      %v3988 = vadd.f32 %v3789, %v3882
      %v3989 = vadd.f32 %v3790, %v3887
      %v3990 = vadd.f32 %v3791, %v3890
      %v3991 = vadd.f32 %v3792, %v3895
      %v3992 = vadd.f32 %v3793, %v3898
      %v3993 = vadd.f32 %v3794, %v3903
      %v3994 = vadd.f32 %v3795, %v3906
      %v3995 = vadd.f32 %v3796, %v3911
      %v3996 = vadd.f32 %v3797, %v3914
      %v3997 = vadd.f32 %v3798, %v3919
      %v3998 = vadd.f32 %v3799, %v3922
      %v3999 = vadd.f32 %v3800, %v3927
      %v4000 = vadd.f32 %v3801, %v3930
      %v4001 = vadd.f32 %v3802, %v3935
      %v4002 = vadd.f32 %v3803, %v3938
      %v4003 = vadd.f32 %v3804, %v3943
      %v4004 = vadd.f32 %v3805, %v3946
      %v4005 = vadd.f32 %v3806, %v3951
      %v4006 = vadd.f32 %v3807, %v3954
      %v4007 = vadd.f32 %v3808, %v3959
      %v4008 = vadd.f32 %v3809, %v3962
      %v4009 = vadd.f32 %v3810, %v3967
      %v4010 = vadd.f32 %v3811, %v3970
      %v4011 = vadd.f32 %v3812, %v3975
      %v4012 = vadd.f32 %v3813, %v3978
      %s4013 = scalar_lea.vmem %s7, 32
      %v4014 = vld [vmem:[%s4013] sm:$0xf]
      %v4015 = vpack.c.bf16 %v4014, %v4014
      %v4017 = vsel %vm521, %v4015, 0
      %4019 = vmatprep.subr.bf16.mxu0 0
      %4020 = vmatpush1.bf16.msra.mxu0 %v4017
      %4021 = vmatprep.subr.bf16.mxu0 0
      %4022 = vmatpush1.bf16.msra.mxu0 0
      %4023 = vmatprep.subr.bf16.mxu0 0
      %4024 = vmatpush1.bf16.msra.mxu0 0
      %4025 = vmatprep.subr.bf16.mxu0 0
      %4026 = vmatpush1.bf16.msra.mxu0 0
      %4027 = vmatprep.subr.bf16.mxu0 0
      %4028 = vmatpush1.bf16.msra.mxu0 0
      %4029 = vmatprep.subr.bf16.mxu0 0
      %4030 = vmatpush1.bf16.msra.mxu0 0
      %4031 = vmatprep.subr.bf16.mxu0 0
      %4032 = vmatpush1.bf16.msra.mxu0 0
      %4033 = vmatprep.subr.bf16.mxu0 0
      %4034 = vmatpush1.bf16.msra.mxu0 0
      %4035 = vmatprep.subr.bf16.mxu0 0
      %4036 = vmatpush1.bf16.msra.mxu0 0
      %4037 = vmatprep.subr.bf16.mxu0 0
      %4038 = vmatpush1.bf16.msra.mxu0 0
      %4039 = vmatprep.subr.bf16.mxu0 0
      %4040 = vmatpush1.bf16.msra.mxu0 0
      %4041 = vmatprep.subr.bf16.mxu0 0
      %4042 = vmatpush1.bf16.msra.mxu0 0
      %4043 = vmatprep.subr.bf16.mxu0 0
      %4044 = vmatpush1.bf16.msra.mxu0 0
      %4045 = vmatprep.subr.bf16.mxu0 0
      %4046 = vmatpush1.bf16.msra.mxu0 0
      %4047 = vmatprep.subr.bf16.mxu0 0
      %4048 = vmatpush1.bf16.msra.mxu0 0
      %4049 = vmatprep.subr.bf16.mxu0 0
      %4050 = vmatpush1.bf16.msra.mxu0 0
      %4051 = vmatprep.mubr.bf16.mxu0 0
      %4052 = vmatmul.mubr.bf16.gmra.mrb[0].mxu0 %v2753
      %v4053 = vpop.f32.mrb[0].mxu0
      %v4054 = vadd.f32 0.0, %v4053
      %v4055 = vpop.f32.mrb[0].mxu0
      %v4056 = vpop.f32.mrb[0].mxu0
      %v4057 = vadd.f32 0.0, %v4056
      %v4058 = vpop.f32.mrb[0].mxu0
      %4059 = vmatprep.mubr.bf16.mxu0 0
      %4060 = vmatmul.mubr.bf16.gmra.mrb[0].mxu0 %v2756
      %v4061 = vpop.f32.mrb[0].mxu0
      %v4062 = vadd.f32 0.0, %v4061
      %v4063 = vpop.f32.mrb[0].mxu0
      %v4064 = vpop.f32.mrb[0].mxu0
      %v4065 = vadd.f32 0.0, %v4064
      %v4066 = vpop.f32.mrb[0].mxu0
      %4067 = vmatprep.mubr.bf16.mxu0 0
      %4068 = vmatmul.mubr.bf16.gmra.mrb[0].mxu0 %v2759
      %v4069 = vpop.f32.mrb[0].mxu0
      %v4070 = vadd.f32 0.0, %v4069
      %v4071 = vpop.f32.mrb[0].mxu0
      %v4072 = vpop.f32.mrb[0].mxu0
      %v4073 = vadd.f32 0.0, %v4072
      %v4074 = vpop.f32.mrb[0].mxu0
      %4075 = vmatprep.mubr.bf16.mxu0 0
      %4076 = vmatmul.mubr.bf16.gmra.mrb[0].mxu0 %v2762
      %v4077 = vpop.f32.mrb[0].mxu0
      %v4078 = vadd.f32 0.0, %v4077
      %v4079 = vpop.f32.mrb[0].mxu0
      %v4080 = vpop.f32.mrb[0].mxu0
      %v4081 = vadd.f32 0.0, %v4080
      %v4082 = vpop.f32.mrb[0].mxu0
      %4083 = vmatprep.mubr.bf16.mxu0 0
      %4084 = vmatmul.mubr.bf16.gmra.mrb[0].mxu0 %v2765
      %v4085 = vpop.f32.mrb[0].mxu0
      %v4086 = vadd.f32 0.0, %v4085
      %v4087 = vpop.f32.mrb[0].mxu0
      %v4088 = vpop.f32.mrb[0].mxu0
      %v4089 = vadd.f32 0.0, %v4088
      %v4090 = vpop.f32.mrb[0].mxu0
      %4091 = vmatprep.mubr.bf16.mxu0 0
      %4092 = vmatmul.mubr.bf16.gmra.mrb[0].mxu0 %v2768
      %v4093 = vpop.f32.mrb[0].mxu0
      %v4094 = vadd.f32 0.0, %v4093
      %v4095 = vpop.f32.mrb[0].mxu0
      %v4096 = vpop.f32.mrb[0].mxu0
      %v4097 = vadd.f32 0.0, %v4096
      %v4098 = vpop.f32.mrb[0].mxu0
      %4099 = vmatprep.mubr.bf16.mxu0 0
      %4100 = vmatmul.mubr.bf16.gmra.mrb[0].mxu0 %v2771
      %v4101 = vpop.f32.mrb[0].mxu0
      %v4102 = vadd.f32 0.0, %v4101
      %v4103 = vpop.f32.mrb[0].mxu0
      %v4104 = vpop.f32.mrb[0].mxu0
      %v4105 = vadd.f32 0.0, %v4104
      %v4106 = vpop.f32.mrb[0].mxu0
      %4107 = vmatprep.mubr.bf16.mxu0 0
      %4108 = vmatmul.mubr.bf16.gmra.mrb[0].mxu0 %v2774
      %v4109 = vpop.f32.mrb[0].mxu0
      %v4110 = vadd.f32 0.0, %v4109
      %v4111 = vpop.f32.mrb[0].mxu0
      %v4112 = vpop.f32.mrb[0].mxu0
      %v4113 = vadd.f32 0.0, %v4112
      %v4114 = vpop.f32.mrb[0].mxu0
      %4115 = vmatprep.mubr.bf16.mxu0 0
      %4116 = vmatmul.mubr.bf16.gmra.mrb[0].mxu0 %v2777
      %v4117 = vpop.f32.mrb[0].mxu0
      %v4118 = vadd.f32 0.0, %v4117
      %v4119 = vpop.f32.mrb[0].mxu0
      %v4120 = vpop.f32.mrb[0].mxu0
      %v4121 = vadd.f32 0.0, %v4120
      %v4122 = vpop.f32.mrb[0].mxu0
      %4123 = vmatprep.mubr.bf16.mxu0 0
      %4124 = vmatmul.mubr.bf16.gmra.mrb[0].mxu0 %v2780
      %v4125 = vpop.f32.mrb[0].mxu0
      %v4126 = vadd.f32 0.0, %v4125
      %v4127 = vpop.f32.mrb[0].mxu0
      %v4128 = vpop.f32.mrb[0].mxu0
      %v4129 = vadd.f32 0.0, %v4128
      %v4130 = vpop.f32.mrb[0].mxu0
      %4131 = vmatprep.mubr.bf16.mxu0 0
      %4132 = vmatmul.mubr.bf16.gmra.mrb[0].mxu0 %v2783
      %v4133 = vpop.f32.mrb[0].mxu0
      %v4134 = vadd.f32 0.0, %v4133
      %v4135 = vpop.f32.mrb[0].mxu0
      %v4136 = vpop.f32.mrb[0].mxu0
      %v4137 = vadd.f32 0.0, %v4136
      %v4138 = vpop.f32.mrb[0].mxu0
      %4139 = vmatprep.mubr.bf16.mxu0 0
      %4140 = vmatmul.mubr.bf16.gmra.mrb[0].mxu0 %v2786
      %v4141 = vpop.f32.mrb[0].mxu0
      %v4142 = vadd.f32 0.0, %v4141
      %v4143 = vpop.f32.mrb[0].mxu0
      %v4144 = vpop.f32.mrb[0].mxu0
      %v4145 = vadd.f32 0.0, %v4144
      %v4146 = vpop.f32.mrb[0].mxu0
      %4147 = vmatprep.mubr.bf16.mxu0 0
      %4148 = vmatmul.mubr.bf16.gmra.mrb[0].mxu0 %v2789
      %v4149 = vpop.f32.mrb[0].mxu0
      %v4150 = vadd.f32 0.0, %v4149
      %v4151 = vpop.f32.mrb[0].mxu0
      %v4152 = vpop.f32.mrb[0].mxu0
      %v4153 = vadd.f32 0.0, %v4152
      %v4154 = vpop.f32.mrb[0].mxu0
      %4155 = vmatprep.mubr.bf16.mxu0 0
      %4156 = vmatmul.mubr.bf16.gmra.mrb[0].mxu0 %v2792
      %v4157 = vpop.f32.mrb[0].mxu0
      %v4158 = vadd.f32 0.0, %v4157
      %v4159 = vpop.f32.mrb[0].mxu0
      %v4160 = vpop.f32.mrb[0].mxu0
      %v4161 = vadd.f32 0.0, %v4160
      %v4162 = vpop.f32.mrb[0].mxu0
      %4163 = vmatprep.mubr.bf16.mxu0 0
      %4164 = vmatmul.mubr.bf16.gmra.mrb[0].mxu0 %v3417
      %v4165 = vpop.f32.mrb[0].mxu0
      %v4166 = vadd.f32 0.0, %v4165
      %v4167 = vpop.f32.mrb[0].mxu0
      %v4168 = vpop.f32.mrb[0].mxu0
      %v4169 = vadd.f32 0.0, %v4168
      %v4170 = vpop.f32.mrb[0].mxu0
      %4171 = vmatprep.mubr.bf16.mxu0 0
      %4172 = vmatmul.mubr.bf16.gmra.mrb[0].mxu0 %v2747
      %v4173 = vpop.f32.mrb[0].mxu0
      %v4174 = vadd.f32 0.0, %v4173
      %v4175 = vpop.f32.mrb[0].mxu0
      %v4176 = vpop.f32.mrb[0].mxu0
      %v4177 = vadd.f32 0.0, %v4176
      %v4178 = vpop.f32.mrb[0].mxu0
      %4179 = vdwg.mxu0
      %v4180 = vadd.f32 %v3981, %v4054
      %v4181 = vadd.f32 %v3982, %v4057
      %v4182 = vadd.f32 %v3983, %v4062
      %v4183 = vadd.f32 %v3984, %v4065
      %v4184 = vadd.f32 %v3985, %v4070
      %v4185 = vadd.f32 %v3986, %v4073
      %v4186 = vadd.f32 %v3987, %v4078
      %v4187 = vadd.f32 %v3988, %v4081
      %v4188 = vadd.f32 %v3989, %v4086
      %v4189 = vadd.f32 %v3990, %v4089
      %v4190 = vadd.f32 %v3991, %v4094
      %v4191 = vadd.f32 %v3992, %v4097
      %v4192 = vadd.f32 %v3993, %v4102
      %v4193 = vadd.f32 %v3994, %v4105
      %v4194 = vadd.f32 %v3995, %v4110
      %v4195 = vadd.f32 %v3996, %v4113
      %v4196 = vadd.f32 %v3997, %v4118
      %v4197 = vadd.f32 %v3998, %v4121
      %v4198 = vadd.f32 %v3999, %v4126
      %v4199 = vadd.f32 %v4000, %v4129
      %v4200 = vadd.f32 %v4001, %v4134
      %v4201 = vadd.f32 %v4002, %v4137
      %v4202 = vadd.f32 %v4003, %v4142
      %v4203 = vadd.f32 %v4004, %v4145
      %v4204 = vadd.f32 %v4005, %v4150
      %v4205 = vadd.f32 %v4006, %v4153
      %v4206 = vadd.f32 %v4007, %v4158
      %v4207 = vadd.f32 %v4008, %v4161
      %v4208 = vadd.f32 %v4009, %v4166
      %v4209 = vadd.f32 %v4010, %v4169
      %v4210 = vadd.f32 %v4011, %v4174
      %v4211 = vadd.f32 %v4012, %v4177
      %v4212 = vsub.f32 0.0, %v4180
      %v4213 = vsub.f32 0.0, %v4181
      %v4214 = vsub.f32 0.0, %v4182
      %v4215 = vsub.f32 0.0, %v4183
      %v4216 = vsub.f32 0.0, %v4184
      %v4217 = vsub.f32 0.0, %v4185
      %v4218 = vsub.f32 0.0, %v4186
      %v4219 = vsub.f32 0.0, %v4187
      %v4220 = vsub.f32 0.0, %v4188
      %v4221 = vsub.f32 0.0, %v4189
      %v4222 = vsub.f32 0.0, %v4190
      %v4223 = vsub.f32 0.0, %v4191
      %v4224 = vsub.f32 0.0, %v4192
      %v4225 = vsub.f32 0.0, %v4193
      %v4226 = vsub.f32 0.0, %v4194
      %v4227 = vsub.f32 0.0, %v4195
      %v4228 = vsub.f32 0.0, %v4196
      %v4229 = vsub.f32 0.0, %v4197
      %v4230 = vsub.f32 0.0, %v4198
      %v4231 = vsub.f32 0.0, %v4199
      %v4232 = vsub.f32 0.0, %v4200
      %v4233 = vsub.f32 0.0, %v4201
      %v4234 = vsub.f32 0.0, %v4202
      %v4235 = vsub.f32 0.0, %v4203
      %v4236 = vsub.f32 0.0, %v4204
      %v4237 = vsub.f32 0.0, %v4205
      %v4238 = vsub.f32 0.0, %v4206
      %v4239 = vsub.f32 0.0, %v4207
      %v4240 = vsub.f32 0.0, %v4208
      %v4241 = vsub.f32 0.0, %v4209
      %v4242 = vsub.f32 0.0, %v4210
      %v4243 = vsub.f32 0.0, %v4211
      %v4244 = vmul.f32 %v4212, 1.442695
      %v4245 = vpow.pop %v4244
      %v4246 = vmul.f32 %v4213, 1.442695
      %v4247 = vpow.pop %v4246
      %v4248 = vmul.f32 %v4214, 1.442695
      %v4249 = vpow.pop %v4248
      %v4250 = vmul.f32 %v4215, 1.442695
      %v4251 = vpow.pop %v4250
      %v4252 = vmul.f32 %v4216, 1.442695
      %v4253 = vpow.pop %v4252
      %v4254 = vmul.f32 %v4217, 1.442695
      %v4255 = vpow.pop %v4254
      %v4256 = vmul.f32 %v4218, 1.442695
      %v4257 = vpow.pop %v4256
      %v4258 = vmul.f32 %v4219, 1.442695
      %v4259 = vpow.pop %v4258
      %v4260 = vmul.f32 %v4220, 1.442695
      %v4261 = vpow.pop %v4260
      %v4262 = vmul.f32 %v4221, 1.442695
      %v4263 = vpow.pop %v4262
      %v4264 = vmul.f32 %v4222, 1.442695
      %v4265 = vpow.pop %v4264
      %v4266 = vmul.f32 %v4223, 1.442695
      %v4267 = vpow.pop %v4266
      %v4268 = vmul.f32 %v4224, 1.442695
      %v4269 = vpow.pop %v4268
      %v4270 = vmul.f32 %v4225, 1.442695
      %v4271 = vpow.pop %v4270
      %v4272 = vmul.f32 %v4226, 1.442695
      %v4273 = vpow.pop %v4272
      %v4274 = vmul.f32 %v4227, 1.442695
      %v4275 = vpow.pop %v4274
      %v4276 = vmul.f32 %v4228, 1.442695
      %v4277 = vpow.pop %v4276
      %v4278 = vmul.f32 %v4229, 1.442695
      %v4279 = vpow.pop %v4278
      %v4280 = vmul.f32 %v4230, 1.442695
      %v4281 = vpow.pop %v4280
      %v4282 = vmul.f32 %v4231, 1.442695
      %v4283 = vpow.pop %v4282
      %v4284 = vmul.f32 %v4232, 1.442695
      %v4285 = vpow.pop %v4284
      %v4286 = vmul.f32 %v4233, 1.442695
      %v4287 = vpow.pop %v4286
      %v4288 = vmul.f32 %v4234, 1.442695
      %v4289 = vpow.pop %v4288
      %v4290 = vmul.f32 %v4235, 1.442695
      %v4291 = vpow.pop %v4290
      %v4292 = vmul.f32 %v4236, 1.442695
      %v4293 = vpow.pop %v4292
      %v4294 = vmul.f32 %v4237, 1.442695
      %v4295 = vpow.pop %v4294
      %v4296 = vmul.f32 %v4238, 1.442695
      %v4297 = vpow.pop %v4296
      %v4298 = vmul.f32 %v4239, 1.442695
      %v4299 = vpow.pop %v4298
      %v4300 = vmul.f32 %v4240, 1.442695
      %v4301 = vpow.pop %v4300
      %v4302 = vmul.f32 %v4241, 1.442695
      %v4303 = vpow.pop %v4302
      %v4304 = vmul.f32 %v4242, 1.442695
      %v4305 = vpow.pop %v4304
      %v4306 = vmul.f32 %v4243, 1.442695
      %v4307 = vpow.pop %v4306
      %v4308 = vadd.f32 %v4245, 1.0
      %v4309 = vadd.f32 %v4247, 1.0
      %v4310 = vadd.f32 %v4249, 1.0
      %v4311 = vadd.f32 %v4251, 1.0
      %v4312 = vadd.f32 %v4253, 1.0
      %v4313 = vadd.f32 %v4255, 1.0
      %v4314 = vadd.f32 %v4257, 1.0
      %v4315 = vadd.f32 %v4259, 1.0
      %v4316 = vadd.f32 %v4261, 1.0
      %v4317 = vadd.f32 %v4263, 1.0
      %v4318 = vadd.f32 %v4265, 1.0
      %v4319 = vadd.f32 %v4267, 1.0
      %v4320 = vadd.f32 %v4269, 1.0
      %v4321 = vadd.f32 %v4271, 1.0
      %v4322 = vadd.f32 %v4273, 1.0
      %v4323 = vadd.f32 %v4275, 1.0
      %v4324 = vadd.f32 %v4277, 1.0
      %v4325 = vadd.f32 %v4279, 1.0
      %v4326 = vadd.f32 %v4281, 1.0
      %v4327 = vadd.f32 %v4283, 1.0
      %v4328 = vadd.f32 %v4285, 1.0
      %v4329 = vadd.f32 %v4287, 1.0
      %v4330 = vadd.f32 %v4289, 1.0
      %v4331 = vadd.f32 %v4291, 1.0
      %v4332 = vadd.f32 %v4293, 1.0
      %v4333 = vadd.f32 %v4295, 1.0
      %v4334 = vadd.f32 %v4297, 1.0
      %v4335 = vadd.f32 %v4299, 1.0
      %v4336 = vadd.f32 %v4301, 1.0
      %v4337 = vadd.f32 %v4303, 1.0
      %v4338 = vadd.f32 %v4305, 1.0
      %v4339 = vadd.f32 %v4307, 1.0
      %v4340 = vrcp.pop %v4308
      %v4341 = vmul.f32 1.0, %v4340
      %v4342 = vrcp.pop %v4309
      %v4343 = vmul.f32 1.0, %v4342
      %v4344 = vrcp.pop %v4310
      %v4345 = vmul.f32 1.0, %v4344
      %v4346 = vrcp.pop %v4311
      %v4347 = vmul.f32 1.0, %v4346
      %v4348 = vrcp.pop %v4312
      %v4349 = vmul.f32 1.0, %v4348
      %v4350 = vrcp.pop %v4313
      %v4351 = vmul.f32 1.0, %v4350
      %v4352 = vrcp.pop %v4314
      %v4353 = vmul.f32 1.0, %v4352
      %v4354 = vrcp.pop %v4315
      %v4355 = vmul.f32 1.0, %v4354
      %v4356 = vrcp.pop %v4316
      %v4357 = vmul.f32 1.0, %v4356
      %v4358 = vrcp.pop %v4317
      %v4359 = vmul.f32 1.0, %v4358
      %v4360 = vrcp.pop %v4318
      %v4361 = vmul.f32 1.0, %v4360
      %v4362 = vrcp.pop %v4319
      %v4363 = vmul.f32 1.0, %v4362
      %v4364 = vrcp.pop %v4320
      %v4365 = vmul.f32 1.0, %v4364
      %v4366 = vrcp.pop %v4321
      %v4367 = vmul.f32 1.0, %v4366
      %v4368 = vrcp.pop %v4322
      %v4369 = vmul.f32 1.0, %v4368
      %v4370 = vrcp.pop %v4323
      %v4371 = vmul.f32 1.0, %v4370
      %v4372 = vrcp.pop %v4324
      %v4373 = vmul.f32 1.0, %v4372
      %v4374 = vrcp.pop %v4325
      %v4375 = vmul.f32 1.0, %v4374
      %v4376 = vrcp.pop %v4326
      %v4377 = vmul.f32 1.0, %v4376
      %v4378 = vrcp.pop %v4327
      %v4379 = vmul.f32 1.0, %v4378
      %v4380 = vrcp.pop %v4328
      %v4381 = vmul.f32 1.0, %v4380
      %v4382 = vrcp.pop %v4329
      %v4383 = vmul.f32 1.0, %v4382
      %v4384 = vrcp.pop %v4330
      %v4385 = vmul.f32 1.0, %v4384
      %v4386 = vrcp.pop %v4331
      %v4387 = vmul.f32 1.0, %v4386
      %v4388 = vrcp.pop %v4332
      %v4389 = vmul.f32 1.0, %v4388
      %v4390 = vrcp.pop %v4333
      %v4391 = vmul.f32 1.0, %v4390
      %v4392 = vrcp.pop %v4334
      %v4393 = vmul.f32 1.0, %v4392
      %v4394 = vrcp.pop %v4335
      %v4395 = vmul.f32 1.0, %v4394
      %v4396 = vrcp.pop %v4336
      %v4397 = vmul.f32 1.0, %v4396
      %v4398 = vrcp.pop %v4337
      %v4399 = vmul.f32 1.0, %v4398
      %v4400 = vrcp.pop %v4338
      %v4401 = vmul.f32 1.0, %v4400
      %v4402 = vrcp.pop %v4339
      %v4403 = vmul.f32 1.0, %v4402
      %v4404 = vmul.f32 %v4180, %v4341
      %v4405 = vmul.f32 %v4181, %v4343
      %v4406 = vmul.f32 %v4182, %v4345
      %v4407 = vmul.f32 %v4183, %v4347
      %v4408 = vmul.f32 %v4184, %v4349
      %v4409 = vmul.f32 %v4185, %v4351
      %v4410 = vmul.f32 %v4186, %v4353
      %v4411 = vmul.f32 %v4187, %v4355
      %v4412 = vmul.f32 %v4188, %v4357
      %v4413 = vmul.f32 %v4189, %v4359
      %v4414 = vmul.f32 %v4190, %v4361
      %v4415 = vmul.f32 %v4191, %v4363
      %v4416 = vmul.f32 %v4192, %v4365
      %v4417 = vmul.f32 %v4193, %v4367
      %v4418 = vmul.f32 %v4194, %v4369
      %v4419 = vmul.f32 %v4195, %v4371
      %v4420 = vmul.f32 %v4196, %v4373
      %v4421 = vmul.f32 %v4197, %v4375
      %v4422 = vmul.f32 %v4198, %v4377
      %v4423 = vmul.f32 %v4199, %v4379
      %v4424 = vmul.f32 %v4200, %v4381
      %v4425 = vmul.f32 %v4201, %v4383
      %v4426 = vmul.f32 %v4202, %v4385
      %v4427 = vmul.f32 %v4203, %v4387
      %v4428 = vmul.f32 %v4204, %v4389
      %v4429 = vmul.f32 %v4205, %v4391
      %v4430 = vmul.f32 %v4206, %v4393
      %v4431 = vmul.f32 %v4207, %v4395
      %v4432 = vmul.f32 %v4208, %v4397
      %v4433 = vmul.f32 %v4209, %v4399
      %v4434 = vmul.f32 %v4210, %v4401
      %v4435 = vmul.f32 %v4211, %v4403
      %v4436 = vadd.f32 %v878, %v4404
      %v4437 = vadd.f32 %v879, %v4405
      %v4438 = vadd.f32 %v880, %v4406
      %v4439 = vadd.f32 %v881, %v4407
      %v4440 = vadd.f32 %v882, %v4408
      %v4441 = vadd.f32 %v883, %v4409
      %v4442 = vadd.f32 %v884, %v4410
      %v4443 = vadd.f32 %v885, %v4411
      %v4444 = vadd.f32 %v886, %v4412
      %v4445 = vadd.f32 %v887, %v4413
      %v4446 = vadd.f32 %v888, %v4414
      %v4447 = vadd.f32 %v889, %v4415
      %v4448 = vadd.f32 %v890, %v4416
      %v4449 = vadd.f32 %v891, %v4417
      %v4450 = vadd.f32 %v892, %v4418
      %v4451 = vadd.f32 %v893, %v4419
      %v4452 = vadd.f32 %v894, %v4420
      %v4453 = vadd.f32 %v895, %v4421
      %v4454 = vadd.f32 %v896, %v4422
      %v4455 = vadd.f32 %v897, %v4423
      %v4456 = vadd.f32 %v898, %v4424
      %v4457 = vadd.f32 %v899, %v4425
      %v4458 = vadd.f32 %v900, %v4426
      %v4459 = vadd.f32 %v901, %v4427
      %v4460 = vadd.f32 %v902, %v4428
      %v4461 = vadd.f32 %v903, %v4429
      %v4462 = vadd.f32 %v904, %v4430
      %v4463 = vadd.f32 %v905, %v4431
      %v4464 = vadd.f32 %v906, %v4432
      %v4465 = vadd.f32 %v907, %v4433
      %v4466 = vadd.f32 %v908, %v4434
      %v4467 = vadd.f32 %v909, %v4435
      %v4468 = vld [vmem:[%s9] sm:$0xf]
      %v4469 = vpack.c.bf16 %v4437, %v4436
      %v4470 = vpack.c.bf16 %v4439, %v4438
      %v4471 = vpack.c.bf16 %v4441, %v4440
      %v4472 = vpack.c.bf16 %v4443, %v4442
      %v4473 = vpack.c.bf16 %v4445, %v4444
      %v4474 = vpack.c.bf16 %v4447, %v4446
      %v4475 = vpack.c.bf16 %v4449, %v4448
      %v4476 = vpack.c.bf16 %v4451, %v4450
      %v4477 = vpack.c.bf16 %v4453, %v4452
      %v4478 = vpack.c.bf16 %v4455, %v4454
      %v4479 = vpack.c.bf16 %v4457, %v4456
      %v4480 = vpack.c.bf16 %v4459, %v4458
      %v4481 = vpack.c.bf16 %v4461, %v4460
      %v4482 = vpack.c.bf16 %v4463, %v4462
      %v4483 = vpack.c.bf16 %v4465, %v4464
      %v4484 = vpack.c.bf16 %v4467, %v4466
      %v4485 = vpack.c.bf16 %v4468, %v4468
      %v4486 = vld [vmem:[%s10] sm:$0xf]
      %v4487 = vpack.c.bf16 %v1276, %v1275
      %v4488 = vpack.c.bf16 %v1278, %v1277
      %v4489 = vpack.c.bf16 %v1280, %v1279
      %v4490 = vpack.c.bf16 %v1282, %v1281
      %v4491 = vpack.c.bf16 %v1284, %v1283
      %v4492 = vpack.c.bf16 %v1286, %v1285
      %v4493 = vpack.c.bf16 %v1288, %v1287
      %v4494 = vpack.c.bf16 %v1290, %v1289
      %v4495 = vpack.c.bf16 %v1292, %v1291
      %v4496 = vpack.c.bf16 %v1294, %v1293
      %v4497 = vpack.c.bf16 %v1296, %v1295
      %v4498 = vpack.c.bf16 %v1298, %v1297
      %v4499 = vpack.c.bf16 %v1300, %v1299
      %v4500 = vpack.c.bf16 %v1302, %v1301
      %v4501 = vpack.c.bf16 %v1304, %v1303
      %v4502 = vpack.c.bf16 %v1306, %v1305
      %v4503 = vpack.c.bf16 %v4486, %v4486
      %v4505 = vsel %vm472, %v4487, 0
      %v4508 = vsel %vm472, %v4488, 0
      %v4511 = vsel %vm472, %v4489, 0
      %v4514 = vsel %vm472, %v4490, 0
      %v4517 = vsel %vm472, %v4491, 0
      %v4520 = vsel %vm472, %v4492, 0
      %v4523 = vsel %vm472, %v4493, 0
      %v4526 = vsel %vm472, %v4494, 0
      %v4529 = vsel %vm472, %v4495, 0
      %v4532 = vsel %vm472, %v4496, 0
      %v4535 = vsel %vm472, %v4497, 0
      %v4538 = vsel %vm472, %v4498, 0
      %v4541 = vsel %vm472, %v4499, 0
      %v4544 = vsel %vm472, %v4500, 0
      %v4547 = vsel %vm472, %v4501, 0
      %v4550 = vsel %vm472, %v4502, 0
      %v4553 = vsel %vm521, %v4503, 0
      %4555 = vmatprep.subr.bf16.mxu0 0
      %4556 = vmatpush1.bf16.msra.mxu0 %v4553
      %4557 = vmatprep.subr.bf16.mxu0 0
      %4558 = vmatpush1.bf16.msra.mxu0 0
      %4559 = vmatprep.subr.bf16.mxu0 0
      %4560 = vmatpush1.bf16.msra.mxu0 0
      %4561 = vmatprep.subr.bf16.mxu0 0
      %4562 = vmatpush1.bf16.msra.mxu0 0
      %4563 = vmatprep.subr.bf16.mxu0 0
      %4564 = vmatpush1.bf16.msra.mxu0 0
      %4565 = vmatprep.subr.bf16.mxu0 0
      %4566 = vmatpush1.bf16.msra.mxu0 0
      %4567 = vmatprep.subr.bf16.mxu0 0
      %4568 = vmatpush1.bf16.msra.mxu0 0
      %4569 = vmatprep.subr.bf16.mxu0 0
      %4570 = vmatpush1.bf16.msra.mxu0 0
      %4571 = vmatprep.subr.bf16.mxu0 0
      %4572 = vmatpush1.bf16.msra.mxu0 0
      %4573 = vmatprep.subr.bf16.mxu0 0
      %4574 = vmatpush1.bf16.msra.mxu0 0
      %4575 = vmatprep.subr.bf16.mxu0 0
      %4576 = vmatpush1.bf16.msra.mxu0 0
      %4577 = vmatprep.subr.bf16.mxu0 0
      %4578 = vmatpush1.bf16.msra.mxu0 0
      %4579 = vmatprep.subr.bf16.mxu0 0
      %4580 = vmatpush1.bf16.msra.mxu0 0
      %4581 = vmatprep.subr.bf16.mxu0 0
      %4582 = vmatpush1.bf16.msra.mxu0 0
      %4583 = vmatprep.subr.bf16.mxu0 0
      %4584 = vmatpush1.bf16.msra.mxu0 0
      %4585 = vmatprep.subr.bf16.mxu0 0
      %4586 = vmatpush1.bf16.msra.mxu0 0
      %4587 = vmatprep.mubr.bf16.mxu0 0
      %4588 = vmatmul.mubr.bf16.gmra.mrb[0].mxu0 %v4505
      %v4589 = vpop.f32.mrb[0].mxu0
      %v4590 = vadd.f32 0.0, %v4589
      %v4591 = vpop.f32.mrb[0].mxu0
      %v4592 = vpop.f32.mrb[0].mxu0
      %v4593 = vadd.f32 0.0, %v4592
      %v4594 = vpop.f32.mrb[0].mxu0
      %4595 = vmatprep.mubr.bf16.mxu0 0
      %4596 = vmatmul.mubr.bf16.gmra.mrb[0].mxu0 %v4508
      %v4597 = vpop.f32.mrb[0].mxu0
      %v4598 = vadd.f32 0.0, %v4597
      %v4599 = vpop.f32.mrb[0].mxu0
      %v4600 = vpop.f32.mrb[0].mxu0
      %v4601 = vadd.f32 0.0, %v4600
      %v4602 = vpop.f32.mrb[0].mxu0
      %4603 = vmatprep.mubr.bf16.mxu0 0
      %4604 = vmatmul.mubr.bf16.gmra.mrb[0].mxu0 %v4511
      %v4605 = vpop.f32.mrb[0].mxu0
      %v4606 = vadd.f32 0.0, %v4605
      %v4607 = vpop.f32.mrb[0].mxu0
      %v4608 = vpop.f32.mrb[0].mxu0
      %v4609 = vadd.f32 0.0, %v4608
      %v4610 = vpop.f32.mrb[0].mxu0
      %4611 = vmatprep.mubr.bf16.mxu0 0
      %4612 = vmatmul.mubr.bf16.gmra.mrb[0].mxu0 %v4514
      %v4613 = vpop.f32.mrb[0].mxu0
      %v4614 = vadd.f32 0.0, %v4613
      %v4615 = vpop.f32.mrb[0].mxu0
      %v4616 = vpop.f32.mrb[0].mxu0
      %v4617 = vadd.f32 0.0, %v4616
      %v4618 = vpop.f32.mrb[0].mxu0
      %4619 = vmatprep.mubr.bf16.mxu0 0
      %4620 = vmatmul.mubr.bf16.gmra.mrb[0].mxu0 %v4517
      %v4621 = vpop.f32.mrb[0].mxu0
      %v4622 = vadd.f32 0.0, %v4621
      %v4623 = vpop.f32.mrb[0].mxu0
      %v4624 = vpop.f32.mrb[0].mxu0
      %v4625 = vadd.f32 0.0, %v4624
      %v4626 = vpop.f32.mrb[0].mxu0
      %4627 = vmatprep.mubr.bf16.mxu0 0
      %4628 = vmatmul.mubr.bf16.gmra.mrb[0].mxu0 %v4520
      %v4629 = vpop.f32.mrb[0].mxu0
      %v4630 = vadd.f32 0.0, %v4629
      %v4631 = vpop.f32.mrb[0].mxu0
      %v4632 = vpop.f32.mrb[0].mxu0
      %v4633 = vadd.f32 0.0, %v4632
      %v4634 = vpop.f32.mrb[0].mxu0
      %4635 = vmatprep.mubr.bf16.mxu0 0
      %4636 = vmatmul.mubr.bf16.gmra.mrb[0].mxu0 %v4523
      %v4637 = vpop.f32.mrb[0].mxu0
      %v4638 = vadd.f32 0.0, %v4637
      %v4639 = vpop.f32.mrb[0].mxu0
      %v4640 = vpop.f32.mrb[0].mxu0
      %v4641 = vadd.f32 0.0, %v4640
      %v4642 = vpop.f32.mrb[0].mxu0
      %4643 = vmatprep.mubr.bf16.mxu0 0
      %4644 = vmatmul.mubr.bf16.gmra.mrb[0].mxu0 %v4526
      %v4645 = vpop.f32.mrb[0].mxu0
      %v4646 = vadd.f32 0.0, %v4645
      %v4647 = vpop.f32.mrb[0].mxu0
      %v4648 = vpop.f32.mrb[0].mxu0
      %v4649 = vadd.f32 0.0, %v4648
      %v4650 = vpop.f32.mrb[0].mxu0
      %4651 = vmatprep.mubr.bf16.mxu0 0
      %4652 = vmatmul.mubr.bf16.gmra.mrb[0].mxu0 %v4529
      %v4653 = vpop.f32.mrb[0].mxu0
      %v4654 = vadd.f32 0.0, %v4653
      %v4655 = vpop.f32.mrb[0].mxu0
      %v4656 = vpop.f32.mrb[0].mxu0
      %v4657 = vadd.f32 0.0, %v4656
      %v4658 = vpop.f32.mrb[0].mxu0
      %4659 = vmatprep.mubr.bf16.mxu0 0
      %4660 = vmatmul.mubr.bf16.gmra.mrb[0].mxu0 %v4532
      %v4661 = vpop.f32.mrb[0].mxu0
      %v4662 = vadd.f32 0.0, %v4661
      %v4663 = vpop.f32.mrb[0].mxu0
      %v4664 = vpop.f32.mrb[0].mxu0
      %v4665 = vadd.f32 0.0, %v4664
      %v4666 = vpop.f32.mrb[0].mxu0
      %4667 = vmatprep.mubr.bf16.mxu0 0
      %4668 = vmatmul.mubr.bf16.gmra.mrb[0].mxu0 %v4535
      %v4669 = vpop.f32.mrb[0].mxu0
      %v4670 = vadd.f32 0.0, %v4669
      %v4671 = vpop.f32.mrb[0].mxu0
      %v4672 = vpop.f32.mrb[0].mxu0
      %v4673 = vadd.f32 0.0, %v4672
      %v4674 = vpop.f32.mrb[0].mxu0
      %4675 = vmatprep.mubr.bf16.mxu0 0
      %4676 = vmatmul.mubr.bf16.gmra.mrb[0].mxu0 %v4538
      %v4677 = vpop.f32.mrb[0].mxu0
      %v4678 = vadd.f32 0.0, %v4677
      %v4679 = vpop.f32.mrb[0].mxu0
      %v4680 = vpop.f32.mrb[0].mxu0
      %v4681 = vadd.f32 0.0, %v4680
      %v4682 = vpop.f32.mrb[0].mxu0
      %4683 = vmatprep.mubr.bf16.mxu0 0
      %4684 = vmatmul.mubr.bf16.gmra.mrb[0].mxu0 %v4541
      %v4685 = vpop.f32.mrb[0].mxu0
      %v4686 = vadd.f32 0.0, %v4685
      %v4687 = vpop.f32.mrb[0].mxu0
      %v4688 = vpop.f32.mrb[0].mxu0
      %v4689 = vadd.f32 0.0, %v4688
      %v4690 = vpop.f32.mrb[0].mxu0
      %4691 = vmatprep.mubr.bf16.mxu0 0
      %4692 = vmatmul.mubr.bf16.gmra.mrb[0].mxu0 %v4544
      %v4693 = vpop.f32.mrb[0].mxu0
      %v4694 = vadd.f32 0.0, %v4693
      %v4695 = vpop.f32.mrb[0].mxu0
      %v4696 = vpop.f32.mrb[0].mxu0
      %v4697 = vadd.f32 0.0, %v4696
      %v4698 = vpop.f32.mrb[0].mxu0
      %4699 = vmatprep.mubr.bf16.mxu0 0
      %4700 = vmatmul.mubr.bf16.gmra.mrb[0].mxu0 %v4547
      %v4701 = vpop.f32.mrb[0].mxu0
      %v4702 = vadd.f32 0.0, %v4701
      %v4703 = vpop.f32.mrb[0].mxu0
      %v4704 = vpop.f32.mrb[0].mxu0
      %v4705 = vadd.f32 0.0, %v4704
      %v4706 = vpop.f32.mrb[0].mxu0
      %4707 = vmatprep.mubr.bf16.mxu0 0
      %4708 = vmatmul.mubr.bf16.gmra.mrb[0].mxu0 %v4550
      %v4709 = vpop.f32.mrb[0].mxu0
      %v4710 = vadd.f32 0.0, %v4709
      %v4711 = vpop.f32.mrb[0].mxu0
      %v4712 = vpop.f32.mrb[0].mxu0
      %v4713 = vadd.f32 0.0, %v4712
      %v4714 = vpop.f32.mrb[0].mxu0
      %4715 = vdwg.mxu0
      %v4717 = vsel %vm472, %v4469, 0
      %v4720 = vsel %vm472, %v4470, 0
      %v4723 = vsel %vm472, %v4471, 0
      %v4726 = vsel %vm472, %v4472, 0
      %v4729 = vsel %vm472, %v4473, 0
      %v4732 = vsel %vm472, %v4474, 0
      %v4735 = vsel %vm472, %v4475, 0
      %v4738 = vsel %vm472, %v4476, 0
      %v4741 = vsel %vm472, %v4477, 0
      %v4744 = vsel %vm472, %v4478, 0
      %v4747 = vsel %vm472, %v4479, 0
      %v4750 = vsel %vm472, %v4480, 0
      %v4753 = vsel %vm472, %v4481, 0
      %v4756 = vsel %vm472, %v4482, 0
      %v4759 = vsel %vm472, %v4483, 0
      %v4762 = vsel %vm472, %v4484, 0
      %v4765 = vsel %vm521, %v4485, 0
      %4767 = vmatprep.subr.bf16.mxu0 0
      %4768 = vmatpush1.bf16.msra.mxu0 %v4765
      %4769 = vmatprep.subr.bf16.mxu0 0
      %4770 = vmatpush1.bf16.msra.mxu0 0
      %4771 = vmatprep.subr.bf16.mxu0 0
      %4772 = vmatpush1.bf16.msra.mxu0 0
      %4773 = vmatprep.subr.bf16.mxu0 0
      %4774 = vmatpush1.bf16.msra.mxu0 0
      %4775 = vmatprep.subr.bf16.mxu0 0
      %4776 = vmatpush1.bf16.msra.mxu0 0
      %4777 = vmatprep.subr.bf16.mxu0 0
      %4778 = vmatpush1.bf16.msra.mxu0 0
      %4779 = vmatprep.subr.bf16.mxu0 0
      %4780 = vmatpush1.bf16.msra.mxu0 0
      %4781 = vmatprep.subr.bf16.mxu0 0
      %4782 = vmatpush1.bf16.msra.mxu0 0
      %4783 = vmatprep.subr.bf16.mxu0 0
      %4784 = vmatpush1.bf16.msra.mxu0 0
      %4785 = vmatprep.subr.bf16.mxu0 0
      %4786 = vmatpush1.bf16.msra.mxu0 0
      %4787 = vmatprep.subr.bf16.mxu0 0
      %4788 = vmatpush1.bf16.msra.mxu0 0
      %4789 = vmatprep.subr.bf16.mxu0 0
      %4790 = vmatpush1.bf16.msra.mxu0 0
      %4791 = vmatprep.subr.bf16.mxu0 0
      %4792 = vmatpush1.bf16.msra.mxu0 0
      %4793 = vmatprep.subr.bf16.mxu0 0
      %4794 = vmatpush1.bf16.msra.mxu0 0
      %4795 = vmatprep.subr.bf16.mxu0 0
      %4796 = vmatpush1.bf16.msra.mxu0 0
      %4797 = vmatprep.subr.bf16.mxu0 0
      %4798 = vmatpush1.bf16.msra.mxu0 0
      %4799 = vmatprep.mubr.bf16.mxu0 0
      %4800 = vmatmul.mubr.bf16.gmra.mrb[0].mxu0 %v4717
      %v4801 = vpop.f32.mrb[0].mxu0
      %v4802 = vadd.f32 %v4590, %v4801
      %v4803 = vpop.f32.mrb[0].mxu0
      %v4804 = vpop.f32.mrb[0].mxu0
      %v4805 = vadd.f32 %v4593, %v4804
      %v4806 = vpop.f32.mrb[0].mxu0
      %4807 = vmatprep.mubr.bf16.mxu0 0
      %4808 = vmatmul.mubr.bf16.gmra.mrb[0].mxu0 %v4720
      %v4809 = vpop.f32.mrb[0].mxu0
      %v4810 = vadd.f32 %v4598, %v4809
      %v4811 = vpop.f32.mrb[0].mxu0
      %v4812 = vpop.f32.mrb[0].mxu0
      %v4813 = vadd.f32 %v4601, %v4812
      %v4814 = vpop.f32.mrb[0].mxu0
      %4815 = vmatprep.mubr.bf16.mxu0 0
      %4816 = vmatmul.mubr.bf16.gmra.mrb[0].mxu0 %v4723
      %v4817 = vpop.f32.mrb[0].mxu0
      %v4818 = vadd.f32 %v4606, %v4817
      %v4819 = vpop.f32.mrb[0].mxu0
      %v4820 = vpop.f32.mrb[0].mxu0
      %v4821 = vadd.f32 %v4609, %v4820
      %v4822 = vpop.f32.mrb[0].mxu0
      %4823 = vmatprep.mubr.bf16.mxu0 0
      %4824 = vmatmul.mubr.bf16.gmra.mrb[0].mxu0 %v4726
      %v4825 = vpop.f32.mrb[0].mxu0
      %v4826 = vadd.f32 %v4614, %v4825
      %v4827 = vpop.f32.mrb[0].mxu0
      %v4828 = vpop.f32.mrb[0].mxu0
      %v4829 = vadd.f32 %v4617, %v4828
      %v4830 = vpop.f32.mrb[0].mxu0
      %4831 = vmatprep.mubr.bf16.mxu0 0
      %4832 = vmatmul.mubr.bf16.gmra.mrb[0].mxu0 %v4729
      %v4833 = vpop.f32.mrb[0].mxu0
      %v4834 = vadd.f32 %v4622, %v4833
      %v4835 = vpop.f32.mrb[0].mxu0
      %v4836 = vpop.f32.mrb[0].mxu0
      %v4837 = vadd.f32 %v4625, %v4836
      %v4838 = vpop.f32.mrb[0].mxu0
      %4839 = vmatprep.mubr.bf16.mxu0 0
      %4840 = vmatmul.mubr.bf16.gmra.mrb[0].mxu0 %v4732
      %v4841 = vpop.f32.mrb[0].mxu0
      %v4842 = vadd.f32 %v4630, %v4841
      %v4843 = vpop.f32.mrb[0].mxu0
      %v4844 = vpop.f32.mrb[0].mxu0
      %v4845 = vadd.f32 %v4633, %v4844
      %v4846 = vpop.f32.mrb[0].mxu0
      %4847 = vmatprep.mubr.bf16.mxu0 0
      %4848 = vmatmul.mubr.bf16.gmra.mrb[0].mxu0 %v4735
      %v4849 = vpop.f32.mrb[0].mxu0
      %v4850 = vadd.f32 %v4638, %v4849
      %v4851 = vpop.f32.mrb[0].mxu0
      %v4852 = vpop.f32.mrb[0].mxu0
      %v4853 = vadd.f32 %v4641, %v4852
      %v4854 = vpop.f32.mrb[0].mxu0
      %4855 = vmatprep.mubr.bf16.mxu0 0
      %4856 = vmatmul.mubr.bf16.gmra.mrb[0].mxu0 %v4738
      %v4857 = vpop.f32.mrb[0].mxu0
      %v4858 = vadd.f32 %v4646, %v4857
      %v4859 = vpop.f32.mrb[0].mxu0
      %v4860 = vpop.f32.mrb[0].mxu0
      %v4861 = vadd.f32 %v4649, %v4860
      %v4862 = vpop.f32.mrb[0].mxu0
      %4863 = vmatprep.mubr.bf16.mxu0 0
      %4864 = vmatmul.mubr.bf16.gmra.mrb[0].mxu0 %v4741
      %v4865 = vpop.f32.mrb[0].mxu0
      %v4866 = vadd.f32 %v4654, %v4865
      %v4867 = vpop.f32.mrb[0].mxu0
      %v4868 = vpop.f32.mrb[0].mxu0
      %v4869 = vadd.f32 %v4657, %v4868
      %v4870 = vpop.f32.mrb[0].mxu0
      %4871 = vmatprep.mubr.bf16.mxu0 0
      %4872 = vmatmul.mubr.bf16.gmra.mrb[0].mxu0 %v4744
      %v4873 = vpop.f32.mrb[0].mxu0
      %v4874 = vadd.f32 %v4662, %v4873
      %v4875 = vpop.f32.mrb[0].mxu0
      %v4876 = vpop.f32.mrb[0].mxu0
      %v4877 = vadd.f32 %v4665, %v4876
      %v4878 = vpop.f32.mrb[0].mxu0
      %4879 = vmatprep.mubr.bf16.mxu0 0
      %4880 = vmatmul.mubr.bf16.gmra.mrb[0].mxu0 %v4747
      %v4881 = vpop.f32.mrb[0].mxu0
      %v4882 = vadd.f32 %v4670, %v4881
      %v4883 = vpop.f32.mrb[0].mxu0
      %v4884 = vpop.f32.mrb[0].mxu0
      %v4885 = vadd.f32 %v4673, %v4884
      %v4886 = vpop.f32.mrb[0].mxu0
      %4887 = vmatprep.mubr.bf16.mxu0 0
      %4888 = vmatmul.mubr.bf16.gmra.mrb[0].mxu0 %v4750
      %v4889 = vpop.f32.mrb[0].mxu0
      %v4890 = vadd.f32 %v4678, %v4889
      %v4891 = vpop.f32.mrb[0].mxu0
      %v4892 = vpop.f32.mrb[0].mxu0
      %v4893 = vadd.f32 %v4681, %v4892
      %v4894 = vpop.f32.mrb[0].mxu0
      %4895 = vmatprep.mubr.bf16.mxu0 0
      %4896 = vmatmul.mubr.bf16.gmra.mrb[0].mxu0 %v4753
      %v4897 = vpop.f32.mrb[0].mxu0
      %v4898 = vadd.f32 %v4686, %v4897
      %v4899 = vpop.f32.mrb[0].mxu0
      %v4900 = vpop.f32.mrb[0].mxu0
      %v4901 = vadd.f32 %v4689, %v4900
      %v4902 = vpop.f32.mrb[0].mxu0
      %4903 = vmatprep.mubr.bf16.mxu0 0
      %4904 = vmatmul.mubr.bf16.gmra.mrb[0].mxu0 %v4756
      %v4905 = vpop.f32.mrb[0].mxu0
      %v4906 = vadd.f32 %v4694, %v4905
      %v4907 = vpop.f32.mrb[0].mxu0
      %v4908 = vpop.f32.mrb[0].mxu0
      %v4909 = vadd.f32 %v4697, %v4908
      %v4910 = vpop.f32.mrb[0].mxu0
      %4911 = vmatprep.mubr.bf16.mxu0 0
      %4912 = vmatmul.mubr.bf16.gmra.mrb[0].mxu0 %v4759
      %v4913 = vpop.f32.mrb[0].mxu0
      %v4914 = vadd.f32 %v4702, %v4913
      %v4915 = vpop.f32.mrb[0].mxu0
      %v4916 = vpop.f32.mrb[0].mxu0
      %v4917 = vadd.f32 %v4705, %v4916
      %v4918 = vpop.f32.mrb[0].mxu0
      %4919 = vmatprep.mubr.bf16.mxu0 0
      %4920 = vmatmul.mubr.bf16.gmra.mrb[0].mxu0 %v4762
      %v4921 = vpop.f32.mrb[0].mxu0
      %v4922 = vadd.f32 %v4710, %v4921
      %v4923 = vpop.f32.mrb[0].mxu0
      %v4924 = vpop.f32.mrb[0].mxu0
      %v4925 = vadd.f32 %v4713, %v4924
      %v4926 = vpop.f32.mrb[0].mxu0
      %4927 = vdwg.mxu0
      %v4928 = vld [vmem:[%s11] sm:$0x1]
      %v4930 = vlaneseq
      %v4931 = vshrl.u32 %v4930, 7
      %v4932 = vsub.s32 0, %v4931
      %v4933 = vrot.slane %v4928, %v4932
      %v4935 = vadd.f32 %v4802, %v4933
      %v4936 = vadd.f32 %v4805, %v4933
      %v4937 = vadd.f32 %v4810, %v4933
      %v4938 = vadd.f32 %v4813, %v4933
      %v4939 = vadd.f32 %v4818, %v4933
      %v4940 = vadd.f32 %v4821, %v4933
      %v4941 = vadd.f32 %v4826, %v4933
      %v4942 = vadd.f32 %v4829, %v4933
      %v4943 = vadd.f32 %v4834, %v4933
      %v4944 = vadd.f32 %v4837, %v4933
      %v4945 = vadd.f32 %v4842, %v4933
      %v4946 = vadd.f32 %v4845, %v4933
      %v4947 = vadd.f32 %v4850, %v4933
      %v4948 = vadd.f32 %v4853, %v4933
      %v4949 = vadd.f32 %v4858, %v4933
      %v4950 = vadd.f32 %v4861, %v4933
      %v4951 = vadd.f32 %v4866, %v4933
      %v4952 = vadd.f32 %v4869, %v4933
      %v4953 = vadd.f32 %v4874, %v4933
      %v4954 = vadd.f32 %v4877, %v4933
      %v4955 = vadd.f32 %v4882, %v4933
      %v4956 = vadd.f32 %v4885, %v4933
      %v4957 = vadd.f32 %v4890, %v4933
      %v4958 = vadd.f32 %v4893, %v4933
      %v4959 = vadd.f32 %v4898, %v4933
      %v4960 = vadd.f32 %v4901, %v4933
      %v4961 = vadd.f32 %v4906, %v4933
      %v4962 = vadd.f32 %v4909, %v4933
      %v4963 = vadd.f32 %v4914, %v4933
      %v4964 = vadd.f32 %v4917, %v4933
      %v4965 = vadd.f32 %v4922, %v4933
      %v4966 = vadd.f32 %v4925, %v4933
      %v4967 = vsub.f32 0.0, %v4935
      %v4968 = vsub.f32 0.0, %v4936
      %v4969 = vsub.f32 0.0, %v4937
      %v4970 = vsub.f32 0.0, %v4938
      %v4971 = vsub.f32 0.0, %v4939
      %v4972 = vsub.f32 0.0, %v4940
      %v4973 = vsub.f32 0.0, %v4941
      %v4974 = vsub.f32 0.0, %v4942
      %v4975 = vsub.f32 0.0, %v4943
      %v4976 = vsub.f32 0.0, %v4944
      %v4977 = vsub.f32 0.0, %v4945
      %v4978 = vsub.f32 0.0, %v4946
      %v4979 = vsub.f32 0.0, %v4947
      %v4980 = vsub.f32 0.0, %v4948
      %v4981 = vsub.f32 0.0, %v4949
      %v4982 = vsub.f32 0.0, %v4950
      %v4983 = vsub.f32 0.0, %v4951
      %v4984 = vsub.f32 0.0, %v4952
      %v4985 = vsub.f32 0.0, %v4953
      %v4986 = vsub.f32 0.0, %v4954
      %v4987 = vsub.f32 0.0, %v4955
      %v4988 = vsub.f32 0.0, %v4956
      %v4989 = vsub.f32 0.0, %v4957
      %v4990 = vsub.f32 0.0, %v4958
      %v4991 = vsub.f32 0.0, %v4959
      %v4992 = vsub.f32 0.0, %v4960
      %v4993 = vsub.f32 0.0, %v4961
      %v4994 = vsub.f32 0.0, %v4962
      %v4995 = vsub.f32 0.0, %v4963
      %v4996 = vsub.f32 0.0, %v4964
      %v4997 = vsub.f32 0.0, %v4965
      %v4998 = vsub.f32 0.0, %v4966
      %v4999 = vmul.f32 %v4967, 1.442695
      %v5000 = vpow.pop %v4999
      %v5001 = vmul.f32 %v4968, 1.442695
      %v5002 = vpow.pop %v5001
      %v5003 = vmul.f32 %v4969, 1.442695
      %v5004 = vpow.pop %v5003
      %v5005 = vmul.f32 %v4970, 1.442695
      %v5006 = vpow.pop %v5005
      %v5007 = vmul.f32 %v4971, 1.442695
      %v5008 = vpow.pop %v5007
      %v5009 = vmul.f32 %v4972, 1.442695
      %v5010 = vpow.pop %v5009
      %v5011 = vmul.f32 %v4973, 1.442695
      %v5012 = vpow.pop %v5011
      %v5013 = vmul.f32 %v4974, 1.442695
      %v5014 = vpow.pop %v5013
      %v5015 = vmul.f32 %v4975, 1.442695
      %v5016 = vpow.pop %v5015
      %v5017 = vmul.f32 %v4976, 1.442695
      %v5018 = vpow.pop %v5017
      %v5019 = vmul.f32 %v4977, 1.442695
      %v5020 = vpow.pop %v5019
      %v5021 = vmul.f32 %v4978, 1.442695
      %v5022 = vpow.pop %v5021
      %v5023 = vmul.f32 %v4979, 1.442695
      %v5024 = vpow.pop %v5023
      %v5025 = vmul.f32 %v4980, 1.442695
      %v5026 = vpow.pop %v5025
      %v5027 = vmul.f32 %v4981, 1.442695
      %v5028 = vpow.pop %v5027
      %v5029 = vmul.f32 %v4982, 1.442695
      %v5030 = vpow.pop %v5029
      %v5031 = vmul.f32 %v4983, 1.442695
      %v5032 = vpow.pop %v5031
      %v5033 = vmul.f32 %v4984, 1.442695
      %v5034 = vpow.pop %v5033
      %v5035 = vmul.f32 %v4985, 1.442695
      %v5036 = vpow.pop %v5035
      %v5037 = vmul.f32 %v4986, 1.442695
      %v5038 = vpow.pop %v5037
      %v5039 = vmul.f32 %v4987, 1.442695
      %v5040 = vpow.pop %v5039
      %v5041 = vmul.f32 %v4988, 1.442695
      %v5042 = vpow.pop %v5041
      %v5043 = vmul.f32 %v4989, 1.442695
      %v5044 = vpow.pop %v5043
      %v5045 = vmul.f32 %v4990, 1.442695
      %v5046 = vpow.pop %v5045
      %v5047 = vmul.f32 %v4991, 1.442695
      %v5048 = vpow.pop %v5047
      %v5049 = vmul.f32 %v4992, 1.442695
      %v5050 = vpow.pop %v5049
      %v5051 = vmul.f32 %v4993, 1.442695
      %v5052 = vpow.pop %v5051
      %v5053 = vmul.f32 %v4994, 1.442695
      %v5054 = vpow.pop %v5053
      %v5055 = vmul.f32 %v4995, 1.442695
      %v5056 = vpow.pop %v5055
      %v5057 = vmul.f32 %v4996, 1.442695
      %v5058 = vpow.pop %v5057
      %v5059 = vmul.f32 %v4997, 1.442695
      %v5060 = vpow.pop %v5059
      %v5061 = vmul.f32 %v4998, 1.442695
      %v5062 = vpow.pop %v5061
      %v5063 = vadd.f32 %v5000, 1.0
      %v5064 = vadd.f32 %v5002, 1.0
      %v5065 = vadd.f32 %v5004, 1.0
      %v5066 = vadd.f32 %v5006, 1.0
      %v5067 = vadd.f32 %v5008, 1.0
      %v5068 = vadd.f32 %v5010, 1.0
      %v5069 = vadd.f32 %v5012, 1.0
      %v5070 = vadd.f32 %v5014, 1.0
      %v5071 = vadd.f32 %v5016, 1.0
      %v5072 = vadd.f32 %v5018, 1.0
      %v5073 = vadd.f32 %v5020, 1.0
      %v5074 = vadd.f32 %v5022, 1.0
      %v5075 = vadd.f32 %v5024, 1.0
      %v5076 = vadd.f32 %v5026, 1.0
      %v5077 = vadd.f32 %v5028, 1.0
      %v5078 = vadd.f32 %v5030, 1.0
      %v5079 = vadd.f32 %v5032, 1.0
      %v5080 = vadd.f32 %v5034, 1.0
      %v5081 = vadd.f32 %v5036, 1.0
      %v5082 = vadd.f32 %v5038, 1.0
      %v5083 = vadd.f32 %v5040, 1.0
      %v5084 = vadd.f32 %v5042, 1.0
      %v5085 = vadd.f32 %v5044, 1.0
      %v5086 = vadd.f32 %v5046, 1.0
      %v5087 = vadd.f32 %v5048, 1.0
      %v5088 = vadd.f32 %v5050, 1.0
      %v5089 = vadd.f32 %v5052, 1.0
      %v5090 = vadd.f32 %v5054, 1.0
      %v5091 = vadd.f32 %v5056, 1.0
      %v5092 = vadd.f32 %v5058, 1.0
      %v5093 = vadd.f32 %v5060, 1.0
      %v5094 = vadd.f32 %v5062, 1.0
      %v5095 = vrcp.pop %v5063
      %v5096 = vmul.f32 1.0, %v5095
      %v5097 = vrcp.pop %v5064
      %v5098 = vmul.f32 1.0, %v5097
      %v5099 = vrcp.pop %v5065
      %v5100 = vmul.f32 1.0, %v5099
      %v5101 = vrcp.pop %v5066
      %v5102 = vmul.f32 1.0, %v5101
      %v5103 = vrcp.pop %v5067
      %v5104 = vmul.f32 1.0, %v5103
      %v5105 = vrcp.pop %v5068
      %v5106 = vmul.f32 1.0, %v5105
      %v5107 = vrcp.pop %v5069
      %v5108 = vmul.f32 1.0, %v5107
      %v5109 = vrcp.pop %v5070
      %v5110 = vmul.f32 1.0, %v5109
      %v5111 = vrcp.pop %v5071
      %v5112 = vmul.f32 1.0, %v5111
      %v5113 = vrcp.pop %v5072
      %v5114 = vmul.f32 1.0, %v5113
      %v5115 = vrcp.pop %v5073
      %v5116 = vmul.f32 1.0, %v5115
      %v5117 = vrcp.pop %v5074
      %v5118 = vmul.f32 1.0, %v5117
      %v5119 = vrcp.pop %v5075
      %v5120 = vmul.f32 1.0, %v5119
      %v5121 = vrcp.pop %v5076
      %v5122 = vmul.f32 1.0, %v5121
      %v5123 = vrcp.pop %v5077
      %v5124 = vmul.f32 1.0, %v5123
      %v5125 = vrcp.pop %v5078
      %v5126 = vmul.f32 1.0, %v5125
      %v5127 = vrcp.pop %v5079
      %v5128 = vmul.f32 1.0, %v5127
      %v5129 = vrcp.pop %v5080
      %v5130 = vmul.f32 1.0, %v5129
      %v5131 = vrcp.pop %v5081
      %v5132 = vmul.f32 1.0, %v5131
      %v5133 = vrcp.pop %v5082
      %v5134 = vmul.f32 1.0, %v5133
      %v5135 = vrcp.pop %v5083
      %v5136 = vmul.f32 1.0, %v5135
      %v5137 = vrcp.pop %v5084
      %v5138 = vmul.f32 1.0, %v5137
      %v5139 = vrcp.pop %v5085
      %v5140 = vmul.f32 1.0, %v5139
      %v5141 = vrcp.pop %v5086
      %v5142 = vmul.f32 1.0, %v5141
      %v5143 = vrcp.pop %v5087
      %v5144 = vmul.f32 1.0, %v5143
      %v5145 = vrcp.pop %v5088
      %v5146 = vmul.f32 1.0, %v5145
      %v5147 = vrcp.pop %v5089
      %v5148 = vmul.f32 1.0, %v5147
      %v5149 = vrcp.pop %v5090
      %v5150 = vmul.f32 1.0, %v5149
      %v5151 = vrcp.pop %v5091
      %v5152 = vmul.f32 1.0, %v5151
      %v5153 = vrcp.pop %v5092
      %v5154 = vmul.f32 1.0, %v5153
      %v5155 = vrcp.pop %v5093
      %v5156 = vmul.f32 1.0, %v5155
      %v5157 = vrcp.pop %v5094
      %v5158 = vmul.f32 1.0, %v5157
      %v5159 = vmul.f32 %v4935, %v5096
      %v5160 = vmul.f32 %v4936, %v5098
      %v5161 = vmul.f32 %v4937, %v5100
      %v5162 = vmul.f32 %v4938, %v5102
      %v5163 = vmul.f32 %v4939, %v5104
      %v5164 = vmul.f32 %v4940, %v5106
      %v5165 = vmul.f32 %v4941, %v5108
      %v5166 = vmul.f32 %v4942, %v5110
      %v5167 = vmul.f32 %v4943, %v5112
      %v5168 = vmul.f32 %v4944, %v5114
      %v5169 = vmul.f32 %v4945, %v5116
      %v5170 = vmul.f32 %v4946, %v5118
      %v5171 = vmul.f32 %v4947, %v5120
      %v5172 = vmul.f32 %v4948, %v5122
      %v5173 = vmul.f32 %v4949, %v5124
      %v5174 = vmul.f32 %v4950, %v5126
      %v5175 = vmul.f32 %v4951, %v5128
      %v5176 = vmul.f32 %v4952, %v5130
      %v5177 = vmul.f32 %v4953, %v5132
      %v5178 = vmul.f32 %v4954, %v5134
      %v5179 = vmul.f32 %v4955, %v5136
      %v5180 = vmul.f32 %v4956, %v5138
      %v5181 = vmul.f32 %v4957, %v5140
      %v5182 = vmul.f32 %v4958, %v5142
      %v5183 = vmul.f32 %v4959, %v5144
      %v5184 = vmul.f32 %v4960, %v5146
      %v5185 = vmul.f32 %v4961, %v5148
      %v5186 = vmul.f32 %v4962, %v5150
      %v5187 = vmul.f32 %v4963, %v5152
      %v5188 = vmul.f32 %v4964, %v5154
      %v5189 = vmul.f32 %v4965, %v5156
      %v5190 = vmul.f32 %v4966, %v5158
      %vm5191 = vcmask 64512
      %5192 = vst.msk [vmem:[%s413] sm:$0xff] %vm5191, %v5159
      %5193 = vst.msk [vmem:[%s413 + $0x8] sm:$0xff] %vm5191, %v5160
      %5194 = vst.msk [vmem:[%s413 + $0x10] sm:$0xff] %vm5191, %v5161
      %5195 = vst.msk [vmem:[%s413 + $0x18] sm:$0xff] %vm5191, %v5162
      %5196 = vst.msk [vmem:[%s413 + $0x20] sm:$0xff] %vm5191, %v5163
      %5197 = vst.msk [vmem:[%s413 + $0x28] sm:$0xff] %vm5191, %v5164
      %5198 = vst.msk [vmem:[%s413 + $0x30] sm:$0xff] %vm5191, %v5165
      %5199 = vst.msk [vmem:[%s413 + $0x38] sm:$0xff] %vm5191, %v5166
      %5200 = vst.msk [vmem:[%s413 + $0x40] sm:$0xff] %vm5191, %v5167
      %5201 = vst.msk [vmem:[%s413 + $0x48] sm:$0xff] %vm5191, %v5168
      %5202 = vst.msk [vmem:[%s413 + $0x50] sm:$0xff] %vm5191, %v5169
      %5203 = vst.msk [vmem:[%s413 + $0x58] sm:$0xff] %vm5191, %v5170
      %5204 = vst.msk [vmem:[%s413 + $0x60] sm:$0xff] %vm5191, %v5171
      %5205 = vst.msk [vmem:[%s413 + $0x68] sm:$0xff] %vm5191, %v5172
      %5206 = vst.msk [vmem:[%s413 + $0x70] sm:$0xff] %vm5191, %v5173
      %5207 = vst.msk [vmem:[%s413 + $0x78] sm:$0xff] %vm5191, %v5174
      %5208 = vst.msk [vmem:[%s413 + $0x80] sm:$0xff] %vm5191, %v5175
      %5209 = vst.msk [vmem:[%s413 + $0x88] sm:$0xff] %vm5191, %v5176
      %5210 = vst.msk [vmem:[%s413 + $0x90] sm:$0xff] %vm5191, %v5177
      %5211 = vst.msk [vmem:[%s413 + $0x98] sm:$0xff] %vm5191, %v5178
      %5212 = vst.msk [vmem:[%s413 + $0xa0] sm:$0xff] %vm5191, %v5179
      %5213 = vst.msk [vmem:[%s413 + $0xa8] sm:$0xff] %vm5191, %v5180
      %5214 = vst.msk [vmem:[%s413 + $0xb0] sm:$0xff] %vm5191, %v5181
      %5215 = vst.msk [vmem:[%s413 + $0xb8] sm:$0xff] %vm5191, %v5182
      %5216 = vst.msk [vmem:[%s413 + $0xc0] sm:$0xff] %vm5191, %v5183
      %5217 = vst.msk [vmem:[%s413 + $0xc8] sm:$0xff] %vm5191, %v5184
      %5218 = vst.msk [vmem:[%s413 + $0xd0] sm:$0xff] %vm5191, %v5185
      %5219 = vst.msk [vmem:[%s413 + $0xd8] sm:$0xff] %vm5191, %v5186
      %5220 = vst.msk [vmem:[%s413 + $0xe0] sm:$0xff] %vm5191, %v5187
      %5221 = vst.msk [vmem:[%s413 + $0xe8] sm:$0xff] %vm5191, %v5188
      %5222 = vst.msk [vmem:[%s413 + $0xf0] sm:$0xff] %vm5191, %v5189
      %5223 = vst.msk [vmem:[%s413 + $0xf8] sm:$0xff] %vm5191, %v5190
      %p5224 = scmp.lt.s32.totalorder %s23, 1
      %s5225 = scalar_select %p5224, %s23, 1
      %s5226 = smul.addr %s5225, 32
      %s5227 = smul.addr %s5226, 8
      %s5228 = scalar_lea.vmem %s12, %s5227
      // Predicated region
      $region69: #{tpu_custom_call.1} parent=67 // pred_check
        %p5229 = pneg %p298
      $region70: #{tpu_custom_call.1} parent=67 // pred_check_branch
        %5231 = sbr.rel (%p5229) target = $region72
      $region71: #{tpu_custom_call.1} parent=67 // pred_region
        _
      $region72: #{tpu_custom_call.1} parent=67 // pred_fallthru
        _
    $region68: #{tpu_custom_call.1} parent=5 // pred_fallthru
      _
    %p5232 = scmp.le.s32.totalorder 2, %s18
    // Predicated region
    $region73: #{tpu_custom_call.1} parent=5 // pred_check
      %p5233 = pneg %p5232
    $region74: #{tpu_custom_call.1} parent=5 // pred_check_branch
      %5235 = sbr.rel (%p5233) target = $region76
    $region75: #{tpu_custom_call.1} parent=5 // pred_region
      %s5236 = ssub.s32 %s18, 2
      // Predicated region
      $region77: #{tpu_custom_call.1} parent=75 // pred_check
        %p5237 = pneg %p304
      $region78: #{tpu_custom_call.1} parent=75 // pred_check_branch
        %5239 = sbr.rel (%p5237) target = $region80
      $region79: #{tpu_custom_call.1} parent=75 // pred_region
        %p5240 = scmp.lt.s32.totalorder %s24, 1
        %s5241 = scalar_select %p5240, %s24, 1
        %s5242 = smul.addr %s5241, 32
        %s5243 = smul.addr %s5242, 8
        %s5244 = scalar_lea.vmem %s12, %s5243
      $region80: #{tpu_custom_call.1} parent=75 // pred_fallthru
        _
    $region76: #{tpu_custom_call.1} parent=5 // pred_fallthru
      _
  $region6: #{tpu_custom_call.1} parent=0 // loop_footer
    %s22 = sadd.s32 1, %s18
  $region7: #{tpu_custom_call.1} parent=0 // loop_footer_branch
    %17 = sbr.rel target = $region3
  $region8: #{tpu_custom_call.1} parent=0 // loop_exit
    _

</llo_original>
